<compile_context>
chip_gen: v7x
topology: tpu7x:2x2x1
jax: 0.10.0
libtpu: 0.0.40
codegen_flags: <defaults>
</compile_context>

<pallas_src>
import functools

import jax
import jax.numpy as jnp
from jax.experimental import pallas as pl
from jax.experimental.pallas import tpu as pltpu


def _lstm_model_kernel(x_ref,      # (T*Bp, D)   bf16, time-major, batch-padded
                       w_ih_ref,   # (D, 4H)     bf16, transposed weight_ih
                       w_hh_ref,   # (H, 4H)     bf16, transposed weight_hh
                       b_ref,      # (1, 4H)     f32,  b_ih + b_hh
                       w1_ref,     # (H, 8)      f32,  transposed fc1 weight
                       b1_ref,     # (1, 8)      f32
                       w2_ref,     # (T*8, OUT)  f32,  transposed fc2 weight
                       b2_ref,     # (1, OUT)    f32
                       out_ref,    # (Bp, OUT)   f32
                       xw_ref,     # (T*Bp, 4H)  f32 scratch: staged input proj
                       hs_ref,     # (T*Bp, H)   f32 scratch: relu(h_t) history
                       uf_ref,     # (Bp, T*8)   f32 scratch: flattened fc1 feats
                       *, seq_len, batch_pad):
    T, Bp = seq_len, batch_pad
    H = w_hh_ref.shape[0]

    # ---- hoisted input projection: one bf16 matmul, f32 accum, staged in VMEM
    xw_ref[...] = (jnp.dot(x_ref[...], w_ih_ref[...],
                           preferred_element_type=jnp.float32) + b_ref[...])

    # ---- loop-invariant recurrent weight (bf16) read once --------------------
    w_hh = w_hh_ref[...]

    # ---- fully unrolled recurrence; critical path = h @ W_hh + gate math ----
    h = jnp.zeros((Bp, H), jnp.float32)
    c = jnp.zeros((Bp, H), jnp.float32)
    for t in range(T):
        r0 = t * Bp                                   # 8-aligned static offset
        gates = (xw_ref[r0:r0 + Bp, :]
                 + jnp.dot(h.astype(jnp.bfloat16), w_hh,
                           preferred_element_type=jnp.float32))
        # full-width activations, then lane-slice (PyTorch gate order i,f,g,o)
        sg = jax.nn.sigmoid(gates)                    # (Bp, 4H)
        tg = jnp.tanh(gates)                          # (Bp, 4H)
        i_g = sg[:, 0 * H:1 * H]
        f_g = sg[:, 1 * H:2 * H]
        g_g = tg[:, 2 * H:3 * H]
        o_g = sg[:, 3 * H:4 * H]
        c = f_g * c + i_g * g_g
        h = o_g * jnp.tanh(c)
        hs_ref[r0:r0 + Bp, :] = jnp.maximum(h, 0.0)   # relu fused into store

    # ---- relu(lstm_out) -> fc1 -> relu as one batched matmul ----------------
    # (dropout1 / dropout2 are identity in eval mode)
    u = jnp.maximum(
        jnp.dot(hs_ref[...], w1_ref[...],
                preferred_element_type=jnp.float32) + b1_ref[...], 0.0)

    # ---- flatten to (Bp, T*8) lane-dense, then ONE fc2 matmul ---------------
    for t in range(T):
        uf_ref[:, t * 8:(t + 1) * 8] = u[t * Bp:(t + 1) * Bp, :]

    logits = (jnp.dot(uf_ref[...], w2_ref[...],
                      preferred_element_type=jnp.float32) + b2_ref[...])

    # ---- softmax(dim=1), exact normalization (one-time tiny op) -------------
    m = jnp.max(logits, axis=1, keepdims=True)
    e = jnp.exp(logits - m)
    out_ref[...] = e / jnp.sum(e, axis=1, keepdims=True)


@jax.jit
def lstm_forward(x, params):
    """x: (B, T, D) float32, batch-first (PyTorch convention). Returns (B, OUT)."""
    w_ih_bf, w_hh_bf, b, w1_t, b1, w2_flat, b2 = params
    B, T, D = x.shape
    H = w_hh_bf.shape[0]
    OUT = b2.shape[1]
    Bp = ((B + 7) // 8) * 8             # pad batch to a full 8-row sublane tile

    # time-major + batch pad + flatten done in XLA (a few KB): keeps every
    # in-kernel slice/store 8-aligned and removes in-kernel reshapes.
    x_tm = jnp.transpose(x, (1, 0, 2))                        # (T, B, D)
    x_pad = jnp.pad(x_tm, ((0, 0), (0, Bp - B), (0, 0)))      # (T, Bp, D)
    x_flat = x_pad.reshape(T * Bp, D).astype(jnp.bfloat16)    # (T*Bp, D)

    vmem = pl.BlockSpec(memory_space=pltpu.MemorySpace.VMEM)
    out = pl.pallas_call(
        functools.partial(_lstm_model_kernel, seq_len=T, batch_pad=Bp),
        out_shape=jax.ShapeDtypeStruct((Bp, OUT), jnp.float32),
        in_specs=[vmem] * 8,
        out_specs=vmem,
        scratch_shapes=[
            pltpu.VMEM((T * Bp, 4 * H), jnp.float32),   # staged input projection
            pltpu.VMEM((T * Bp, H), jnp.float32),       # relu(h_t) history
            pltpu.VMEM((Bp, T * 8), jnp.float32),       # flattened fc1 features
        ],
    )(x_flat, w_ih_bf, w_hh_bf, b, w1_t, b1, w2_flat, b2)
    return out[:B]


def init_params(key, input_dim, hidden_dim, output_dim, seq_len):
    """Deterministic synthetic parameters, matching nn.LSTM / nn.Linear shapes."""
    ks = jax.random.split(key, 4)
    H, D, T = hidden_dim, input_dim, seq_len

    def scaled_normal(k, shape, fan_in):
        return jax.random.normal(k, shape, jnp.float32) / jnp.sqrt(fan_in)

    # nn.LSTM: weight_ih (4H, D), weight_hh (4H, H), bias_ih (4H,), bias_hh (4H,)
    w_ih = scaled_normal(ks[0], (4 * H, D), D)
    w_hh = scaled_normal(ks[1], (4 * H, H), H)
    b_ih = jnp.zeros((4 * H,), jnp.float32)
    b_hh = jnp.zeros((4 * H,), jnp.float32)
    # fc1: Linear(H, 8)
    w1 = scaled_normal(ks[2], (8, H), H)
    b1 = jnp.zeros((8,), jnp.float32)
    # fc2: Linear(8*T, output_dim)   (T == 23 per the module definition)
    w2 = scaled_normal(ks[3], (output_dim, 8 * T), 8 * T)
    b2 = jnp.zeros((output_dim,), jnp.float32)

    # Pre-transpose for the kernel; MXU operands of the recurrence / input
    # projection are stored bf16 (accumulation stays f32 in-kernel).
    return (
        jnp.transpose(w_ih).astype(jnp.bfloat16),     # (D, 4H)
        jnp.transpose(w_hh).astype(jnp.bfloat16),     # (H, 4H)
        (b_ih + b_hh).reshape(1, 4 * H),              # (1, 4H)
        jnp.transpose(w1),                            # (H, 8)
        b1.reshape(1, 8),                             # (1, 8)
        jnp.transpose(w2),                            # (8T, OUT)
        b2.reshape(1, output_dim),                    # (1, OUT)
    )


def _reference(x, params):
    """Pure-JAX forward matching the PyTorch module (eval mode), using the same
    bf16 rounding of the MXU operands as the kernel (accumulation in f32)."""
    w_ih_bf, w_hh_bf, b, w1_t, b1, w2_flat, b2 = params
    B, T, D = x.shape
    H = w_hh_bf.shape[0]
    w_ih = w_ih_bf.astype(jnp.float32)
    w_hh = w_hh_bf.astype(jnp.float32)
    bf = lambda a: a.astype(jnp.bfloat16).astype(jnp.float32)

    h = jnp.zeros((B, H), jnp.float32)
    c = jnp.zeros((B, H), jnp.float32)
    hs = []
    for t in range(T):
        gates = bf(x[:, t, :]) @ w_ih + bf(h) @ w_hh + b[0]
        i = jax.nn.sigmoid(gates[:, 0 * H:1 * H])
        f = jax.nn.sigmoid(gates[:, 1 * H:2 * H])
        g = jnp.tanh(gates[:, 2 * H:3 * H])
        o = jax.nn.sigmoid(gates[:, 3 * H:4 * H])
        c = f * c + i * g
        h = o * jnp.tanh(c)
        hs.append(h)
    hs = jnp.stack(hs, axis=1)                              # (B, T, H)
    u = jnp.maximum(jnp.maximum(hs, 0.0) @ w1_t + b1[0], 0.0)   # (B, T, 8)
    logits = u.reshape(B, T * 8) @ w2_flat + b2[0]
    return jax.nn.softmax(logits, axis=1)


if __name__ == "__main__":
    key = jax.random.PRNGKey(0)
    B = 2
    T = 23          # fixed by fc2 = Linear(8*23, out) in the PyTorch module
    D = 16          # input_dim
    H = 32          # hidden_dim (4H = 128 -> one lane width / MXU output tile)
    OUT = 4         # output_dim

    kx, kp = jax.random.split(key)
    x = jax.random.normal(kx, (B, T, D), jnp.float32)
    params = init_params(kp, D, H, OUT, T)

    y = jax.block_until_ready(lstm_forward(x, params))

    assert y.shape == (B, OUT)
    # softmax rows sum to 1 (exact normalization in the kernel)
    assert jnp.allclose(jnp.sum(y, axis=1), 1.0, atol=1e-4)
    # match the pure-JAX reference forward
    y_ref = _reference(x, params)
    assert jnp.allclose(y, y_ref, atol=3e-3, rtol=3e-3), (y, y_ref)
    print("KERNEL_OK")
</pallas_src>

<mosaic_0001>
module attributes {stable_mosaic.version = 11 : i64} {
  func.func @_lstm_model_kernel(%arg0: memref<184x16xbf16, #tpu.memory_space<vmem>>, %arg1: memref<16x128xbf16, #tpu.memory_space<vmem>>, %arg2: memref<32x128xbf16, #tpu.memory_space<vmem>>, %arg3: memref<1x128xf32, #tpu.memory_space<vmem>>, %arg4: memref<32x8xf32, #tpu.memory_space<vmem>>, %arg5: memref<1x8xf32, #tpu.memory_space<vmem>>, %arg6: memref<184x4xf32, #tpu.memory_space<vmem>>, %arg7: memref<1x4xf32, #tpu.memory_space<vmem>>, %arg8: memref<8x4xf32, #tpu.memory_space<vmem>>, %arg9: memref<184x128xf32, #tpu.memory_space<vmem>>, %arg10: memref<184x32xf32, #tpu.memory_space<vmem>>, %arg11: memref<8x184xf32, #tpu.memory_space<vmem>>) attributes {dimension_semantics = [], scalar_prefetch = 0 : i64, scratch_operands = 3 : i64, tpu.core_type = #tpu.core_type<tc>} {
    %c0 = arith.constant 0 : index
    %c0_0 = arith.constant 0 : index
    %0 = vector.load %arg0[%c0, %c0_0] : memref<184x16xbf16, #tpu.memory_space<vmem>>, vector<184x16xbf16>
    %c0_1 = arith.constant 0 : index
    %c0_2 = arith.constant 0 : index
    %1 = vector.load %arg1[%c0_1, %c0_2] : memref<16x128xbf16, #tpu.memory_space<vmem>>, vector<16x128xbf16>
    %cst = arith.constant dense<0.000000e+00> : vector<184x128xf32>
    %2 = tpu.matmul %0, %1, %cst {dimension_numbers = #tpu.dot_dimension_numbers<[1], [0], [0], [1], [0, 0, 1, 1], [], []>} : vector<184x16xbf16>, vector<16x128xbf16>, vector<184x128xf32> -> vector<184x128xf32>
    %c0_3 = arith.constant 0 : index
    %c0_4 = arith.constant 0 : index
    %3 = vector.load %arg3[%c0_3, %c0_4] : memref<1x128xf32, #tpu.memory_space<vmem>>, vector<1x128xf32>
    %4 = vector.broadcast %3 : vector<1x128xf32> to vector<184x128xf32>
    %5 = arith.addf %2, %4 : vector<184x128xf32>
    %c0_5 = arith.constant 0 : index
    %c0_6 = arith.constant 0 : index
    %6 = vector.load %arg9[%c0_5, %c0_6] : memref<184x128xf32, #tpu.memory_space<vmem>>, vector<184x128xf32>
    tpu.vector_store %arg9[%c0_5, %c0_6], %5 {strides = array<i32>} : memref<184x128xf32, #tpu.memory_space<vmem>>, vector<184x128xf32>,
    %c0_7 = arith.constant 0 : index
    %c0_8 = arith.constant 0 : index
    %7 = vector.load %arg2[%c0_7, %c0_8] : memref<32x128xbf16, #tpu.memory_space<vmem>>, vector<32x128xbf16>
    %cst_9 = arith.constant 0.000000e+00 : f32
    %8 = vector.broadcast %cst_9 : f32 to vector<8x32xf32>
    %cst_10 = arith.constant 0.000000e+00 : f32
    %9 = vector.broadcast %cst_10 : f32 to vector<8x32xf32>
    %c0_11 = arith.constant 0 : index
    %c0_12 = arith.constant 0 : index
    %10 = vector.load %arg9[%c0_11, %c0_12] : memref<184x128xf32, #tpu.memory_space<vmem>>, vector<8x128xf32>
    %11 = arith.truncf %8 : vector<8x32xf32> to vector<8x32xbf16>
    %cst_13 = arith.constant dense<0.000000e+00> : vector<8x128xf32>
    %12 = tpu.matmul %11, %7, %cst_13 {dimension_numbers = #tpu.dot_dimension_numbers<[1], [0], [0], [1], [0, 0, 1, 1], [], []>} : vector<8x32xbf16>, vector<32x128xbf16>, vector<8x128xf32> -> vector<8x128xf32>
    %13 = arith.addf %10, %12 : vector<8x128xf32>
    %14 = arith.negf %13 : vector<8x128xf32>
    %15 = math.exp %14 : vector<8x128xf32>
    %cst_14 = arith.constant 1.000000e+00 : f32
    %16 = vector.broadcast %cst_14 : f32 to vector<8x128xf32>
    %17 = arith.addf %16, %15 : vector<8x128xf32>
    %18 = arith.divf %16, %17 : vector<8x128xf32>
    %19 = math.tanh %13 : vector<8x128xf32>
    %20 = vector.extract_strided_slice %18 {offsets = [0, 0], sizes = [8, 32], strides = [1, 1]} : vector<8x128xf32> to vector<8x32xf32>
    %21 = vector.extract_strided_slice %18 {offsets = [0, 32], sizes = [8, 32], strides = [1, 1]} : vector<8x128xf32> to vector<8x32xf32>
    %22 = vector.extract_strided_slice %19 {offsets = [0, 64], sizes = [8, 32], strides = [1, 1]} : vector<8x128xf32> to vector<8x32xf32>
    %23 = vector.extract_strided_slice %18 {offsets = [0, 96], sizes = [8, 32], strides = [1, 1]} : vector<8x128xf32> to vector<8x32xf32>
    %24 = arith.mulf %21, %9 : vector<8x32xf32>
    %25 = arith.mulf %20, %22 : vector<8x32xf32>
    %26 = arith.addf %24, %25 : vector<8x32xf32>
    %27 = math.tanh %26 : vector<8x32xf32>
    %28 = arith.mulf %23, %27 : vector<8x32xf32>
    %cst_15 = arith.constant 0.000000e+00 : f32
    %29 = vector.broadcast %cst_15 : f32 to vector<8x32xf32>
    %30 = arith.maximumf %28, %29 : vector<8x32xf32>
    %c0_16 = arith.constant 0 : index
    %c0_17 = arith.constant 0 : index
    %31 = vector.load %arg10[%c0_16, %c0_17] : memref<184x32xf32, #tpu.memory_space<vmem>>, vector<8x32xf32>
    tpu.vector_store %arg10[%c0_16, %c0_17], %30 {strides = array<i32>} : memref<184x32xf32, #tpu.memory_space<vmem>>, vector<8x32xf32>,
    %c8 = arith.constant 8 : index
    %c0_18 = arith.constant 0 : index
    %32 = vector.load %arg9[%c8, %c0_18] : memref<184x128xf32, #tpu.memory_space<vmem>>, vector<8x128xf32>
    %33 = arith.truncf %28 : vector<8x32xf32> to vector<8x32xbf16>
    %cst_19 = arith.constant dense<0.000000e+00> : vector<8x128xf32>
    %34 = tpu.matmul %33, %7, %cst_19 {dimension_numbers = #tpu.dot_dimension_numbers<[1], [0], [0], [1], [0, 0, 1, 1], [], []>} : vector<8x32xbf16>, vector<32x128xbf16>, vector<8x128xf32> -> vector<8x128xf32>
    %35 = arith.addf %32, %34 : vector<8x128xf32>
    %36 = arith.negf %35 : vector<8x128xf32>
    %37 = math.exp %36 : vector<8x128xf32>
    %cst_20 = arith.constant 1.000000e+00 : f32
    %38 = vector.broadcast %cst_20 : f32 to vector<8x128xf32>
    %39 = arith.addf %38, %37 : vector<8x128xf32>
    %40 = arith.divf %38, %39 : vector<8x128xf32>
    %41 = math.tanh %35 : vector<8x128xf32>
    %42 = vector.extract_strided_slice %40 {offsets = [0, 0], sizes = [8, 32], strides = [1, 1]} : vector<8x128xf32> to vector<8x32xf32>
    %43 = vector.extract_strided_slice %40 {offsets = [0, 32], sizes = [8, 32], strides = [1, 1]} : vector<8x128xf32> to vector<8x32xf32>
    %44 = vector.extract_strided_slice %41 {offsets = [0, 64], sizes = [8, 32], strides = [1, 1]} : vector<8x128xf32> to vector<8x32xf32>
    %45 = vector.extract_strided_slice %40 {offsets = [0, 96], sizes = [8, 32], strides = [1, 1]} : vector<8x128xf32> to vector<8x32xf32>
    %46 = arith.mulf %43, %26 : vector<8x32xf32>
    %47 = arith.mulf %42, %44 : vector<8x32xf32>
    %48 = arith.addf %46, %47 : vector<8x32xf32>
    %49 = math.tanh %48 : vector<8x32xf32>
    %50 = arith.mulf %45, %49 : vector<8x32xf32>
    %cst_21 = arith.constant 0.000000e+00 : f32
    %51 = vector.broadcast %cst_21 : f32 to vector<8x32xf32>
    %52 = arith.maximumf %50, %51 : vector<8x32xf32>
    %c8_22 = arith.constant 8 : index
    %c0_23 = arith.constant 0 : index
    %53 = vector.load %arg10[%c8_22, %c0_23] : memref<184x32xf32, #tpu.memory_space<vmem>>, vector<8x32xf32>
    tpu.vector_store %arg10[%c8_22, %c0_23], %52 {strides = array<i32>} : memref<184x32xf32, #tpu.memory_space<vmem>>, vector<8x32xf32>,
    %c16 = arith.constant 16 : index
    %c0_24 = arith.constant 0 : index
    %54 = vector.load %arg9[%c16, %c0_24] : memref<184x128xf32, #tpu.memory_space<vmem>>, vector<8x128xf32>
    %55 = arith.truncf %50 : vector<8x32xf32> to vector<8x32xbf16>
    %cst_25 = arith.constant dense<0.000000e+00> : vector<8x128xf32>
    %56 = tpu.matmul %55, %7, %cst_25 {dimension_numbers = #tpu.dot_dimension_numbers<[1], [0], [0], [1], [0, 0, 1, 1], [], []>} : vector<8x32xbf16>, vector<32x128xbf16>, vector<8x128xf32> -> vector<8x128xf32>
    %57 = arith.addf %54, %56 : vector<8x128xf32>
    %58 = arith.negf %57 : vector<8x128xf32>
    %59 = math.exp %58 : vector<8x128xf32>
    %cst_26 = arith.constant 1.000000e+00 : f32
    %60 = vector.broadcast %cst_26 : f32 to vector<8x128xf32>
    %61 = arith.addf %60, %59 : vector<8x128xf32>
    %62 = arith.divf %60, %61 : vector<8x128xf32>
    %63 = math.tanh %57 : vector<8x128xf32>
    %64 = vector.extract_strided_slice %62 {offsets = [0, 0], sizes = [8, 32], strides = [1, 1]} : vector<8x128xf32> to vector<8x32xf32>
    %65 = vector.extract_strided_slice %62 {offsets = [0, 32], sizes = [8, 32], strides = [1, 1]} : vector<8x128xf32> to vector<8x32xf32>
    %66 = vector.extract_strided_slice %63 {offsets = [0, 64], sizes = [8, 32], strides = [1, 1]} : vector<8x128xf32> to vector<8x32xf32>
    %67 = vector.extract_strided_slice %62 {offsets = [0, 96], sizes = [8, 32], strides = [1, 1]} : vector<8x128xf32> to vector<8x32xf32>
    %68 = arith.mulf %65, %48 : vector<8x32xf32>
    %69 = arith.mulf %64, %66 : vector<8x32xf32>
    %70 = arith.addf %68, %69 : vector<8x32xf32>
    %71 = math.tanh %70 : vector<8x32xf32>
    %72 = arith.mulf %67, %71 : vector<8x32xf32>
    %cst_27 = arith.constant 0.000000e+00 : f32
    %73 = vector.broadcast %cst_27 : f32 to vector<8x32xf32>
    %74 = arith.maximumf %72, %73 : vector<8x32xf32>
    %c16_28 = arith.constant 16 : index
    %c0_29 = arith.constant 0 : index
    %75 = vector.load %arg10[%c16_28, %c0_29] : memref<184x32xf32, #tpu.memory_space<vmem>>, vector<8x32xf32>
    tpu.vector_store %arg10[%c16_28, %c0_29], %74 {strides = array<i32>} : memref<184x32xf32, #tpu.memory_space<vmem>>, vector<8x32xf32>,
    %c24 = arith.constant 24 : index
    %c0_30 = arith.constant 0 : index
    %76 = vector.load %arg9[%c24, %c0_30] : memref<184x128xf32, #tpu.memory_space<vmem>>, vector<8x128xf32>
    %77 = arith.truncf %72 : vector<8x32xf32> to vector<8x32xbf16>
    %cst_31 = arith.constant dense<0.000000e+00> : vector<8x128xf32>
    %78 = tpu.matmul %77, %7, %cst_31 {dimension_numbers = #tpu.dot_dimension_numbers<[1], [0], [0], [1], [0, 0, 1, 1], [], []>} : vector<8x32xbf16>, vector<32x128xbf16>, vector<8x128xf32> -> vector<8x128xf32>
    %79 = arith.addf %76, %78 : vector<8x128xf32>
    %80 = arith.negf %79 : vector<8x128xf32>
    %81 = math.exp %80 : vector<8x128xf32>
    %cst_32 = arith.constant 1.000000e+00 : f32
    %82 = vector.broadcast %cst_32 : f32 to vector<8x128xf32>
    %83 = arith.addf %82, %81 : vector<8x128xf32>
    %84 = arith.divf %82, %83 : vector<8x128xf32>
    %85 = math.tanh %79 : vector<8x128xf32>
    %86 = vector.extract_strided_slice %84 {offsets = [0, 0], sizes = [8, 32], strides = [1, 1]} : vector<8x128xf32> to vector<8x32xf32>
    %87 = vector.extract_strided_slice %84 {offsets = [0, 32], sizes = [8, 32], strides = [1, 1]} : vector<8x128xf32> to vector<8x32xf32>
    %88 = vector.extract_strided_slice %85 {offsets = [0, 64], sizes = [8, 32], strides = [1, 1]} : vector<8x128xf32> to vector<8x32xf32>
    %89 = vector.extract_strided_slice %84 {offsets = [0, 96], sizes = [8, 32], strides = [1, 1]} : vector<8x128xf32> to vector<8x32xf32>
    %90 = arith.mulf %87, %70 : vector<8x32xf32>
    %91 = arith.mulf %86, %88 : vector<8x32xf32>
    %92 = arith.addf %90, %91 : vector<8x32xf32>
    %93 = math.tanh %92 : vector<8x32xf32>
    %94 = arith.mulf %89, %93 : vector<8x32xf32>
    %cst_33 = arith.constant 0.000000e+00 : f32
    %95 = vector.broadcast %cst_33 : f32 to vector<8x32xf32>
    %96 = arith.maximumf %94, %95 : vector<8x32xf32>
    %c24_34 = arith.constant 24 : index
    %c0_35 = arith.constant 0 : index
    %97 = vector.load %arg10[%c24_34, %c0_35] : memref<184x32xf32, #tpu.memory_space<vmem>>, vector<8x32xf32>
    tpu.vector_store %arg10[%c24_34, %c0_35], %96 {strides = array<i32>} : memref<184x32xf32, #tpu.memory_space<vmem>>, vector<8x32xf32>,
    %c32 = arith.constant 32 : index
    %c0_36 = arith.constant 0 : index
    %98 = vector.load %arg9[%c32, %c0_36] : memref<184x128xf32, #tpu.memory_space<vmem>>, vector<8x128xf32>
    %99 = arith.truncf %94 : vector<8x32xf32> to vector<8x32xbf16>
    %cst_37 = arith.constant dense<0.000000e+00> : vector<8x128xf32>
    %100 = tpu.matmul %99, %7, %cst_37 {dimension_numbers = #tpu.dot_dimension_numbers<[1], [0], [0], [1], [0, 0, 1, 1], [], []>} : vector<8x32xbf16>, vector<32x128xbf16>, vector<8x128xf32> -> vector<8x128xf32>
    %101 = arith.addf %98, %100 : vector<8x128xf32>
    %102 = arith.negf %101 : vector<8x128xf32>
    %103 = math.exp %102 : vector<8x128xf32>
    %cst_38 = arith.constant 1.000000e+00 : f32
    %104 = vector.broadcast %cst_38 : f32 to vector<8x128xf32>
    %105 = arith.addf %104, %103 : vector<8x128xf32>
    %106 = arith.divf %104, %105 : vector<8x128xf32>
    %107 = math.tanh %101 : vector<8x128xf32>
    %108 = vector.extract_strided_slice %106 {offsets = [0, 0], sizes = [8, 32], strides = [1, 1]} : vector<8x128xf32> to vector<8x32xf32>
    %109 = vector.extract_strided_slice %106 {offsets = [0, 32], sizes = [8, 32], strides = [1, 1]} : vector<8x128xf32> to vector<8x32xf32>
    %110 = vector.extract_strided_slice %107 {offsets = [0, 64], sizes = [8, 32], strides = [1, 1]} : vector<8x128xf32> to vector<8x32xf32>
    %111 = vector.extract_strided_slice %106 {offsets = [0, 96], sizes = [8, 32], strides = [1, 1]} : vector<8x128xf32> to vector<8x32xf32>
    %112 = arith.mulf %109, %92 : vector<8x32xf32>
    %113 = arith.mulf %108, %110 : vector<8x32xf32>
    %114 = arith.addf %112, %113 : vector<8x32xf32>
    %115 = math.tanh %114 : vector<8x32xf32>
    %116 = arith.mulf %111, %115 : vector<8x32xf32>
    %cst_39 = arith.constant 0.000000e+00 : f32
    %117 = vector.broadcast %cst_39 : f32 to vector<8x32xf32>
    %118 = arith.maximumf %116, %117 : vector<8x32xf32>
    %c32_40 = arith.constant 32 : index
    %c0_41 = arith.constant 0 : index
    %119 = vector.load %arg10[%c32_40, %c0_41] : memref<184x32xf32, #tpu.memory_space<vmem>>, vector<8x32xf32>
    tpu.vector_store %arg10[%c32_40, %c0_41], %118 {strides = array<i32>} : memref<184x32xf32, #tpu.memory_space<vmem>>, vector<8x32xf32>,
    %c40 = arith.constant 40 : index
    %c0_42 = arith.constant 0 : index
    %120 = vector.load %arg9[%c40, %c0_42] : memref<184x128xf32, #tpu.memory_space<vmem>>, vector<8x128xf32>
    %121 = arith.truncf %116 : vector<8x32xf32> to vector<8x32xbf16>
    %cst_43 = arith.constant dense<0.000000e+00> : vector<8x128xf32>
    %122 = tpu.matmul %121, %7, %cst_43 {dimension_numbers = #tpu.dot_dimension_numbers<[1], [0], [0], [1], [0, 0, 1, 1], [], []>} : vector<8x32xbf16>, vector<32x128xbf16>, vector<8x128xf32> -> vector<8x128xf32>
    %123 = arith.addf %120, %122 : vector<8x128xf32>
    %124 = arith.negf %123 : vector<8x128xf32>
    %125 = math.exp %124 : vector<8x128xf32>
    %cst_44 = arith.constant 1.000000e+00 : f32
    %126 = vector.broadcast %cst_44 : f32 to vector<8x128xf32>
    %127 = arith.addf %126, %125 : vector<8x128xf32>
    %128 = arith.divf %126, %127 : vector<8x128xf32>
    %129 = math.tanh %123 : vector<8x128xf32>
    %130 = vector.extract_strided_slice %128 {offsets = [0, 0], sizes = [8, 32], strides = [1, 1]} : vector<8x128xf32> to vector<8x32xf32>
    %131 = vector.extract_strided_slice %128 {offsets = [0, 32], sizes = [8, 32], strides = [1, 1]} : vector<8x128xf32> to vector<8x32xf32>
    %132 = vector.extract_strided_slice %129 {offsets = [0, 64], sizes = [8, 32], strides = [1, 1]} : vector<8x128xf32> to vector<8x32xf32>
    %133 = vector.extract_strided_slice %128 {offsets = [0, 96], sizes = [8, 32], strides = [1, 1]} : vector<8x128xf32> to vector<8x32xf32>
    %134 = arith.mulf %131, %114 : vector<8x32xf32>
    %135 = arith.mulf %130, %132 : vector<8x32xf32>
    %136 = arith.addf %134, %135 : vector<8x32xf32>
    %137 = math.tanh %136 : vector<8x32xf32>
    %138 = arith.mulf %133, %137 : vector<8x32xf32>
    %cst_45 = arith.constant 0.000000e+00 : f32
    %139 = vector.broadcast %cst_45 : f32 to vector<8x32xf32>
    %140 = arith.maximumf %138, %139 : vector<8x32xf32>
    %c40_46 = arith.constant 40 : index
    %c0_47 = arith.constant 0 : index
    %141 = vector.load %arg10[%c40_46, %c0_47] : memref<184x32xf32, #tpu.memory_space<vmem>>, vector<8x32xf32>
    tpu.vector_store %arg10[%c40_46, %c0_47], %140 {strides = array<i32>} : memref<184x32xf32, #tpu.memory_space<vmem>>, vector<8x32xf32>,
    %c48 = arith.constant 48 : index
    %c0_48 = arith.constant 0 : index
    %142 = vector.load %arg9[%c48, %c0_48] : memref<184x128xf32, #tpu.memory_space<vmem>>, vector<8x128xf32>
    %143 = arith.truncf %138 : vector<8x32xf32> to vector<8x32xbf16>
    %cst_49 = arith.constant dense<0.000000e+00> : vector<8x128xf32>
    %144 = tpu.matmul %143, %7, %cst_49 {dimension_numbers = #tpu.dot_dimension_numbers<[1], [0], [0], [1], [0, 0, 1, 1], [], []>} : vector<8x32xbf16>, vector<32x128xbf16>, vector<8x128xf32> -> vector<8x128xf32>
    %145 = arith.addf %142, %144 : vector<8x128xf32>
    %146 = arith.negf %145 : vector<8x128xf32>
    %147 = math.exp %146 : vector<8x128xf32>
    %cst_50 = arith.constant 1.000000e+00 : f32
    %148 = vector.broadcast %cst_50 : f32 to vector<8x128xf32>
    %149 = arith.addf %148, %147 : vector<8x128xf32>
    %150 = arith.divf %148, %149 : vector<8x128xf32>
    %151 = math.tanh %145 : vector<8x128xf32>
    %152 = vector.extract_strided_slice %150 {offsets = [0, 0], sizes = [8, 32], strides = [1, 1]} : vector<8x128xf32> to vector<8x32xf32>
    %153 = vector.extract_strided_slice %150 {offsets = [0, 32], sizes = [8, 32], strides = [1, 1]} : vector<8x128xf32> to vector<8x32xf32>
    %154 = vector.extract_strided_slice %151 {offsets = [0, 64], sizes = [8, 32], strides = [1, 1]} : vector<8x128xf32> to vector<8x32xf32>
    %155 = vector.extract_strided_slice %150 {offsets = [0, 96], sizes = [8, 32], strides = [1, 1]} : vector<8x128xf32> to vector<8x32xf32>
    %156 = arith.mulf %153, %136 : vector<8x32xf32>
    %157 = arith.mulf %152, %154 : vector<8x32xf32>
    %158 = arith.addf %156, %157 : vector<8x32xf32>
    %159 = math.tanh %158 : vector<8x32xf32>
    %160 = arith.mulf %155, %159 : vector<8x32xf32>
    %cst_51 = arith.constant 0.000000e+00 : f32
    %161 = vector.broadcast %cst_51 : f32 to vector<8x32xf32>
    %162 = arith.maximumf %160, %161 : vector<8x32xf32>
    %c48_52 = arith.constant 48 : index
    %c0_53 = arith.constant 0 : index
    %163 = vector.load %arg10[%c48_52, %c0_53] : memref<184x32xf32, #tpu.memory_space<vmem>>, vector<8x32xf32>
    tpu.vector_store %arg10[%c48_52, %c0_53], %162 {strides = array<i32>} : memref<184x32xf32, #tpu.memory_space<vmem>>, vector<8x32xf32>,
    %c56 = arith.constant 56 : index
    %c0_54 = arith.constant 0 : index
    %164 = vector.load %arg9[%c56, %c0_54] : memref<184x128xf32, #tpu.memory_space<vmem>>, vector<8x128xf32>
    %165 = arith.truncf %160 : vector<8x32xf32> to vector<8x32xbf16>
    %cst_55 = arith.constant dense<0.000000e+00> : vector<8x128xf32>
    %166 = tpu.matmul %165, %7, %cst_55 {dimension_numbers = #tpu.dot_dimension_numbers<[1], [0], [0], [1], [0, 0, 1, 1], [], []>} : vector<8x32xbf16>, vector<32x128xbf16>, vector<8x128xf32> -> vector<8x128xf32>
    %167 = arith.addf %164, %166 : vector<8x128xf32>
    %168 = arith.negf %167 : vector<8x128xf32>
    %169 = math.exp %168 : vector<8x128xf32>
    %cst_56 = arith.constant 1.000000e+00 : f32
    %170 = vector.broadcast %cst_56 : f32 to vector<8x128xf32>
    %171 = arith.addf %170, %169 : vector<8x128xf32>
    %172 = arith.divf %170, %171 : vector<8x128xf32>
    %173 = math.tanh %167 : vector<8x128xf32>
    %174 = vector.extract_strided_slice %172 {offsets = [0, 0], sizes = [8, 32], strides = [1, 1]} : vector<8x128xf32> to vector<8x32xf32>
    %175 = vector.extract_strided_slice %172 {offsets = [0, 32], sizes = [8, 32], strides = [1, 1]} : vector<8x128xf32> to vector<8x32xf32>
    %176 = vector.extract_strided_slice %173 {offsets = [0, 64], sizes = [8, 32], strides = [1, 1]} : vector<8x128xf32> to vector<8x32xf32>
    %177 = vector.extract_strided_slice %172 {offsets = [0, 96], sizes = [8, 32], strides = [1, 1]} : vector<8x128xf32> to vector<8x32xf32>
    %178 = arith.mulf %175, %158 : vector<8x32xf32>
    %179 = arith.mulf %174, %176 : vector<8x32xf32>
    %180 = arith.addf %178, %179 : vector<8x32xf32>
    %181 = math.tanh %180 : vector<8x32xf32>
    %182 = arith.mulf %177, %181 : vector<8x32xf32>
    %cst_57 = arith.constant 0.000000e+00 : f32
    %183 = vector.broadcast %cst_57 : f32 to vector<8x32xf32>
    %184 = arith.maximumf %182, %183 : vector<8x32xf32>
    %c56_58 = arith.constant 56 : index
    %c0_59 = arith.constant 0 : index
    %185 = vector.load %arg10[%c56_58, %c0_59] : memref<184x32xf32, #tpu.memory_space<vmem>>, vector<8x32xf32>
    tpu.vector_store %arg10[%c56_58, %c0_59], %184 {strides = array<i32>} : memref<184x32xf32, #tpu.memory_space<vmem>>, vector<8x32xf32>,
    %c64 = arith.constant 64 : index
    %c0_60 = arith.constant 0 : index
    %186 = vector.load %arg9[%c64, %c0_60] : memref<184x128xf32, #tpu.memory_space<vmem>>, vector<8x128xf32>
    %187 = arith.truncf %182 : vector<8x32xf32> to vector<8x32xbf16>
    %cst_61 = arith.constant dense<0.000000e+00> : vector<8x128xf32>
    %188 = tpu.matmul %187, %7, %cst_61 {dimension_numbers = #tpu.dot_dimension_numbers<[1], [0], [0], [1], [0, 0, 1, 1], [], []>} : vector<8x32xbf16>, vector<32x128xbf16>, vector<8x128xf32> -> vector<8x128xf32>
    %189 = arith.addf %186, %188 : vector<8x128xf32>
    %190 = arith.negf %189 : vector<8x128xf32>
    %191 = math.exp %190 : vector<8x128xf32>
    %cst_62 = arith.constant 1.000000e+00 : f32
    %192 = vector.broadcast %cst_62 : f32 to vector<8x128xf32>
    %193 = arith.addf %192, %191 : vector<8x128xf32>
    %194 = arith.divf %192, %193 : vector<8x128xf32>
    %195 = math.tanh %189 : vector<8x128xf32>
    %196 = vector.extract_strided_slice %194 {offsets = [0, 0], sizes = [8, 32], strides = [1, 1]} : vector<8x128xf32> to vector<8x32xf32>
    %197 = vector.extract_strided_slice %194 {offsets = [0, 32], sizes = [8, 32], strides = [1, 1]} : vector<8x128xf32> to vector<8x32xf32>
    %198 = vector.extract_strided_slice %195 {offsets = [0, 64], sizes = [8, 32], strides = [1, 1]} : vector<8x128xf32> to vector<8x32xf32>
    %199 = vector.extract_strided_slice %194 {offsets = [0, 96], sizes = [8, 32], strides = [1, 1]} : vector<8x128xf32> to vector<8x32xf32>
    %200 = arith.mulf %197, %180 : vector<8x32xf32>
    %201 = arith.mulf %196, %198 : vector<8x32xf32>
    %202 = arith.addf %200, %201 : vector<8x32xf32>
    %203 = math.tanh %202 : vector<8x32xf32>
    %204 = arith.mulf %199, %203 : vector<8x32xf32>
    %cst_63 = arith.constant 0.000000e+00 : f32
    %205 = vector.broadcast %cst_63 : f32 to vector<8x32xf32>
    %206 = arith.maximumf %204, %205 : vector<8x32xf32>
    %c64_64 = arith.constant 64 : index
    %c0_65 = arith.constant 0 : index
    %207 = vector.load %arg10[%c64_64, %c0_65] : memref<184x32xf32, #tpu.memory_space<vmem>>, vector<8x32xf32>
    tpu.vector_store %arg10[%c64_64, %c0_65], %206 {strides = array<i32>} : memref<184x32xf32, #tpu.memory_space<vmem>>, vector<8x32xf32>,
    %c72 = arith.constant 72 : index
    %c0_66 = arith.constant 0 : index
    %208 = vector.load %arg9[%c72, %c0_66] : memref<184x128xf32, #tpu.memory_space<vmem>>, vector<8x128xf32>
    %209 = arith.truncf %204 : vector<8x32xf32> to vector<8x32xbf16>
    %cst_67 = arith.constant dense<0.000000e+00> : vector<8x128xf32>
    %210 = tpu.matmul %209, %7, %cst_67 {dimension_numbers = #tpu.dot_dimension_numbers<[1], [0], [0], [1], [0, 0, 1, 1], [], []>} : vector<8x32xbf16>, vector<32x128xbf16>, vector<8x128xf32> -> vector<8x128xf32>
    %211 = arith.addf %208, %210 : vector<8x128xf32>
    %212 = arith.negf %211 : vector<8x128xf32>
    %213 = math.exp %212 : vector<8x128xf32>
    %cst_68 = arith.constant 1.000000e+00 : f32
    %214 = vector.broadcast %cst_68 : f32 to vector<8x128xf32>
    %215 = arith.addf %214, %213 : vector<8x128xf32>
    %216 = arith.divf %214, %215 : vector<8x128xf32>
    %217 = math.tanh %211 : vector<8x128xf32>
    %218 = vector.extract_strided_slice %216 {offsets = [0, 0], sizes = [8, 32], strides = [1, 1]} : vector<8x128xf32> to vector<8x32xf32>
    %219 = vector.extract_strided_slice %216 {offsets = [0, 32], sizes = [8, 32], strides = [1, 1]} : vector<8x128xf32> to vector<8x32xf32>
    %220 = vector.extract_strided_slice %217 {offsets = [0, 64], sizes = [8, 32], strides = [1, 1]} : vector<8x128xf32> to vector<8x32xf32>
    %221 = vector.extract_strided_slice %216 {offsets = [0, 96], sizes = [8, 32], strides = [1, 1]} : vector<8x128xf32> to vector<8x32xf32>
    %222 = arith.mulf %219, %202 : vector<8x32xf32>
    %223 = arith.mulf %218, %220 : vector<8x32xf32>
    %224 = arith.addf %222, %223 : vector<8x32xf32>
    %225 = math.tanh %224 : vector<8x32xf32>
    %226 = arith.mulf %221, %225 : vector<8x32xf32>
    %cst_69 = arith.constant 0.000000e+00 : f32
    %227 = vector.broadcast %cst_69 : f32 to vector<8x32xf32>
    %228 = arith.maximumf %226, %227 : vector<8x32xf32>
    %c72_70 = arith.constant 72 : index
    %c0_71 = arith.constant 0 : index
    %229 = vector.load %arg10[%c72_70, %c0_71] : memref<184x32xf32, #tpu.memory_space<vmem>>, vector<8x32xf32>
    tpu.vector_store %arg10[%c72_70, %c0_71], %228 {strides = array<i32>} : memref<184x32xf32, #tpu.memory_space<vmem>>, vector<8x32xf32>,
    %c80 = arith.constant 80 : index
    %c0_72 = arith.constant 0 : index
    %230 = vector.load %arg9[%c80, %c0_72] : memref<184x128xf32, #tpu.memory_space<vmem>>, vector<8x128xf32>
    %231 = arith.truncf %226 : vector<8x32xf32> to vector<8x32xbf16>
    %cst_73 = arith.constant dense<0.000000e+00> : vector<8x128xf32>
    %232 = tpu.matmul %231, %7, %cst_73 {dimension_numbers = #tpu.dot_dimension_numbers<[1], [0], [0], [1], [0, 0, 1, 1], [], []>} : vector<8x32xbf16>, vector<32x128xbf16>, vector<8x128xf32> -> vector<8x128xf32>
    %233 = arith.addf %230, %232 : vector<8x128xf32>
    %234 = arith.negf %233 : vector<8x128xf32>
    %235 = math.exp %234 : vector<8x128xf32>
    %cst_74 = arith.constant 1.000000e+00 : f32
    %236 = vector.broadcast %cst_74 : f32 to vector<8x128xf32>
    %237 = arith.addf %236, %235 : vector<8x128xf32>
    %238 = arith.divf %236, %237 : vector<8x128xf32>
    %239 = math.tanh %233 : vector<8x128xf32>
    %240 = vector.extract_strided_slice %238 {offsets = [0, 0], sizes = [8, 32], strides = [1, 1]} : vector<8x128xf32> to vector<8x32xf32>
    %241 = vector.extract_strided_slice %238 {offsets = [0, 32], sizes = [8, 32], strides = [1, 1]} : vector<8x128xf32> to vector<8x32xf32>
    %242 = vector.extract_strided_slice %239 {offsets = [0, 64], sizes = [8, 32], strides = [1, 1]} : vector<8x128xf32> to vector<8x32xf32>
    %243 = vector.extract_strided_slice %238 {offsets = [0, 96], sizes = [8, 32], strides = [1, 1]} : vector<8x128xf32> to vector<8x32xf32>
    %244 = arith.mulf %241, %224 : vector<8x32xf32>
    %245 = arith.mulf %240, %242 : vector<8x32xf32>
    %246 = arith.addf %244, %245 : vector<8x32xf32>
    %247 = math.tanh %246 : vector<8x32xf32>
    %248 = arith.mulf %243, %247 : vector<8x32xf32>
    %cst_75 = arith.constant 0.000000e+00 : f32
    %249 = vector.broadcast %cst_75 : f32 to vector<8x32xf32>
    %250 = arith.maximumf %248, %249 : vector<8x32xf32>
    %c80_76 = arith.constant 80 : index
    %c0_77 = arith.constant 0 : index
    %251 = vector.load %arg10[%c80_76, %c0_77] : memref<184x32xf32, #tpu.memory_space<vmem>>, vector<8x32xf32>
    tpu.vector_store %arg10[%c80_76, %c0_77], %250 {strides = array<i32>} : memref<184x32xf32, #tpu.memory_space<vmem>>, vector<8x32xf32>,
    %c88 = arith.constant 88 : index
    %c0_78 = arith.constant 0 : index
    %252 = vector.load %arg9[%c88, %c0_78] : memref<184x128xf32, #tpu.memory_space<vmem>>, vector<8x128xf32>
    %253 = arith.truncf %248 : vector<8x32xf32> to vector<8x32xbf16>
    %cst_79 = arith.constant dense<0.000000e+00> : vector<8x128xf32>
    %254 = tpu.matmul %253, %7, %cst_79 {dimension_numbers = #tpu.dot_dimension_numbers<[1], [0], [0], [1], [0, 0, 1, 1], [], []>} : vector<8x32xbf16>, vector<32x128xbf16>, vector<8x128xf32> -> vector<8x128xf32>
    %255 = arith.addf %252, %254 : vector<8x128xf32>
    %256 = arith.negf %255 : vector<8x128xf32>
    %257 = math.exp %256 : vector<8x128xf32>
    %cst_80 = arith.constant 1.000000e+00 : f32
    %258 = vector.broadcast %cst_80 : f32 to vector<8x128xf32>
    %259 = arith.addf %258, %257 : vector<8x128xf32>
    %260 = arith.divf %258, %259 : vector<8x128xf32>
    %261 = math.tanh %255 : vector<8x128xf32>
    %262 = vector.extract_strided_slice %260 {offsets = [0, 0], sizes = [8, 32], strides = [1, 1]} : vector<8x128xf32> to vector<8x32xf32>
    %263 = vector.extract_strided_slice %260 {offsets = [0, 32], sizes = [8, 32], strides = [1, 1]} : vector<8x128xf32> to vector<8x32xf32>
    %264 = vector.extract_strided_slice %261 {offsets = [0, 64], sizes = [8, 32], strides = [1, 1]} : vector<8x128xf32> to vector<8x32xf32>
    %265 = vector.extract_strided_slice %260 {offsets = [0, 96], sizes = [8, 32], strides = [1, 1]} : vector<8x128xf32> to vector<8x32xf32>
    %266 = arith.mulf %263, %246 : vector<8x32xf32>
    %267 = arith.mulf %262, %264 : vector<8x32xf32>
    %268 = arith.addf %266, %267 : vector<8x32xf32>
    %269 = math.tanh %268 : vector<8x32xf32>
    %270 = arith.mulf %265, %269 : vector<8x32xf32>
    %cst_81 = arith.constant 0.000000e+00 : f32
    %271 = vector.broadcast %cst_81 : f32 to vector<8x32xf32>
    %272 = arith.maximumf %270, %271 : vector<8x32xf32>
    %c88_82 = arith.constant 88 : index
    %c0_83 = arith.constant 0 : index
    %273 = vector.load %arg10[%c88_82, %c0_83] : memref<184x32xf32, #tpu.memory_space<vmem>>, vector<8x32xf32>
    tpu.vector_store %arg10[%c88_82, %c0_83], %272 {strides = array<i32>} : memref<184x32xf32, #tpu.memory_space<vmem>>, vector<8x32xf32>,
    %c96 = arith.constant 96 : index
    %c0_84 = arith.constant 0 : index
    %274 = vector.load %arg9[%c96, %c0_84] : memref<184x128xf32, #tpu.memory_space<vmem>>, vector<8x128xf32>
    %275 = arith.truncf %270 : vector<8x32xf32> to vector<8x32xbf16>
    %cst_85 = arith.constant dense<0.000000e+00> : vector<8x128xf32>
    %276 = tpu.matmul %275, %7, %cst_85 {dimension_numbers = #tpu.dot_dimension_numbers<[1], [0], [0], [1], [0, 0, 1, 1], [], []>} : vector<8x32xbf16>, vector<32x128xbf16>, vector<8x128xf32> -> vector<8x128xf32>
    %277 = arith.addf %274, %276 : vector<8x128xf32>
    %278 = arith.negf %277 : vector<8x128xf32>
    %279 = math.exp %278 : vector<8x128xf32>
    %cst_86 = arith.constant 1.000000e+00 : f32
    %280 = vector.broadcast %cst_86 : f32 to vector<8x128xf32>
    %281 = arith.addf %280, %279 : vector<8x128xf32>
    %282 = arith.divf %280, %281 : vector<8x128xf32>
    %283 = math.tanh %277 : vector<8x128xf32>
    %284 = vector.extract_strided_slice %282 {offsets = [0, 0], sizes = [8, 32], strides = [1, 1]} : vector<8x128xf32> to vector<8x32xf32>
    %285 = vector.extract_strided_slice %282 {offsets = [0, 32], sizes = [8, 32], strides = [1, 1]} : vector<8x128xf32> to vector<8x32xf32>
    %286 = vector.extract_strided_slice %283 {offsets = [0, 64], sizes = [8, 32], strides = [1, 1]} : vector<8x128xf32> to vector<8x32xf32>
    %287 = vector.extract_strided_slice %282 {offsets = [0, 96], sizes = [8, 32], strides = [1, 1]} : vector<8x128xf32> to vector<8x32xf32>
    %288 = arith.mulf %285, %268 : vector<8x32xf32>
    %289 = arith.mulf %284, %286 : vector<8x32xf32>
    %290 = arith.addf %288, %289 : vector<8x32xf32>
    %291 = math.tanh %290 : vector<8x32xf32>
    %292 = arith.mulf %287, %291 : vector<8x32xf32>
    %cst_87 = arith.constant 0.000000e+00 : f32
    %293 = vector.broadcast %cst_87 : f32 to vector<8x32xf32>
    %294 = arith.maximumf %292, %293 : vector<8x32xf32>
    %c96_88 = arith.constant 96 : index
    %c0_89 = arith.constant 0 : index
    %295 = vector.load %arg10[%c96_88, %c0_89] : memref<184x32xf32, #tpu.memory_space<vmem>>, vector<8x32xf32>
    tpu.vector_store %arg10[%c96_88, %c0_89], %294 {strides = array<i32>} : memref<184x32xf32, #tpu.memory_space<vmem>>, vector<8x32xf32>,
    %c104 = arith.constant 104 : index
    %c0_90 = arith.constant 0 : index
    %296 = vector.load %arg9[%c104, %c0_90] : memref<184x128xf32, #tpu.memory_space<vmem>>, vector<8x128xf32>
    %297 = arith.truncf %292 : vector<8x32xf32> to vector<8x32xbf16>
    %cst_91 = arith.constant dense<0.000000e+00> : vector<8x128xf32>
    %298 = tpu.matmul %297, %7, %cst_91 {dimension_numbers = #tpu.dot_dimension_numbers<[1], [0], [0], [1], [0, 0, 1, 1], [], []>} : vector<8x32xbf16>, vector<32x128xbf16>, vector<8x128xf32> -> vector<8x128xf32>
    %299 = arith.addf %296, %298 : vector<8x128xf32>
    %300 = arith.negf %299 : vector<8x128xf32>
    %301 = math.exp %300 : vector<8x128xf32>
    %cst_92 = arith.constant 1.000000e+00 : f32
    %302 = vector.broadcast %cst_92 : f32 to vector<8x128xf32>
    %303 = arith.addf %302, %301 : vector<8x128xf32>
    %304 = arith.divf %302, %303 : vector<8x128xf32>
    %305 = math.tanh %299 : vector<8x128xf32>
    %306 = vector.extract_strided_slice %304 {offsets = [0, 0], sizes = [8, 32], strides = [1, 1]} : vector<8x128xf32> to vector<8x32xf32>
    %307 = vector.extract_strided_slice %304 {offsets = [0, 32], sizes = [8, 32], strides = [1, 1]} : vector<8x128xf32> to vector<8x32xf32>
    %308 = vector.extract_strided_slice %305 {offsets = [0, 64], sizes = [8, 32], strides = [1, 1]} : vector<8x128xf32> to vector<8x32xf32>
    %309 = vector.extract_strided_slice %304 {offsets = [0, 96], sizes = [8, 32], strides = [1, 1]} : vector<8x128xf32> to vector<8x32xf32>
    %310 = arith.mulf %307, %290 : vector<8x32xf32>
    %311 = arith.mulf %306, %308 : vector<8x32xf32>
    %312 = arith.addf %310, %311 : vector<8x32xf32>
    %313 = math.tanh %312 : vector<8x32xf32>
    %314 = arith.mulf %309, %313 : vector<8x32xf32>
    %cst_93 = arith.constant 0.000000e+00 : f32
    %315 = vector.broadcast %cst_93 : f32 to vector<8x32xf32>
    %316 = arith.maximumf %314, %315 : vector<8x32xf32>
    %c104_94 = arith.constant 104 : index
    %c0_95 = arith.constant 0 : index
    %317 = vector.load %arg10[%c104_94, %c0_95] : memref<184x32xf32, #tpu.memory_space<vmem>>, vector<8x32xf32>
    tpu.vector_store %arg10[%c104_94, %c0_95], %316 {strides = array<i32>} : memref<184x32xf32, #tpu.memory_space<vmem>>, vector<8x32xf32>,
    %c112 = arith.constant 112 : index
    %c0_96 = arith.constant 0 : index
    %318 = vector.load %arg9[%c112, %c0_96] : memref<184x128xf32, #tpu.memory_space<vmem>>, vector<8x128xf32>
    %319 = arith.truncf %314 : vector<8x32xf32> to vector<8x32xbf16>
    %cst_97 = arith.constant dense<0.000000e+00> : vector<8x128xf32>
    %320 = tpu.matmul %319, %7, %cst_97 {dimension_numbers = #tpu.dot_dimension_numbers<[1], [0], [0], [1], [0, 0, 1, 1], [], []>} : vector<8x32xbf16>, vector<32x128xbf16>, vector<8x128xf32> -> vector<8x128xf32>
    %321 = arith.addf %318, %320 : vector<8x128xf32>
    %322 = arith.negf %321 : vector<8x128xf32>
    %323 = math.exp %322 : vector<8x128xf32>
    %cst_98 = arith.constant 1.000000e+00 : f32
    %324 = vector.broadcast %cst_98 : f32 to vector<8x128xf32>
    %325 = arith.addf %324, %323 : vector<8x128xf32>
    %326 = arith.divf %324, %325 : vector<8x128xf32>
    %327 = math.tanh %321 : vector<8x128xf32>
    %328 = vector.extract_strided_slice %326 {offsets = [0, 0], sizes = [8, 32], strides = [1, 1]} : vector<8x128xf32> to vector<8x32xf32>
    %329 = vector.extract_strided_slice %326 {offsets = [0, 32], sizes = [8, 32], strides = [1, 1]} : vector<8x128xf32> to vector<8x32xf32>
    %330 = vector.extract_strided_slice %327 {offsets = [0, 64], sizes = [8, 32], strides = [1, 1]} : vector<8x128xf32> to vector<8x32xf32>
    %331 = vector.extract_strided_slice %326 {offsets = [0, 96], sizes = [8, 32], strides = [1, 1]} : vector<8x128xf32> to vector<8x32xf32>
    %332 = arith.mulf %329, %312 : vector<8x32xf32>
    %333 = arith.mulf %328, %330 : vector<8x32xf32>
    %334 = arith.addf %332, %333 : vector<8x32xf32>
    %335 = math.tanh %334 : vector<8x32xf32>
    %336 = arith.mulf %331, %335 : vector<8x32xf32>
    %cst_99 = arith.constant 0.000000e+00 : f32
    %337 = vector.broadcast %cst_99 : f32 to vector<8x32xf32>
    %338 = arith.maximumf %336, %337 : vector<8x32xf32>
    %c112_100 = arith.constant 112 : index
    %c0_101 = arith.constant 0 : index
    %339 = vector.load %arg10[%c112_100, %c0_101] : memref<184x32xf32, #tpu.memory_space<vmem>>, vector<8x32xf32>
    tpu.vector_store %arg10[%c112_100, %c0_101], %338 {strides = array<i32>} : memref<184x32xf32, #tpu.memory_space<vmem>>, vector<8x32xf32>,
    %c120 = arith.constant 120 : index
    %c0_102 = arith.constant 0 : index
    %340 = vector.load %arg9[%c120, %c0_102] : memref<184x128xf32, #tpu.memory_space<vmem>>, vector<8x128xf32>
    %341 = arith.truncf %336 : vector<8x32xf32> to vector<8x32xbf16>
    %cst_103 = arith.constant dense<0.000000e+00> : vector<8x128xf32>
    %342 = tpu.matmul %341, %7, %cst_103 {dimension_numbers = #tpu.dot_dimension_numbers<[1], [0], [0], [1], [0, 0, 1, 1], [], []>} : vector<8x32xbf16>, vector<32x128xbf16>, vector<8x128xf32> -> vector<8x128xf32>
    %343 = arith.addf %340, %342 : vector<8x128xf32>
    %344 = arith.negf %343 : vector<8x128xf32>
    %345 = math.exp %344 : vector<8x128xf32>
    %cst_104 = arith.constant 1.000000e+00 : f32
    %346 = vector.broadcast %cst_104 : f32 to vector<8x128xf32>
    %347 = arith.addf %346, %345 : vector<8x128xf32>
    %348 = arith.divf %346, %347 : vector<8x128xf32>
    %349 = math.tanh %343 : vector<8x128xf32>
    %350 = vector.extract_strided_slice %348 {offsets = [0, 0], sizes = [8, 32], strides = [1, 1]} : vector<8x128xf32> to vector<8x32xf32>
    %351 = vector.extract_strided_slice %348 {offsets = [0, 32], sizes = [8, 32], strides = [1, 1]} : vector<8x128xf32> to vector<8x32xf32>
    %352 = vector.extract_strided_slice %349 {offsets = [0, 64], sizes = [8, 32], strides = [1, 1]} : vector<8x128xf32> to vector<8x32xf32>
    %353 = vector.extract_strided_slice %348 {offsets = [0, 96], sizes = [8, 32], strides = [1, 1]} : vector<8x128xf32> to vector<8x32xf32>
    %354 = arith.mulf %351, %334 : vector<8x32xf32>
    %355 = arith.mulf %350, %352 : vector<8x32xf32>
    %356 = arith.addf %354, %355 : vector<8x32xf32>
    %357 = math.tanh %356 : vector<8x32xf32>
    %358 = arith.mulf %353, %357 : vector<8x32xf32>
    %cst_105 = arith.constant 0.000000e+00 : f32
    %359 = vector.broadcast %cst_105 : f32 to vector<8x32xf32>
    %360 = arith.maximumf %358, %359 : vector<8x32xf32>
    %c120_106 = arith.constant 120 : index
    %c0_107 = arith.constant 0 : index
    %361 = vector.load %arg10[%c120_106, %c0_107] : memref<184x32xf32, #tpu.memory_space<vmem>>, vector<8x32xf32>
    tpu.vector_store %arg10[%c120_106, %c0_107], %360 {strides = array<i32>} : memref<184x32xf32, #tpu.memory_space<vmem>>, vector<8x32xf32>,
    %c128 = arith.constant 128 : index
    %c0_108 = arith.constant 0 : index
    %362 = vector.load %arg9[%c128, %c0_108] : memref<184x128xf32, #tpu.memory_space<vmem>>, vector<8x128xf32>
    %363 = arith.truncf %358 : vector<8x32xf32> to vector<8x32xbf16>
    %cst_109 = arith.constant dense<0.000000e+00> : vector<8x128xf32>
    %364 = tpu.matmul %363, %7, %cst_109 {dimension_numbers = #tpu.dot_dimension_numbers<[1], [0], [0], [1], [0, 0, 1, 1], [], []>} : vector<8x32xbf16>, vector<32x128xbf16>, vector<8x128xf32> -> vector<8x128xf32>
    %365 = arith.addf %362, %364 : vector<8x128xf32>
    %366 = arith.negf %365 : vector<8x128xf32>
    %367 = math.exp %366 : vector<8x128xf32>
    %cst_110 = arith.constant 1.000000e+00 : f32
    %368 = vector.broadcast %cst_110 : f32 to vector<8x128xf32>
    %369 = arith.addf %368, %367 : vector<8x128xf32>
    %370 = arith.divf %368, %369 : vector<8x128xf32>
    %371 = math.tanh %365 : vector<8x128xf32>
    %372 = vector.extract_strided_slice %370 {offsets = [0, 0], sizes = [8, 32], strides = [1, 1]} : vector<8x128xf32> to vector<8x32xf32>
    %373 = vector.extract_strided_slice %370 {offsets = [0, 32], sizes = [8, 32], strides = [1, 1]} : vector<8x128xf32> to vector<8x32xf32>
    %374 = vector.extract_strided_slice %371 {offsets = [0, 64], sizes = [8, 32], strides = [1, 1]} : vector<8x128xf32> to vector<8x32xf32>
    %375 = vector.extract_strided_slice %370 {offsets = [0, 96], sizes = [8, 32], strides = [1, 1]} : vector<8x128xf32> to vector<8x32xf32>
    %376 = arith.mulf %373, %356 : vector<8x32xf32>
    %377 = arith.mulf %372, %374 : vector<8x32xf32>
    %378 = arith.addf %376, %377 : vector<8x32xf32>
    %379 = math.tanh %378 : vector<8x32xf32>
    %380 = arith.mulf %375, %379 : vector<8x32xf32>
    %cst_111 = arith.constant 0.000000e+00 : f32
    %381 = vector.broadcast %cst_111 : f32 to vector<8x32xf32>
    %382 = arith.maximumf %380, %381 : vector<8x32xf32>
    %c128_112 = arith.constant 128 : index
    %c0_113 = arith.constant 0 : index
    %383 = vector.load %arg10[%c128_112, %c0_113] : memref<184x32xf32, #tpu.memory_space<vmem>>, vector<8x32xf32>
    tpu.vector_store %arg10[%c128_112, %c0_113], %382 {strides = array<i32>} : memref<184x32xf32, #tpu.memory_space<vmem>>, vector<8x32xf32>,
    %c136 = arith.constant 136 : index
    %c0_114 = arith.constant 0 : index
    %384 = vector.load %arg9[%c136, %c0_114] : memref<184x128xf32, #tpu.memory_space<vmem>>, vector<8x128xf32>
    %385 = arith.truncf %380 : vector<8x32xf32> to vector<8x32xbf16>
    %cst_115 = arith.constant dense<0.000000e+00> : vector<8x128xf32>
    %386 = tpu.matmul %385, %7, %cst_115 {dimension_numbers = #tpu.dot_dimension_numbers<[1], [0], [0], [1], [0, 0, 1, 1], [], []>} : vector<8x32xbf16>, vector<32x128xbf16>, vector<8x128xf32> -> vector<8x128xf32>
    %387 = arith.addf %384, %386 : vector<8x128xf32>
    %388 = arith.negf %387 : vector<8x128xf32>
    %389 = math.exp %388 : vector<8x128xf32>
    %cst_116 = arith.constant 1.000000e+00 : f32
    %390 = vector.broadcast %cst_116 : f32 to vector<8x128xf32>
    %391 = arith.addf %390, %389 : vector<8x128xf32>
    %392 = arith.divf %390, %391 : vector<8x128xf32>
    %393 = math.tanh %387 : vector<8x128xf32>
    %394 = vector.extract_strided_slice %392 {offsets = [0, 0], sizes = [8, 32], strides = [1, 1]} : vector<8x128xf32> to vector<8x32xf32>
    %395 = vector.extract_strided_slice %392 {offsets = [0, 32], sizes = [8, 32], strides = [1, 1]} : vector<8x128xf32> to vector<8x32xf32>
    %396 = vector.extract_strided_slice %393 {offsets = [0, 64], sizes = [8, 32], strides = [1, 1]} : vector<8x128xf32> to vector<8x32xf32>
    %397 = vector.extract_strided_slice %392 {offsets = [0, 96], sizes = [8, 32], strides = [1, 1]} : vector<8x128xf32> to vector<8x32xf32>
    %398 = arith.mulf %395, %378 : vector<8x32xf32>
    %399 = arith.mulf %394, %396 : vector<8x32xf32>
    %400 = arith.addf %398, %399 : vector<8x32xf32>
    %401 = math.tanh %400 : vector<8x32xf32>
    %402 = arith.mulf %397, %401 : vector<8x32xf32>
    %cst_117 = arith.constant 0.000000e+00 : f32
    %403 = vector.broadcast %cst_117 : f32 to vector<8x32xf32>
    %404 = arith.maximumf %402, %403 : vector<8x32xf32>
    %c136_118 = arith.constant 136 : index
    %c0_119 = arith.constant 0 : index
    %405 = vector.load %arg10[%c136_118, %c0_119] : memref<184x32xf32, #tpu.memory_space<vmem>>, vector<8x32xf32>
    tpu.vector_store %arg10[%c136_118, %c0_119], %404 {strides = array<i32>} : memref<184x32xf32, #tpu.memory_space<vmem>>, vector<8x32xf32>,
    %c144 = arith.constant 144 : index
    %c0_120 = arith.constant 0 : index
    %406 = vector.load %arg9[%c144, %c0_120] : memref<184x128xf32, #tpu.memory_space<vmem>>, vector<8x128xf32>
    %407 = arith.truncf %402 : vector<8x32xf32> to vector<8x32xbf16>
    %cst_121 = arith.constant dense<0.000000e+00> : vector<8x128xf32>
    %408 = tpu.matmul %407, %7, %cst_121 {dimension_numbers = #tpu.dot_dimension_numbers<[1], [0], [0], [1], [0, 0, 1, 1], [], []>} : vector<8x32xbf16>, vector<32x128xbf16>, vector<8x128xf32> -> vector<8x128xf32>
    %409 = arith.addf %406, %408 : vector<8x128xf32>
    %410 = arith.negf %409 : vector<8x128xf32>
    %411 = math.exp %410 : vector<8x128xf32>
    %cst_122 = arith.constant 1.000000e+00 : f32
    %412 = vector.broadcast %cst_122 : f32 to vector<8x128xf32>
    %413 = arith.addf %412, %411 : vector<8x128xf32>
    %414 = arith.divf %412, %413 : vector<8x128xf32>
    %415 = math.tanh %409 : vector<8x128xf32>
    %416 = vector.extract_strided_slice %414 {offsets = [0, 0], sizes = [8, 32], strides = [1, 1]} : vector<8x128xf32> to vector<8x32xf32>
    %417 = vector.extract_strided_slice %414 {offsets = [0, 32], sizes = [8, 32], strides = [1, 1]} : vector<8x128xf32> to vector<8x32xf32>
    %418 = vector.extract_strided_slice %415 {offsets = [0, 64], sizes = [8, 32], strides = [1, 1]} : vector<8x128xf32> to vector<8x32xf32>
    %419 = vector.extract_strided_slice %414 {offsets = [0, 96], sizes = [8, 32], strides = [1, 1]} : vector<8x128xf32> to vector<8x32xf32>
    %420 = arith.mulf %417, %400 : vector<8x32xf32>
    %421 = arith.mulf %416, %418 : vector<8x32xf32>
    %422 = arith.addf %420, %421 : vector<8x32xf32>
    %423 = math.tanh %422 : vector<8x32xf32>
    %424 = arith.mulf %419, %423 : vector<8x32xf32>
    %cst_123 = arith.constant 0.000000e+00 : f32
    %425 = vector.broadcast %cst_123 : f32 to vector<8x32xf32>
    %426 = arith.maximumf %424, %425 : vector<8x32xf32>
    %c144_124 = arith.constant 144 : index
    %c0_125 = arith.constant 0 : index
    %427 = vector.load %arg10[%c144_124, %c0_125] : memref<184x32xf32, #tpu.memory_space<vmem>>, vector<8x32xf32>
    tpu.vector_store %arg10[%c144_124, %c0_125], %426 {strides = array<i32>} : memref<184x32xf32, #tpu.memory_space<vmem>>, vector<8x32xf32>,
    %c152 = arith.constant 152 : index
    %c0_126 = arith.constant 0 : index
    %428 = vector.load %arg9[%c152, %c0_126] : memref<184x128xf32, #tpu.memory_space<vmem>>, vector<8x128xf32>
    %429 = arith.truncf %424 : vector<8x32xf32> to vector<8x32xbf16>
    %cst_127 = arith.constant dense<0.000000e+00> : vector<8x128xf32>
    %430 = tpu.matmul %429, %7, %cst_127 {dimension_numbers = #tpu.dot_dimension_numbers<[1], [0], [0], [1], [0, 0, 1, 1], [], []>} : vector<8x32xbf16>, vector<32x128xbf16>, vector<8x128xf32> -> vector<8x128xf32>
    %431 = arith.addf %428, %430 : vector<8x128xf32>
    %432 = arith.negf %431 : vector<8x128xf32>
    %433 = math.exp %432 : vector<8x128xf32>
    %cst_128 = arith.constant 1.000000e+00 : f32
    %434 = vector.broadcast %cst_128 : f32 to vector<8x128xf32>
    %435 = arith.addf %434, %433 : vector<8x128xf32>
    %436 = arith.divf %434, %435 : vector<8x128xf32>
    %437 = math.tanh %431 : vector<8x128xf32>
    %438 = vector.extract_strided_slice %436 {offsets = [0, 0], sizes = [8, 32], strides = [1, 1]} : vector<8x128xf32> to vector<8x32xf32>
    %439 = vector.extract_strided_slice %436 {offsets = [0, 32], sizes = [8, 32], strides = [1, 1]} : vector<8x128xf32> to vector<8x32xf32>
    %440 = vector.extract_strided_slice %437 {offsets = [0, 64], sizes = [8, 32], strides = [1, 1]} : vector<8x128xf32> to vector<8x32xf32>
    %441 = vector.extract_strided_slice %436 {offsets = [0, 96], sizes = [8, 32], strides = [1, 1]} : vector<8x128xf32> to vector<8x32xf32>
    %442 = arith.mulf %439, %422 : vector<8x32xf32>
    %443 = arith.mulf %438, %440 : vector<8x32xf32>
    %444 = arith.addf %442, %443 : vector<8x32xf32>
    %445 = math.tanh %444 : vector<8x32xf32>
    %446 = arith.mulf %441, %445 : vector<8x32xf32>
    %cst_129 = arith.constant 0.000000e+00 : f32
    %447 = vector.broadcast %cst_129 : f32 to vector<8x32xf32>
    %448 = arith.maximumf %446, %447 : vector<8x32xf32>
    %c152_130 = arith.constant 152 : index
    %c0_131 = arith.constant 0 : index
    %449 = vector.load %arg10[%c152_130, %c0_131] : memref<184x32xf32, #tpu.memory_space<vmem>>, vector<8x32xf32>
    tpu.vector_store %arg10[%c152_130, %c0_131], %448 {strides = array<i32>} : memref<184x32xf32, #tpu.memory_space<vmem>>, vector<8x32xf32>,
    %c160 = arith.constant 160 : index
    %c0_132 = arith.constant 0 : index
    %450 = vector.load %arg9[%c160, %c0_132] : memref<184x128xf32, #tpu.memory_space<vmem>>, vector<8x128xf32>
    %451 = arith.truncf %446 : vector<8x32xf32> to vector<8x32xbf16>
    %cst_133 = arith.constant dense<0.000000e+00> : vector<8x128xf32>
    %452 = tpu.matmul %451, %7, %cst_133 {dimension_numbers = #tpu.dot_dimension_numbers<[1], [0], [0], [1], [0, 0, 1, 1], [], []>} : vector<8x32xbf16>, vector<32x128xbf16>, vector<8x128xf32> -> vector<8x128xf32>
    %453 = arith.addf %450, %452 : vector<8x128xf32>
    %454 = arith.negf %453 : vector<8x128xf32>
    %455 = math.exp %454 : vector<8x128xf32>
    %cst_134 = arith.constant 1.000000e+00 : f32
    %456 = vector.broadcast %cst_134 : f32 to vector<8x128xf32>
    %457 = arith.addf %456, %455 : vector<8x128xf32>
    %458 = arith.divf %456, %457 : vector<8x128xf32>
    %459 = math.tanh %453 : vector<8x128xf32>
    %460 = vector.extract_strided_slice %458 {offsets = [0, 0], sizes = [8, 32], strides = [1, 1]} : vector<8x128xf32> to vector<8x32xf32>
    %461 = vector.extract_strided_slice %458 {offsets = [0, 32], sizes = [8, 32], strides = [1, 1]} : vector<8x128xf32> to vector<8x32xf32>
    %462 = vector.extract_strided_slice %459 {offsets = [0, 64], sizes = [8, 32], strides = [1, 1]} : vector<8x128xf32> to vector<8x32xf32>
    %463 = vector.extract_strided_slice %458 {offsets = [0, 96], sizes = [8, 32], strides = [1, 1]} : vector<8x128xf32> to vector<8x32xf32>
    %464 = arith.mulf %461, %444 : vector<8x32xf32>
    %465 = arith.mulf %460, %462 : vector<8x32xf32>
    %466 = arith.addf %464, %465 : vector<8x32xf32>
    %467 = math.tanh %466 : vector<8x32xf32>
    %468 = arith.mulf %463, %467 : vector<8x32xf32>
    %cst_135 = arith.constant 0.000000e+00 : f32
    %469 = vector.broadcast %cst_135 : f32 to vector<8x32xf32>
    %470 = arith.maximumf %468, %469 : vector<8x32xf32>
    %c160_136 = arith.constant 160 : index
    %c0_137 = arith.constant 0 : index
    %471 = vector.load %arg10[%c160_136, %c0_137] : memref<184x32xf32, #tpu.memory_space<vmem>>, vector<8x32xf32>
    tpu.vector_store %arg10[%c160_136, %c0_137], %470 {strides = array<i32>} : memref<184x32xf32, #tpu.memory_space<vmem>>, vector<8x32xf32>,
    %c168 = arith.constant 168 : index
    %c0_138 = arith.constant 0 : index
    %472 = vector.load %arg9[%c168, %c0_138] : memref<184x128xf32, #tpu.memory_space<vmem>>, vector<8x128xf32>
    %473 = arith.truncf %468 : vector<8x32xf32> to vector<8x32xbf16>
    %cst_139 = arith.constant dense<0.000000e+00> : vector<8x128xf32>
    %474 = tpu.matmul %473, %7, %cst_139 {dimension_numbers = #tpu.dot_dimension_numbers<[1], [0], [0], [1], [0, 0, 1, 1], [], []>} : vector<8x32xbf16>, vector<32x128xbf16>, vector<8x128xf32> -> vector<8x128xf32>
    %475 = arith.addf %472, %474 : vector<8x128xf32>
    %476 = arith.negf %475 : vector<8x128xf32>
    %477 = math.exp %476 : vector<8x128xf32>
    %cst_140 = arith.constant 1.000000e+00 : f32
    %478 = vector.broadcast %cst_140 : f32 to vector<8x128xf32>
    %479 = arith.addf %478, %477 : vector<8x128xf32>
    %480 = arith.divf %478, %479 : vector<8x128xf32>
    %481 = math.tanh %475 : vector<8x128xf32>
    %482 = vector.extract_strided_slice %480 {offsets = [0, 0], sizes = [8, 32], strides = [1, 1]} : vector<8x128xf32> to vector<8x32xf32>
    %483 = vector.extract_strided_slice %480 {offsets = [0, 32], sizes = [8, 32], strides = [1, 1]} : vector<8x128xf32> to vector<8x32xf32>
    %484 = vector.extract_strided_slice %481 {offsets = [0, 64], sizes = [8, 32], strides = [1, 1]} : vector<8x128xf32> to vector<8x32xf32>
    %485 = vector.extract_strided_slice %480 {offsets = [0, 96], sizes = [8, 32], strides = [1, 1]} : vector<8x128xf32> to vector<8x32xf32>
    %486 = arith.mulf %483, %466 : vector<8x32xf32>
    %487 = arith.mulf %482, %484 : vector<8x32xf32>
    %488 = arith.addf %486, %487 : vector<8x32xf32>
    %489 = math.tanh %488 : vector<8x32xf32>
    %490 = arith.mulf %485, %489 : vector<8x32xf32>
    %cst_141 = arith.constant 0.000000e+00 : f32
    %491 = vector.broadcast %cst_141 : f32 to vector<8x32xf32>
    %492 = arith.maximumf %490, %491 : vector<8x32xf32>
    %c168_142 = arith.constant 168 : index
    %c0_143 = arith.constant 0 : index
    %493 = vector.load %arg10[%c168_142, %c0_143] : memref<184x32xf32, #tpu.memory_space<vmem>>, vector<8x32xf32>
    tpu.vector_store %arg10[%c168_142, %c0_143], %492 {strides = array<i32>} : memref<184x32xf32, #tpu.memory_space<vmem>>, vector<8x32xf32>,
    %c176 = arith.constant 176 : index
    %c0_144 = arith.constant 0 : index
    %494 = vector.load %arg9[%c176, %c0_144] : memref<184x128xf32, #tpu.memory_space<vmem>>, vector<8x128xf32>
    %495 = arith.truncf %490 : vector<8x32xf32> to vector<8x32xbf16>
    %cst_145 = arith.constant dense<0.000000e+00> : vector<8x128xf32>
    %496 = tpu.matmul %495, %7, %cst_145 {dimension_numbers = #tpu.dot_dimension_numbers<[1], [0], [0], [1], [0, 0, 1, 1], [], []>} : vector<8x32xbf16>, vector<32x128xbf16>, vector<8x128xf32> -> vector<8x128xf32>
    %497 = arith.addf %494, %496 : vector<8x128xf32>
    %498 = arith.negf %497 : vector<8x128xf32>
    %499 = math.exp %498 : vector<8x128xf32>
    %cst_146 = arith.constant 1.000000e+00 : f32
    %500 = vector.broadcast %cst_146 : f32 to vector<8x128xf32>
    %501 = arith.addf %500, %499 : vector<8x128xf32>
    %502 = arith.divf %500, %501 : vector<8x128xf32>
    %503 = math.tanh %497 : vector<8x128xf32>
    %504 = vector.extract_strided_slice %502 {offsets = [0, 0], sizes = [8, 32], strides = [1, 1]} : vector<8x128xf32> to vector<8x32xf32>
    %505 = vector.extract_strided_slice %502 {offsets = [0, 32], sizes = [8, 32], strides = [1, 1]} : vector<8x128xf32> to vector<8x32xf32>
    %506 = vector.extract_strided_slice %503 {offsets = [0, 64], sizes = [8, 32], strides = [1, 1]} : vector<8x128xf32> to vector<8x32xf32>
    %507 = vector.extract_strided_slice %502 {offsets = [0, 96], sizes = [8, 32], strides = [1, 1]} : vector<8x128xf32> to vector<8x32xf32>
    %508 = arith.mulf %505, %488 : vector<8x32xf32>
    %509 = arith.mulf %504, %506 : vector<8x32xf32>
    %510 = arith.addf %508, %509 : vector<8x32xf32>
    %511 = math.tanh %510 : vector<8x32xf32>
    %512 = arith.mulf %507, %511 : vector<8x32xf32>
    %cst_147 = arith.constant 0.000000e+00 : f32
    %513 = vector.broadcast %cst_147 : f32 to vector<8x32xf32>
    %514 = arith.maximumf %512, %513 : vector<8x32xf32>
    %c176_148 = arith.constant 176 : index
    %c0_149 = arith.constant 0 : index
    %515 = vector.load %arg10[%c176_148, %c0_149] : memref<184x32xf32, #tpu.memory_space<vmem>>, vector<8x32xf32>
    tpu.vector_store %arg10[%c176_148, %c0_149], %514 {strides = array<i32>} : memref<184x32xf32, #tpu.memory_space<vmem>>, vector<8x32xf32>,
    %c0_150 = arith.constant 0 : index
    %c0_151 = arith.constant 0 : index
    %516 = vector.load %arg10[%c0_150, %c0_151] : memref<184x32xf32, #tpu.memory_space<vmem>>, vector<184x32xf32>
    %c0_152 = arith.constant 0 : index
    %c0_153 = arith.constant 0 : index
    %517 = vector.load %arg4[%c0_152, %c0_153] : memref<32x8xf32, #tpu.memory_space<vmem>>, vector<32x8xf32>
    %cst_154 = arith.constant dense<0.000000e+00> : vector<184x8xf32>
    %518 = tpu.matmul %516, %517, %cst_154 {dimension_numbers = #tpu.dot_dimension_numbers<[1], [0], [0], [1], [0, 0, 1, 1], [], []>} : vector<184x32xf32>, vector<32x8xf32>, vector<184x8xf32> -> vector<184x8xf32>
    %c0_155 = arith.constant 0 : index
    %c0_156 = arith.constant 0 : index
    %519 = vector.load %arg5[%c0_155, %c0_156] : memref<1x8xf32, #tpu.memory_space<vmem>>, vector<1x8xf32>
    %520 = vector.broadcast %519 : vector<1x8xf32> to vector<184x8xf32>
    %521 = arith.addf %518, %520 : vector<184x8xf32>
    %cst_157 = arith.constant 0.000000e+00 : f32
    %522 = vector.broadcast %cst_157 : f32 to vector<184x8xf32>
    %523 = arith.maximumf %521, %522 : vector<184x8xf32>
    %524 = vector.extract_strided_slice %523 {offsets = [0, 0], sizes = [8, 8], strides = [1, 1]} : vector<184x8xf32> to vector<8x8xf32>
    %c0_158 = arith.constant 0 : index
    %c0_159 = arith.constant 0 : index
    %525 = vector.load %arg11[%c0_158, %c0_159] : memref<8x184xf32, #tpu.memory_space<vmem>>, vector<8x8xf32>
    tpu.vector_store %arg11[%c0_158, %c0_159], %524 {strides = array<i32>} : memref<8x184xf32, #tpu.memory_space<vmem>>, vector<8x8xf32>,
    %526 = vector.extract_strided_slice %523 {offsets = [8, 0], sizes = [8, 8], strides = [1, 1]} : vector<184x8xf32> to vector<8x8xf32>
    %c0_160 = arith.constant 0 : index
    %c8_161 = arith.constant 8 : index
    %527 = vector.load %arg11[%c0_160, %c8_161] : memref<8x184xf32, #tpu.memory_space<vmem>>, vector<8x8xf32>
    tpu.vector_store %arg11[%c0_160, %c8_161], %526 {strides = array<i32>} : memref<8x184xf32, #tpu.memory_space<vmem>>, vector<8x8xf32>,
    %528 = vector.extract_strided_slice %523 {offsets = [16, 0], sizes = [8, 8], strides = [1, 1]} : vector<184x8xf32> to vector<8x8xf32>
    %c0_162 = arith.constant 0 : index
    %c16_163 = arith.constant 16 : index
    %529 = vector.load %arg11[%c0_162, %c16_163] : memref<8x184xf32, #tpu.memory_space<vmem>>, vector<8x8xf32>
    tpu.vector_store %arg11[%c0_162, %c16_163], %528 {strides = array<i32>} : memref<8x184xf32, #tpu.memory_space<vmem>>, vector<8x8xf32>,
    %530 = vector.extract_strided_slice %523 {offsets = [24, 0], sizes = [8, 8], strides = [1, 1]} : vector<184x8xf32> to vector<8x8xf32>
    %c0_164 = arith.constant 0 : index
    %c24_165 = arith.constant 24 : index
    %531 = vector.load %arg11[%c0_164, %c24_165] : memref<8x184xf32, #tpu.memory_space<vmem>>, vector<8x8xf32>
    tpu.vector_store %arg11[%c0_164, %c24_165], %530 {strides = array<i32>} : memref<8x184xf32, #tpu.memory_space<vmem>>, vector<8x8xf32>,
    %532 = vector.extract_strided_slice %523 {offsets = [32, 0], sizes = [8, 8], strides = [1, 1]} : vector<184x8xf32> to vector<8x8xf32>
    %c0_166 = arith.constant 0 : index
    %c32_167 = arith.constant 32 : index
    %533 = vector.load %arg11[%c0_166, %c32_167] : memref<8x184xf32, #tpu.memory_space<vmem>>, vector<8x8xf32>
    tpu.vector_store %arg11[%c0_166, %c32_167], %532 {strides = array<i32>} : memref<8x184xf32, #tpu.memory_space<vmem>>, vector<8x8xf32>,
    %534 = vector.extract_strided_slice %523 {offsets = [40, 0], sizes = [8, 8], strides = [1, 1]} : vector<184x8xf32> to vector<8x8xf32>
    %c0_168 = arith.constant 0 : index
    %c40_169 = arith.constant 40 : index
    %535 = vector.load %arg11[%c0_168, %c40_169] : memref<8x184xf32, #tpu.memory_space<vmem>>, vector<8x8xf32>
    tpu.vector_store %arg11[%c0_168, %c40_169], %534 {strides = array<i32>} : memref<8x184xf32, #tpu.memory_space<vmem>>, vector<8x8xf32>,
    %536 = vector.extract_strided_slice %523 {offsets = [48, 0], sizes = [8, 8], strides = [1, 1]} : vector<184x8xf32> to vector<8x8xf32>
    %c0_170 = arith.constant 0 : index
    %c48_171 = arith.constant 48 : index
    %537 = vector.load %arg11[%c0_170, %c48_171] : memref<8x184xf32, #tpu.memory_space<vmem>>, vector<8x8xf32>
    tpu.vector_store %arg11[%c0_170, %c48_171], %536 {strides = array<i32>} : memref<8x184xf32, #tpu.memory_space<vmem>>, vector<8x8xf32>,
    %538 = vector.extract_strided_slice %523 {offsets = [56, 0], sizes = [8, 8], strides = [1, 1]} : vector<184x8xf32> to vector<8x8xf32>
    %c0_172 = arith.constant 0 : index
    %c56_173 = arith.constant 56 : index
    %539 = vector.load %arg11[%c0_172, %c56_173] : memref<8x184xf32, #tpu.memory_space<vmem>>, vector<8x8xf32>
    tpu.vector_store %arg11[%c0_172, %c56_173], %538 {strides = array<i32>} : memref<8x184xf32, #tpu.memory_space<vmem>>, vector<8x8xf32>,
    %540 = vector.extract_strided_slice %523 {offsets = [64, 0], sizes = [8, 8], strides = [1, 1]} : vector<184x8xf32> to vector<8x8xf32>
    %c0_174 = arith.constant 0 : index
    %c64_175 = arith.constant 64 : index
    %541 = vector.load %arg11[%c0_174, %c64_175] : memref<8x184xf32, #tpu.memory_space<vmem>>, vector<8x8xf32>
    tpu.vector_store %arg11[%c0_174, %c64_175], %540 {strides = array<i32>} : memref<8x184xf32, #tpu.memory_space<vmem>>, vector<8x8xf32>,
    %542 = vector.extract_strided_slice %523 {offsets = [72, 0], sizes = [8, 8], strides = [1, 1]} : vector<184x8xf32> to vector<8x8xf32>
    %c0_176 = arith.constant 0 : index
    %c72_177 = arith.constant 72 : index
    %543 = vector.load %arg11[%c0_176, %c72_177] : memref<8x184xf32, #tpu.memory_space<vmem>>, vector<8x8xf32>
    tpu.vector_store %arg11[%c0_176, %c72_177], %542 {strides = array<i32>} : memref<8x184xf32, #tpu.memory_space<vmem>>, vector<8x8xf32>,
    %544 = vector.extract_strided_slice %523 {offsets = [80, 0], sizes = [8, 8], strides = [1, 1]} : vector<184x8xf32> to vector<8x8xf32>
    %c0_178 = arith.constant 0 : index
    %c80_179 = arith.constant 80 : index
    %545 = vector.load %arg11[%c0_178, %c80_179] : memref<8x184xf32, #tpu.memory_space<vmem>>, vector<8x8xf32>
    tpu.vector_store %arg11[%c0_178, %c80_179], %544 {strides = array<i32>} : memref<8x184xf32, #tpu.memory_space<vmem>>, vector<8x8xf32>,
    %546 = vector.extract_strided_slice %523 {offsets = [88, 0], sizes = [8, 8], strides = [1, 1]} : vector<184x8xf32> to vector<8x8xf32>
    %c0_180 = arith.constant 0 : index
    %c88_181 = arith.constant 88 : index
    %547 = vector.load %arg11[%c0_180, %c88_181] : memref<8x184xf32, #tpu.memory_space<vmem>>, vector<8x8xf32>
    tpu.vector_store %arg11[%c0_180, %c88_181], %546 {strides = array<i32>} : memref<8x184xf32, #tpu.memory_space<vmem>>, vector<8x8xf32>,
    %548 = vector.extract_strided_slice %523 {offsets = [96, 0], sizes = [8, 8], strides = [1, 1]} : vector<184x8xf32> to vector<8x8xf32>
    %c0_182 = arith.constant 0 : index
    %c96_183 = arith.constant 96 : index
    %549 = vector.load %arg11[%c0_182, %c96_183] : memref<8x184xf32, #tpu.memory_space<vmem>>, vector<8x8xf32>
    tpu.vector_store %arg11[%c0_182, %c96_183], %548 {strides = array<i32>} : memref<8x184xf32, #tpu.memory_space<vmem>>, vector<8x8xf32>,
    %550 = vector.extract_strided_slice %523 {offsets = [104, 0], sizes = [8, 8], strides = [1, 1]} : vector<184x8xf32> to vector<8x8xf32>
    %c0_184 = arith.constant 0 : index
    %c104_185 = arith.constant 104 : index
    %551 = vector.load %arg11[%c0_184, %c104_185] : memref<8x184xf32, #tpu.memory_space<vmem>>, vector<8x8xf32>
    tpu.vector_store %arg11[%c0_184, %c104_185], %550 {strides = array<i32>} : memref<8x184xf32, #tpu.memory_space<vmem>>, vector<8x8xf32>,
    %552 = vector.extract_strided_slice %523 {offsets = [112, 0], sizes = [8, 8], strides = [1, 1]} : vector<184x8xf32> to vector<8x8xf32>
    %c0_186 = arith.constant 0 : index
    %c112_187 = arith.constant 112 : index
    %553 = vector.load %arg11[%c0_186, %c112_187] : memref<8x184xf32, #tpu.memory_space<vmem>>, vector<8x8xf32>
    tpu.vector_store %arg11[%c0_186, %c112_187], %552 {strides = array<i32>} : memref<8x184xf32, #tpu.memory_space<vmem>>, vector<8x8xf32>,
    %554 = vector.extract_strided_slice %523 {offsets = [120, 0], sizes = [8, 8], strides = [1, 1]} : vector<184x8xf32> to vector<8x8xf32>
    %c0_188 = arith.constant 0 : index
    %c120_189 = arith.constant 120 : index
    %555 = vector.load %arg11[%c0_188, %c120_189] : memref<8x184xf32, #tpu.memory_space<vmem>>, vector<8x8xf32>
    tpu.vector_store %arg11[%c0_188, %c120_189], %554 {strides = array<i32>} : memref<8x184xf32, #tpu.memory_space<vmem>>, vector<8x8xf32>,
    %556 = vector.extract_strided_slice %523 {offsets = [128, 0], sizes = [8, 8], strides = [1, 1]} : vector<184x8xf32> to vector<8x8xf32>
    %c0_190 = arith.constant 0 : index
    %c128_191 = arith.constant 128 : index
    %557 = vector.load %arg11[%c0_190, %c128_191] : memref<8x184xf32, #tpu.memory_space<vmem>>, vector<8x8xf32>
    tpu.vector_store %arg11[%c0_190, %c128_191], %556 {strides = array<i32>} : memref<8x184xf32, #tpu.memory_space<vmem>>, vector<8x8xf32>,
    %558 = vector.extract_strided_slice %523 {offsets = [136, 0], sizes = [8, 8], strides = [1, 1]} : vector<184x8xf32> to vector<8x8xf32>
    %c0_192 = arith.constant 0 : index
    %c136_193 = arith.constant 136 : index
    %559 = vector.load %arg11[%c0_192, %c136_193] : memref<8x184xf32, #tpu.memory_space<vmem>>, vector<8x8xf32>
    tpu.vector_store %arg11[%c0_192, %c136_193], %558 {strides = array<i32>} : memref<8x184xf32, #tpu.memory_space<vmem>>, vector<8x8xf32>,
    %560 = vector.extract_strided_slice %523 {offsets = [144, 0], sizes = [8, 8], strides = [1, 1]} : vector<184x8xf32> to vector<8x8xf32>
    %c0_194 = arith.constant 0 : index
    %c144_195 = arith.constant 144 : index
    %561 = vector.load %arg11[%c0_194, %c144_195] : memref<8x184xf32, #tpu.memory_space<vmem>>, vector<8x8xf32>
    tpu.vector_store %arg11[%c0_194, %c144_195], %560 {strides = array<i32>} : memref<8x184xf32, #tpu.memory_space<vmem>>, vector<8x8xf32>,
    %562 = vector.extract_strided_slice %523 {offsets = [152, 0], sizes = [8, 8], strides = [1, 1]} : vector<184x8xf32> to vector<8x8xf32>
    %c0_196 = arith.constant 0 : index
    %c152_197 = arith.constant 152 : index
    %563 = vector.load %arg11[%c0_196, %c152_197] : memref<8x184xf32, #tpu.memory_space<vmem>>, vector<8x8xf32>
    tpu.vector_store %arg11[%c0_196, %c152_197], %562 {strides = array<i32>} : memref<8x184xf32, #tpu.memory_space<vmem>>, vector<8x8xf32>,
    %564 = vector.extract_strided_slice %523 {offsets = [160, 0], sizes = [8, 8], strides = [1, 1]} : vector<184x8xf32> to vector<8x8xf32>
    %c0_198 = arith.constant 0 : index
    %c160_199 = arith.constant 160 : index
    %565 = vector.load %arg11[%c0_198, %c160_199] : memref<8x184xf32, #tpu.memory_space<vmem>>, vector<8x8xf32>
    tpu.vector_store %arg11[%c0_198, %c160_199], %564 {strides = array<i32>} : memref<8x184xf32, #tpu.memory_space<vmem>>, vector<8x8xf32>,
    %566 = vector.extract_strided_slice %523 {offsets = [168, 0], sizes = [8, 8], strides = [1, 1]} : vector<184x8xf32> to vector<8x8xf32>
    %c0_200 = arith.constant 0 : index
    %c168_201 = arith.constant 168 : index
    %567 = vector.load %arg11[%c0_200, %c168_201] : memref<8x184xf32, #tpu.memory_space<vmem>>, vector<8x8xf32>
    tpu.vector_store %arg11[%c0_200, %c168_201], %566 {strides = array<i32>} : memref<8x184xf32, #tpu.memory_space<vmem>>, vector<8x8xf32>,
    %568 = vector.extract_strided_slice %523 {offsets = [176, 0], sizes = [8, 8], strides = [1, 1]} : vector<184x8xf32> to vector<8x8xf32>
    %c0_202 = arith.constant 0 : index
    %c176_203 = arith.constant 176 : index
    %569 = vector.load %arg11[%c0_202, %c176_203] : memref<8x184xf32, #tpu.memory_space<vmem>>, vector<8x8xf32>
    tpu.vector_store %arg11[%c0_202, %c176_203], %568 {strides = array<i32>} : memref<8x184xf32, #tpu.memory_space<vmem>>, vector<8x8xf32>,
    %c0_204 = arith.constant 0 : index
    %c0_205 = arith.constant 0 : index
    %570 = vector.load %arg11[%c0_204, %c0_205] : memref<8x184xf32, #tpu.memory_space<vmem>>, vector<8x184xf32>
    %c0_206 = arith.constant 0 : index
    %c0_207 = arith.constant 0 : index
    %571 = vector.load %arg6[%c0_206, %c0_207] : memref<184x4xf32, #tpu.memory_space<vmem>>, vector<184x4xf32>
    %cst_208 = arith.constant dense<0.000000e+00> : vector<8x4xf32>
    %572 = tpu.matmul %570, %571, %cst_208 {dimension_numbers = #tpu.dot_dimension_numbers<[1], [0], [0], [1], [0, 0, 1, 1], [], []>} : vector<8x184xf32>, vector<184x4xf32>, vector<8x4xf32> -> vector<8x4xf32>
    %c0_209 = arith.constant 0 : index
    %c0_210 = arith.constant 0 : index
    %573 = vector.load %arg7[%c0_209, %c0_210] : memref<1x4xf32, #tpu.memory_space<vmem>>, vector<1x4xf32>
    %574 = vector.broadcast %573 : vector<1x4xf32> to vector<8x4xf32>
    %575 = arith.addf %572, %574 : vector<8x4xf32>
    %cst_211 = arith.constant dense<0xFF800000> : vector<8xf32>
    %576 = vector.multi_reduction <maximumf>, %575, %cst_211 [1] : vector<8x4xf32> to vector<8xf32>
    %577 = vector.shape_cast %576 : vector<8xf32> to vector<8x1xf32>
    %578 = vector.broadcast %577 : vector<8x1xf32> to vector<8x4xf32>
    %579 = arith.subf %575, %578 : vector<8x4xf32>
    %580 = math.exp %579 : vector<8x4xf32>
    %cst_212 = arith.constant dense<0.000000e+00> : vector<8xf32>
    %581 = vector.multi_reduction <add>, %580, %cst_212 [1] : vector<8x4xf32> to vector<8xf32>
    %582 = vector.shape_cast %581 : vector<8xf32> to vector<8x1xf32>
    %583 = vector.broadcast %582 : vector<8x1xf32> to vector<8x4xf32>
    %584 = arith.divf %580, %583 : vector<8x4xf32>
    %c0_213 = arith.constant 0 : index
    %c0_214 = arith.constant 0 : index
    %585 = vector.load %arg8[%c0_213, %c0_214] : memref<8x4xf32, #tpu.memory_space<vmem>>, vector<8x4xf32>
    tpu.vector_store %arg8[%c0_213, %c0_214], %584 {strides = array<i32>} : memref<8x4xf32, #tpu.memory_space<vmem>>, vector<8x4xf32>,
    return
  }
}

</mosaic_0001>

<llo_original>
// kernel: lstm_forward.1
$region0: #{lstm_forward.1}
  #allocation0 [shape = 'u32[]', space=smem, size = 0x4, offset = 0x4, fixed_abs, tag = 'smem constant byte address 0x4 - core index']
  #allocation1 [shape = 'u32[144,128]{1,0:T(1,128)}', space=vmem, size = 0x12000, scoped, tag = 'internal scratch']
  #allocation2 [shape = 'f32[184,128]{1,0:T(8,128)}', space=vmem, size = 0x17000, scoped, tag = 'scratch operand']
  #allocation3 [shape = 'f32[184,32]{1,0:T(8,128)}', space=vmem, size = 0x17000, scoped, tag = 'scratch operand']
  #allocation4 [shape = 'f32[8,184]{1,0:T(8,128)}', space=vmem, size = 0x2000, scoped, tag = 'scratch operand']
  %s0 = inlined_call_operand.vmem [shape: bf16[184,16], index: 0, kind: input, shape index: {}]
  %s1 = inlined_call_operand.vmem [shape: bf16[16,128], index: 1, kind: input, shape index: {}]
  %s2 = inlined_call_operand.vmem [shape: bf16[32,128], index: 2, kind: input, shape index: {}]
  %s3 = inlined_call_operand.vmem [shape: f32[1,128], index: 3, kind: input, shape index: {}]
  %s4 = inlined_call_operand.vmem [shape: f32[32,8], index: 4, kind: input, shape index: {}]
  %s5 = inlined_call_operand.vmem [shape: f32[1,8], index: 5, kind: input, shape index: {}]
  %s6 = inlined_call_operand.vmem [shape: f32[184,4], index: 6, kind: input, shape index: {}]
  %s7 = inlined_call_operand.vmem [shape: f32[1,4], index: 7, kind: input, shape index: {}]
  %s8 = inlined_call_operand.vmem [shape: f32[8,4], index: 8, kind: output, shape index: {}]
  %s9 = sld [smem:[#allocation0]]
  $region42: #{lstm_forward.1} parent=0
    _
  %s11 = ssub.s32 1, %s9
  %s12 = scalar_select 0, %s11, %s9
  // Predicated region
  $region2: #{lstm_forward.1} parent=0 // pred_check
    _
  $region3: #{lstm_forward.1} parent=0 // pred_check_branch
    %14 = sbr.rel (0) target = $region5
  $region4: #{lstm_forward.1} parent=0 // pred_region
    _
  $region5: #{lstm_forward.1} parent=0 // pred_fallthru
    _
  // Predicated region
  $region6: #{lstm_forward.1} parent=0 // pred_check
    _
  $region7: #{lstm_forward.1} parent=0 // pred_check_branch
    %16 = sbr.rel (0) target = $region9
  $region8: #{lstm_forward.1} parent=0 // pred_region
    _
  $region9: #{lstm_forward.1} parent=0 // pred_fallthru
    _
  // Predicated region
  $region10: #{lstm_forward.1} parent=0 // pred_check
    _
  $region11: #{lstm_forward.1} parent=0 // pred_check_branch
    %18 = sbr.rel (0) target = $region13
  $region12: #{lstm_forward.1} parent=0 // pred_region
    _
  $region13: #{lstm_forward.1} parent=0 // pred_fallthru
    _
  // Predicated region
  $region14: #{lstm_forward.1} parent=0 // pred_check
    _
  $region15: #{lstm_forward.1} parent=0 // pred_check_branch
    %20 = sbr.rel (0) target = $region17
  $region16: #{lstm_forward.1} parent=0 // pred_region
    _
  $region17: #{lstm_forward.1} parent=0 // pred_fallthru
    _
  // Predicated region
  $region18: #{lstm_forward.1} parent=0 // pred_check
    _
  $region19: #{lstm_forward.1} parent=0 // pred_check_branch
    %22 = sbr.rel (0) target = $region21
  $region20: #{lstm_forward.1} parent=0 // pred_region
    _
  $region21: #{lstm_forward.1} parent=0 // pred_fallthru
    _
  // Predicated region
  $region22: #{lstm_forward.1} parent=0 // pred_check
    _
  $region23: #{lstm_forward.1} parent=0 // pred_check_branch
    %24 = sbr.rel (0) target = $region25
  $region24: #{lstm_forward.1} parent=0 // pred_region
    _
  $region25: #{lstm_forward.1} parent=0 // pred_fallthru
    _
  // Predicated region
  $region26: #{lstm_forward.1} parent=0 // pred_check
    _
  $region27: #{lstm_forward.1} parent=0 // pred_check_branch
    %26 = sbr.rel (0) target = $region29
  $region28: #{lstm_forward.1} parent=0 // pred_region
    _
  $region29: #{lstm_forward.1} parent=0 // pred_fallthru
    _
  // Predicated region
  $region30: #{lstm_forward.1} parent=0 // pred_check
    _
  $region31: #{lstm_forward.1} parent=0 // pred_check_branch
    %28 = sbr.rel (0) target = $region33
  $region32: #{lstm_forward.1} parent=0 // pred_region
    _
  $region33: #{lstm_forward.1} parent=0 // pred_fallthru
    _
  %v30 = vld [vmem:[%s0] sm:$0xf]
  %v31 = vld [vmem:[%s0 + $0x4] sm:$0xf]
  %v32 = vld [vmem:[%s0 + $0x8] sm:$0xf]
  %v33 = vld [vmem:[%s0 + $0xc] sm:$0xf]
  %v34 = vld [vmem:[%s0 + $0x10] sm:$0xf]
  %v35 = vld [vmem:[%s0 + $0x14] sm:$0xf]
  %v36 = vld [vmem:[%s0 + $0x18] sm:$0xf]
  %v37 = vld [vmem:[%s0 + $0x1c] sm:$0xf]
  %v38 = vld [vmem:[%s0 + $0x20] sm:$0xf]
  %v39 = vld [vmem:[%s0 + $0x24] sm:$0xf]
  %v40 = vld [vmem:[%s0 + $0x28] sm:$0xf]
  %v41 = vld [vmem:[%s0 + $0x2c] sm:$0xf]
  %v42 = vld [vmem:[%s0 + $0x30] sm:$0xf]
  %v43 = vld [vmem:[%s0 + $0x34] sm:$0xf]
  %v44 = vld [vmem:[%s0 + $0x38] sm:$0xf]
  %v45 = vld [vmem:[%s0 + $0x3c] sm:$0xf]
  %v46 = vld [vmem:[%s0 + $0x40] sm:$0xf]
  %v47 = vld [vmem:[%s0 + $0x44] sm:$0xf]
  %v48 = vld [vmem:[%s0 + $0x48] sm:$0xf]
  %v49 = vld [vmem:[%s0 + $0x4c] sm:$0xf]
  %v50 = vld [vmem:[%s0 + $0x50] sm:$0xf]
  %v51 = vld [vmem:[%s0 + $0x54] sm:$0xf]
  %v52 = vld [vmem:[%s0 + $0x58] sm:$0xf]
  %v53 = vld [vmem:[%s1] sm:$0xf]
  %v54 = vld [vmem:[%s1 + $0x4] sm:$0xf]
  %v55 = vld [vmem:[%s3] sm:$0x1]
  %v57 = vlaneseq
  %v58 = vshrl.u32 %v57, 7
  %v59 = vsub.s32 0, %v58
  %v60 = vrot.slane %v55, %v59
  %v85 = vunpack.c.l.b16 %v30
  %v86 = vunpack.c.l.b16 %v31
  %v87 = vunpack.c.l.b16 %v32
  %v88 = vunpack.c.l.b16 %v33
  %v89 = vunpack.c.l.b16 %v34
  %v90 = vunpack.c.l.b16 %v35
  %v91 = vunpack.c.l.b16 %v36
  %v92 = vunpack.c.l.b16 %v37
  %v93 = vunpack.c.l.b16 %v38
  %v94 = vunpack.c.l.b16 %v39
  %v95 = vunpack.c.l.b16 %v40
  %v96 = vunpack.c.l.b16 %v41
  %v97 = vunpack.c.l.b16 %v42
  %v98 = vunpack.c.l.b16 %v43
  %v99 = vunpack.c.l.b16 %v44
  %v100 = vunpack.c.l.b16 %v45
  %v101 = vunpack.c.l.b16 %v46
  %v102 = vunpack.c.l.b16 %v47
  %v103 = vunpack.c.l.b16 %v48
  %v104 = vunpack.c.l.b16 %v49
  %v105 = vunpack.c.l.b16 %v50
  %v106 = vunpack.c.l.b16 %v51
  %v107 = vunpack.c.l.b16 %v52
  %v108 = vpack.c.b16 %v86, %v85
  %v109 = vpack.c.b16 %v88, %v87
  %v110 = vpack.c.b16 %v90, %v89
  %v111 = vpack.c.b16 %v92, %v91
  %v112 = vpack.c.b16 %v94, %v93
  %v113 = vpack.c.b16 %v96, %v95
  %v114 = vpack.c.b16 %v98, %v97
  %v115 = vpack.c.b16 %v100, %v99
  %v116 = vpack.c.b16 %v102, %v101
  %v117 = vpack.c.b16 %v104, %v103
  %v118 = vpack.c.b16 %v106, %v105
  %v119 = vpack.c.b16 %v107, %v107
  %v122 = vunpack.c.l.b16 %v53
  %v123 = vunpack.c.l.b16 %v54
  %v124 = vpack.c.b16 %v123, %v122
  %vm126 = vcmask 130048
  %v128 = vsel %vm126, %v108, 0
  %v131 = vsel %vm126, %v109, 0
  %v134 = vsel %vm126, %v110, 0
  %v137 = vsel %vm126, %v111, 0
  %v140 = vsel %vm126, %v112, 0
  %v143 = vsel %vm126, %v113, 0
  %v146 = vsel %vm126, %v114, 0
  %v149 = vsel %vm126, %v115, 0
  %v152 = vsel %vm126, %v116, 0
  %v155 = vsel %vm126, %v117, 0
  %v158 = vsel %vm126, %v118, 0
  %v161 = vsel %vm126, %v119, 0
  %163 = vmatprep.subr.bf16.mxu0 0
  %164 = vmatpush1.bf16.msra.mxu0 %v124
  %165 = vmatprep.subr.bf16.mxu0 0
  %166 = vmatpush1.bf16.msra.mxu0 0
  %167 = vmatprep.subr.bf16.mxu0 0
  %168 = vmatpush1.bf16.msra.mxu0 0
  %169 = vmatprep.subr.bf16.mxu0 0
  %170 = vmatpush1.bf16.msra.mxu0 0
  %171 = vmatprep.subr.bf16.mxu0 0
  %172 = vmatpush1.bf16.msra.mxu0 0
  %173 = vmatprep.subr.bf16.mxu0 0
  %174 = vmatpush1.bf16.msra.mxu0 0
  %175 = vmatprep.subr.bf16.mxu0 0
  %176 = vmatpush1.bf16.msra.mxu0 0
  %177 = vmatprep.subr.bf16.mxu0 0
  %178 = vmatpush1.bf16.msra.mxu0 0
  %179 = vmatprep.subr.bf16.mxu0 0
  %180 = vmatpush1.bf16.msra.mxu0 0
  %181 = vmatprep.subr.bf16.mxu0 0
  %182 = vmatpush1.bf16.msra.mxu0 0
  %183 = vmatprep.subr.bf16.mxu0 0
  %184 = vmatpush1.bf16.msra.mxu0 0
  %185 = vmatprep.subr.bf16.mxu0 0
  %186 = vmatpush1.bf16.msra.mxu0 0
  %187 = vmatprep.subr.bf16.mxu0 0
  %188 = vmatpush1.bf16.msra.mxu0 0
  %189 = vmatprep.subr.bf16.mxu0 0
  %190 = vmatpush1.bf16.msra.mxu0 0
  %191 = vmatprep.subr.bf16.mxu0 0
  %192 = vmatpush1.bf16.msra.mxu0 0
  %193 = vmatprep.subr.bf16.mxu0 0
  %194 = vmatpush1.bf16.msra.mxu0 0
  %195 = vmatprep.mubr.bf16.mxu0 0
  %196 = vmatmul.mubr.bf16.gmra.mrb[0].mxu0 %v128
  %v197 = vpop.f32.mrb[0].mxu0
  %v198 = vadd.f32 %v60, %v197
  %v199 = vpop.f32.mrb[0].mxu0
  %v200 = vpop.f32.mrb[0].mxu0
  %v201 = vadd.f32 %v60, %v200
  %v202 = vpop.f32.mrb[0].mxu0
  %203 = vmatprep.mubr.bf16.mxu0 0
  %204 = vmatmul.mubr.bf16.gmra.mrb[0].mxu0 %v131
  %v205 = vpop.f32.mrb[0].mxu0
  %v206 = vadd.f32 %v60, %v205
  %v207 = vpop.f32.mrb[0].mxu0
  %v208 = vpop.f32.mrb[0].mxu0
  %v209 = vadd.f32 %v60, %v208
  %v210 = vpop.f32.mrb[0].mxu0
  %211 = vmatprep.mubr.bf16.mxu0 0
  %212 = vmatmul.mubr.bf16.gmra.mrb[0].mxu0 %v134
  %v213 = vpop.f32.mrb[0].mxu0
  %v214 = vadd.f32 %v60, %v213
  %v215 = vpop.f32.mrb[0].mxu0
  %v216 = vpop.f32.mrb[0].mxu0
  %v217 = vadd.f32 %v60, %v216
  %v218 = vpop.f32.mrb[0].mxu0
  %219 = vmatprep.mubr.bf16.mxu0 0
  %220 = vmatmul.mubr.bf16.gmra.mrb[0].mxu0 %v137
  %v221 = vpop.f32.mrb[0].mxu0
  %v222 = vadd.f32 %v60, %v221
  %v223 = vpop.f32.mrb[0].mxu0
  %v224 = vpop.f32.mrb[0].mxu0
  %v225 = vadd.f32 %v60, %v224
  %v226 = vpop.f32.mrb[0].mxu0
  %227 = vmatprep.mubr.bf16.mxu0 0
  %228 = vmatmul.mubr.bf16.gmra.mrb[0].mxu0 %v140
  %v229 = vpop.f32.mrb[0].mxu0
  %v230 = vadd.f32 %v60, %v229
  %v231 = vpop.f32.mrb[0].mxu0
  %v232 = vpop.f32.mrb[0].mxu0
  %v233 = vadd.f32 %v60, %v232
  %v234 = vpop.f32.mrb[0].mxu0
  %235 = vmatprep.mubr.bf16.mxu0 0
  %236 = vmatmul.mubr.bf16.gmra.mrb[0].mxu0 %v143
  %v237 = vpop.f32.mrb[0].mxu0
  %v238 = vadd.f32 %v60, %v237
  %v239 = vpop.f32.mrb[0].mxu0
  %v240 = vpop.f32.mrb[0].mxu0
  %v241 = vadd.f32 %v60, %v240
  %v242 = vpop.f32.mrb[0].mxu0
  %243 = vmatprep.mubr.bf16.mxu0 0
  %244 = vmatmul.mubr.bf16.gmra.mrb[0].mxu0 %v146
  %v245 = vpop.f32.mrb[0].mxu0
  %v246 = vadd.f32 %v60, %v245
  %v247 = vpop.f32.mrb[0].mxu0
  %v248 = vpop.f32.mrb[0].mxu0
  %v249 = vadd.f32 %v60, %v248
  %v250 = vpop.f32.mrb[0].mxu0
  %251 = vmatprep.mubr.bf16.mxu0 0
  %252 = vmatmul.mubr.bf16.gmra.mrb[0].mxu0 %v149
  %v253 = vpop.f32.mrb[0].mxu0
  %v254 = vadd.f32 %v60, %v253
  %v255 = vpop.f32.mrb[0].mxu0
  %v256 = vpop.f32.mrb[0].mxu0
  %v257 = vadd.f32 %v60, %v256
  %v258 = vpop.f32.mrb[0].mxu0
  %259 = vmatprep.mubr.bf16.mxu0 0
  %260 = vmatmul.mubr.bf16.gmra.mrb[0].mxu0 %v152
  %v261 = vpop.f32.mrb[0].mxu0
  %v262 = vadd.f32 %v60, %v261
  %v263 = vpop.f32.mrb[0].mxu0
  %v264 = vpop.f32.mrb[0].mxu0
  %v265 = vadd.f32 %v60, %v264
  %v266 = vpop.f32.mrb[0].mxu0
  %267 = vmatprep.mubr.bf16.mxu0 0
  %268 = vmatmul.mubr.bf16.gmra.mrb[0].mxu0 %v155
  %v269 = vpop.f32.mrb[0].mxu0
  %v270 = vadd.f32 %v60, %v269
  %v271 = vpop.f32.mrb[0].mxu0
  %v272 = vpop.f32.mrb[0].mxu0
  %v273 = vadd.f32 %v60, %v272
  %v274 = vpop.f32.mrb[0].mxu0
  %275 = vmatprep.mubr.bf16.mxu0 0
  %276 = vmatmul.mubr.bf16.gmra.mrb[0].mxu0 %v158
  %v277 = vpop.f32.mrb[0].mxu0
  %v278 = vadd.f32 %v60, %v277
  %v279 = vpop.f32.mrb[0].mxu0
  %v280 = vpop.f32.mrb[0].mxu0
  %v281 = vadd.f32 %v60, %v280
  %v282 = vpop.f32.mrb[0].mxu0
  %283 = vmatprep.mubr.bf16.mxu0 0
  %284 = vmatmul.mubr.bf16.gmra.mrb[0].mxu0 %v161
  %v285 = vpop.f32.mrb[0].mxu0
  %v286 = vadd.f32 %v60, %v285
  %v287 = vpop.f32.mrb[0].mxu0
  %v288 = vpop.f32.mrb[0].mxu0
  %v289 = vpop.f32.mrb[0].mxu0
  %290 = vdwg.mxu0
  %291 = vst [vmem:[#allocation2] sm:$0xff] %v198
  %292 = vst [vmem:[#allocation2 + $0x8] sm:$0xff] %v201
  %293 = vst [vmem:[#allocation2 + $0x10] sm:$0xff] %v206
  %294 = vst [vmem:[#allocation2 + $0x18] sm:$0xff] %v209
  %295 = vst [vmem:[#allocation2 + $0x20] sm:$0xff] %v214
  %296 = vst [vmem:[#allocation2 + $0x28] sm:$0xff] %v217
  %297 = vst [vmem:[#allocation2 + $0x30] sm:$0xff] %v222
  %298 = vst [vmem:[#allocation2 + $0x38] sm:$0xff] %v225
  %299 = vst [vmem:[#allocation2 + $0x40] sm:$0xff] %v230
  %300 = vst [vmem:[#allocation2 + $0x48] sm:$0xff] %v233
  %301 = vst [vmem:[#allocation2 + $0x50] sm:$0xff] %v238
  %302 = vst [vmem:[#allocation2 + $0x58] sm:$0xff] %v241
  %303 = vst [vmem:[#allocation2 + $0x60] sm:$0xff] %v246
  %304 = vst [vmem:[#allocation2 + $0x68] sm:$0xff] %v249
  %305 = vst [vmem:[#allocation2 + $0x70] sm:$0xff] %v254
  %306 = vst [vmem:[#allocation2 + $0x78] sm:$0xff] %v257
  %307 = vst [vmem:[#allocation2 + $0x80] sm:$0xff] %v262
  %308 = vst [vmem:[#allocation2 + $0x88] sm:$0xff] %v265
  %309 = vst [vmem:[#allocation2 + $0x90] sm:$0xff] %v270
  %310 = vst [vmem:[#allocation2 + $0x98] sm:$0xff] %v273
  %311 = vst [vmem:[#allocation2 + $0xa0] sm:$0xff] %v278
  %312 = vst [vmem:[#allocation2 + $0xa8] sm:$0xff] %v281
  %313 = vst [vmem:[#allocation2 + $0xb0] sm:$0xff] %v286
  %v314 = vld [vmem:[%s2] sm:$0xf]
  %v315 = vld [vmem:[%s2 + $0x4] sm:$0xf]
  %v316 = vld [vmem:[%s2 + $0x8] sm:$0xf]
  %v317 = vld [vmem:[%s2 + $0xc] sm:$0xf]
  %v318 = vld [vmem:[#allocation2] sm:$0xff]
  %v323 = vunpack.c.l.b16 %v314
  %v324 = vunpack.c.l.b16 %v315
  %v325 = vunpack.c.l.b16 %v316
  %v326 = vunpack.c.l.b16 %v317
  %v327 = vpack.c.b16 %v324, %v323
  %v328 = vpack.c.b16 %v326, %v325
  %vm331 = vcmask 261120
  %v333 = vsel %vm331, 0, 0
  %335 = vmatprep.subr.bf16.mxu0 0
  %336 = vmatpush1.bf16.msra.mxu0 %v327
  %337 = vmatprep.subr.bf16.mxu0 0
  %338 = vmatpush1.bf16.msra.mxu0 %v328
  %339 = vmatprep.subr.bf16.mxu0 0
  %340 = vmatpush1.bf16.msra.mxu0 0
  %341 = vmatprep.subr.bf16.mxu0 0
  %342 = vmatpush1.bf16.msra.mxu0 0
  %343 = vmatprep.subr.bf16.mxu0 0
  %344 = vmatpush1.bf16.msra.mxu0 0
  %345 = vmatprep.subr.bf16.mxu0 0
  %346 = vmatpush1.bf16.msra.mxu0 0
  %347 = vmatprep.subr.bf16.mxu0 0
  %348 = vmatpush1.bf16.msra.mxu0 0
  %349 = vmatprep.subr.bf16.mxu0 0
  %350 = vmatpush1.bf16.msra.mxu0 0
  %351 = vmatprep.subr.bf16.mxu0 0
  %352 = vmatpush1.bf16.msra.mxu0 0
  %353 = vmatprep.subr.bf16.mxu0 0
  %354 = vmatpush1.bf16.msra.mxu0 0
  %355 = vmatprep.subr.bf16.mxu0 0
  %356 = vmatpush1.bf16.msra.mxu0 0
  %357 = vmatprep.subr.bf16.mxu0 0
  %358 = vmatpush1.bf16.msra.mxu0 0
  %359 = vmatprep.subr.bf16.mxu0 0
  %360 = vmatpush1.bf16.msra.mxu0 0
  %361 = vmatprep.subr.bf16.mxu0 0
  %362 = vmatpush1.bf16.msra.mxu0 0
  %363 = vmatprep.subr.bf16.mxu0 0
  %364 = vmatpush1.bf16.msra.mxu0 0
  %365 = vmatprep.subr.bf16.mxu0 0
  %366 = vmatpush1.bf16.msra.mxu0 0
  %367 = vmatprep.mubr.bf16.mxu0 0
  %368 = vmatmul.mubr.bf16.gmra.mrb[0].mxu0 %v333
  %v369 = vpop.f32.mrb[0].mxu0
  %v370 = vadd.f32 0.0, %v369
  %v371 = vpop.f32.mrb[0].mxu0
  %v372 = vpop.f32.mrb[0].mxu0
  %v373 = vpop.f32.mrb[0].mxu0
  %374 = vdwg.mxu0
  %v375 = vadd.f32 %v318, %v370
  %v376 = vxor.u32 %v375, 2147483648
  %v377 = vmul.f32 %v376, 1.442695
  %v378 = vpow.pop %v377
  %v379 = vadd.f32 %v378, 1.0
  %v380 = vrcp.pop %v379
  %v381 = vmul.f32 1.0, %v380
  %v382 = vtanh.pop %v375
  %v383 = vmul.f32 %v381, 0.0
  %385 = vrot.lane.b32.xlu0 %v382, 64
  %v386 = vpop.permute.xlu0 %385
  %v388 = vmul.f32 %v381, %v386
  %390 = vrot.lane.b32.xlu0 %v388, 32
  %v391 = vpop.permute.xlu0 %390
  %v393 = vadd.f32 %v383, %v391
  %v394 = vtanh.pop %v393
  %396 = vrot.lane.b32.xlu0 %v394, 64
  %v397 = vpop.permute.xlu0 %396
  %v399 = vmul.f32 %v381, %v397
  %v400 = vmax.f32 %v399, 0.0
  %402 = vrot.lane.b32.xlu0 %v400, 32
  %v403 = vpop.permute.xlu0 %402
  %405 = vst.msk [vmem:[#allocation3] sm:$0xff] %vm331, %v403
  %v406 = vld [vmem:[#allocation2 + $0x8] sm:$0xff]
  %v407 = vpack.c.bf16 %v399, %v399
  %409 = vrot.lane.b32.xlu0 %v407, 32
  %v410 = vpop.permute.xlu0 %409
  %v412 = vsel %vm331, %v410, 0
  %414 = vmatprep.subr.bf16.mxu0 0
  %415 = vmatpush1.bf16.msra.mxu0 %v327
  %416 = vmatprep.subr.bf16.mxu0 0
  %417 = vmatpush1.bf16.msra.mxu0 %v328
  %418 = vmatprep.subr.bf16.mxu0 0
  %419 = vmatpush1.bf16.msra.mxu0 0
  %420 = vmatprep.subr.bf16.mxu0 0
  %421 = vmatpush1.bf16.msra.mxu0 0
  %422 = vmatprep.subr.bf16.mxu0 0
  %423 = vmatpush1.bf16.msra.mxu0 0
  %424 = vmatprep.subr.bf16.mxu0 0
  %425 = vmatpush1.bf16.msra.mxu0 0
  %426 = vmatprep.subr.bf16.mxu0 0
  %427 = vmatpush1.bf16.msra.mxu0 0
  %428 = vmatprep.subr.bf16.mxu0 0
  %429 = vmatpush1.bf16.msra.mxu0 0
  %430 = vmatprep.subr.bf16.mxu0 0
  %431 = vmatpush1.bf16.msra.mxu0 0
  %432 = vmatprep.subr.bf16.mxu0 0
  %433 = vmatpush1.bf16.msra.mxu0 0
  %434 = vmatprep.subr.bf16.mxu0 0
  %435 = vmatpush1.bf16.msra.mxu0 0
  %436 = vmatprep.subr.bf16.mxu0 0
  %437 = vmatpush1.bf16.msra.mxu0 0
  %438 = vmatprep.subr.bf16.mxu0 0
  %439 = vmatpush1.bf16.msra.mxu0 0
  %440 = vmatprep.subr.bf16.mxu0 0
  %441 = vmatpush1.bf16.msra.mxu0 0
  %442 = vmatprep.subr.bf16.mxu0 0
  %443 = vmatpush1.bf16.msra.mxu0 0
  %444 = vmatprep.subr.bf16.mxu0 0
  %445 = vmatpush1.bf16.msra.mxu0 0
  %446 = vmatprep.mubr.bf16.mxu0 0
  %447 = vmatmul.mubr.bf16.gmra.mrb[0].mxu0 %v412
  %v448 = vpop.f32.mrb[0].mxu0
  %v449 = vadd.f32 0.0, %v448
  %v450 = vpop.f32.mrb[0].mxu0
  %v451 = vpop.f32.mrb[0].mxu0
  %v452 = vpop.f32.mrb[0].mxu0
  %453 = vdwg.mxu0
  %v454 = vadd.f32 %v406, %v449
  %v455 = vxor.u32 %v454, 2147483648
  %v456 = vmul.f32 %v455, 1.442695
  %v457 = vpow.pop %v456
  %v458 = vadd.f32 %v457, 1.0
  %v459 = vrcp.pop %v458
  %v460 = vmul.f32 1.0, %v459
  %v461 = vtanh.pop %v454
  %v462 = vmul.f32 %v460, %v393
  %464 = vrot.lane.b32.xlu0 %v461, 64
  %v465 = vpop.permute.xlu0 %464
  %v467 = vmul.f32 %v460, %v465
  %469 = vrot.lane.b32.xlu0 %v467, 32
  %v470 = vpop.permute.xlu0 %469
  %v472 = vadd.f32 %v462, %v470
  %v473 = vtanh.pop %v472
  %475 = vrot.lane.b32.xlu0 %v473, 64
  %v476 = vpop.permute.xlu0 %475
  %v478 = vmul.f32 %v460, %v476
  %v479 = vmax.f32 %v478, 0.0
  %481 = vrot.lane.b32.xlu0 %v479, 32
  %v482 = vpop.permute.xlu0 %481
  %484 = vst.msk [vmem:[#allocation3 + $0x8] sm:$0xff] %vm331, %v482
  %v485 = vld [vmem:[#allocation2 + $0x10] sm:$0xff]
  %v486 = vpack.c.bf16 %v478, %v478
  %488 = vrot.lane.b32.xlu0 %v486, 32
  %v489 = vpop.permute.xlu0 %488
  %v491 = vsel %vm331, %v489, 0
  %493 = vmatprep.subr.bf16.mxu0 0
  %494 = vmatpush1.bf16.msra.mxu0 %v327
  %495 = vmatprep.subr.bf16.mxu0 0
  %496 = vmatpush1.bf16.msra.mxu0 %v328
  %497 = vmatprep.subr.bf16.mxu0 0
  %498 = vmatpush1.bf16.msra.mxu0 0
  %499 = vmatprep.subr.bf16.mxu0 0
  %500 = vmatpush1.bf16.msra.mxu0 0
  %501 = vmatprep.subr.bf16.mxu0 0
  %502 = vmatpush1.bf16.msra.mxu0 0
  %503 = vmatprep.subr.bf16.mxu0 0
  %504 = vmatpush1.bf16.msra.mxu0 0
  %505 = vmatprep.subr.bf16.mxu0 0
  %506 = vmatpush1.bf16.msra.mxu0 0
  %507 = vmatprep.subr.bf16.mxu0 0
  %508 = vmatpush1.bf16.msra.mxu0 0
  %509 = vmatprep.subr.bf16.mxu0 0
  %510 = vmatpush1.bf16.msra.mxu0 0
  %511 = vmatprep.subr.bf16.mxu0 0
  %512 = vmatpush1.bf16.msra.mxu0 0
  %513 = vmatprep.subr.bf16.mxu0 0
  %514 = vmatpush1.bf16.msra.mxu0 0
  %515 = vmatprep.subr.bf16.mxu0 0
  %516 = vmatpush1.bf16.msra.mxu0 0
  %517 = vmatprep.subr.bf16.mxu0 0
  %518 = vmatpush1.bf16.msra.mxu0 0
  %519 = vmatprep.subr.bf16.mxu0 0
  %520 = vmatpush1.bf16.msra.mxu0 0
  %521 = vmatprep.subr.bf16.mxu0 0
  %522 = vmatpush1.bf16.msra.mxu0 0
  %523 = vmatprep.subr.bf16.mxu0 0
  %524 = vmatpush1.bf16.msra.mxu0 0
  %525 = vmatprep.mubr.bf16.mxu0 0
  %526 = vmatmul.mubr.bf16.gmra.mrb[0].mxu0 %v491
  %v527 = vpop.f32.mrb[0].mxu0
  %v528 = vadd.f32 0.0, %v527
  %v529 = vpop.f32.mrb[0].mxu0
  %v530 = vpop.f32.mrb[0].mxu0
  %v531 = vpop.f32.mrb[0].mxu0
  %532 = vdwg.mxu0
  %v533 = vadd.f32 %v485, %v528
  %v534 = vxor.u32 %v533, 2147483648
  %v535 = vmul.f32 %v534, 1.442695
  %v536 = vpow.pop %v535
  %v537 = vadd.f32 %v536, 1.0
  %v538 = vrcp.pop %v537
  %v539 = vmul.f32 1.0, %v538
  %v540 = vtanh.pop %v533
  %v541 = vmul.f32 %v539, %v472
  %543 = vrot.lane.b32.xlu0 %v540, 64
  %v544 = vpop.permute.xlu0 %543
  %v546 = vmul.f32 %v539, %v544
  %548 = vrot.lane.b32.xlu0 %v546, 32
  %v549 = vpop.permute.xlu0 %548
  %v551 = vadd.f32 %v541, %v549
  %v552 = vtanh.pop %v551
  %554 = vrot.lane.b32.xlu0 %v552, 64
  %v555 = vpop.permute.xlu0 %554
  %v557 = vmul.f32 %v539, %v555
  %v558 = vmax.f32 %v557, 0.0
  %560 = vrot.lane.b32.xlu0 %v558, 32
  %v561 = vpop.permute.xlu0 %560
  %563 = vst.msk [vmem:[#allocation3 + $0x10] sm:$0xff] %vm331, %v561
  %v564 = vld [vmem:[#allocation2 + $0x18] sm:$0xff]
  %v565 = vpack.c.bf16 %v557, %v557
  %567 = vrot.lane.b32.xlu0 %v565, 32
  %v568 = vpop.permute.xlu0 %567
  %v570 = vsel %vm331, %v568, 0
  %572 = vmatprep.subr.bf16.mxu0 0
  %573 = vmatpush1.bf16.msra.mxu0 %v327
  %574 = vmatprep.subr.bf16.mxu0 0
  %575 = vmatpush1.bf16.msra.mxu0 %v328
  %576 = vmatprep.subr.bf16.mxu0 0
  %577 = vmatpush1.bf16.msra.mxu0 0
  %578 = vmatprep.subr.bf16.mxu0 0
  %579 = vmatpush1.bf16.msra.mxu0 0
  %580 = vmatprep.subr.bf16.mxu0 0
  %581 = vmatpush1.bf16.msra.mxu0 0
  %582 = vmatprep.subr.bf16.mxu0 0
  %583 = vmatpush1.bf16.msra.mxu0 0
  %584 = vmatprep.subr.bf16.mxu0 0
  %585 = vmatpush1.bf16.msra.mxu0 0
  %586 = vmatprep.subr.bf16.mxu0 0
  %587 = vmatpush1.bf16.msra.mxu0 0
  %588 = vmatprep.subr.bf16.mxu0 0
  %589 = vmatpush1.bf16.msra.mxu0 0
  %590 = vmatprep.subr.bf16.mxu0 0
  %591 = vmatpush1.bf16.msra.mxu0 0
  %592 = vmatprep.subr.bf16.mxu0 0
  %593 = vmatpush1.bf16.msra.mxu0 0
  %594 = vmatprep.subr.bf16.mxu0 0
  %595 = vmatpush1.bf16.msra.mxu0 0
  %596 = vmatprep.subr.bf16.mxu0 0
  %597 = vmatpush1.bf16.msra.mxu0 0
  %598 = vmatprep.subr.bf16.mxu0 0
  %599 = vmatpush1.bf16.msra.mxu0 0
  %600 = vmatprep.subr.bf16.mxu0 0
  %601 = vmatpush1.bf16.msra.mxu0 0
  %602 = vmatprep.subr.bf16.mxu0 0
  %603 = vmatpush1.bf16.msra.mxu0 0
  %604 = vmatprep.mubr.bf16.mxu0 0
  %605 = vmatmul.mubr.bf16.gmra.mrb[0].mxu0 %v570
  %v606 = vpop.f32.mrb[0].mxu0
  %v607 = vadd.f32 0.0, %v606
  %v608 = vpop.f32.mrb[0].mxu0
  %v609 = vpop.f32.mrb[0].mxu0
  %v610 = vpop.f32.mrb[0].mxu0
  %611 = vdwg.mxu0
  %v612 = vadd.f32 %v564, %v607
  %v613 = vxor.u32 %v612, 2147483648
  %v614 = vmul.f32 %v613, 1.442695
  %v615 = vpow.pop %v614
  %v616 = vadd.f32 %v615, 1.0
  %v617 = vrcp.pop %v616
  %v618 = vmul.f32 1.0, %v617
  %v619 = vtanh.pop %v612
  %v620 = vmul.f32 %v618, %v551
  %622 = vrot.lane.b32.xlu0 %v619, 64
  %v623 = vpop.permute.xlu0 %622
  %v625 = vmul.f32 %v618, %v623
  %627 = vrot.lane.b32.xlu0 %v625, 32
  %v628 = vpop.permute.xlu0 %627
  %v630 = vadd.f32 %v620, %v628
  %v631 = vtanh.pop %v630
  %633 = vrot.lane.b32.xlu0 %v631, 64
  %v634 = vpop.permute.xlu0 %633
  %v636 = vmul.f32 %v618, %v634
  %v637 = vmax.f32 %v636, 0.0
  %639 = vrot.lane.b32.xlu0 %v637, 32
  %v640 = vpop.permute.xlu0 %639
  %642 = vst.msk [vmem:[#allocation3 + $0x18] sm:$0xff] %vm331, %v640
  %v643 = vld [vmem:[#allocation2 + $0x20] sm:$0xff]
  %v644 = vpack.c.bf16 %v636, %v636
  %646 = vrot.lane.b32.xlu0 %v644, 32
  %v647 = vpop.permute.xlu0 %646
  %v649 = vsel %vm331, %v647, 0
  %651 = vmatprep.subr.bf16.mxu0 0
  %652 = vmatpush1.bf16.msra.mxu0 %v327
  %653 = vmatprep.subr.bf16.mxu0 0
  %654 = vmatpush1.bf16.msra.mxu0 %v328
  %655 = vmatprep.subr.bf16.mxu0 0
  %656 = vmatpush1.bf16.msra.mxu0 0
  %657 = vmatprep.subr.bf16.mxu0 0
  %658 = vmatpush1.bf16.msra.mxu0 0
  %659 = vmatprep.subr.bf16.mxu0 0
  %660 = vmatpush1.bf16.msra.mxu0 0
  %661 = vmatprep.subr.bf16.mxu0 0
  %662 = vmatpush1.bf16.msra.mxu0 0
  %663 = vmatprep.subr.bf16.mxu0 0
  %664 = vmatpush1.bf16.msra.mxu0 0
  %665 = vmatprep.subr.bf16.mxu0 0
  %666 = vmatpush1.bf16.msra.mxu0 0
  %667 = vmatprep.subr.bf16.mxu0 0
  %668 = vmatpush1.bf16.msra.mxu0 0
  %669 = vmatprep.subr.bf16.mxu0 0
  %670 = vmatpush1.bf16.msra.mxu0 0
  %671 = vmatprep.subr.bf16.mxu0 0
  %672 = vmatpush1.bf16.msra.mxu0 0
  %673 = vmatprep.subr.bf16.mxu0 0
  %674 = vmatpush1.bf16.msra.mxu0 0
  %675 = vmatprep.subr.bf16.mxu0 0
  %676 = vmatpush1.bf16.msra.mxu0 0
  %677 = vmatprep.subr.bf16.mxu0 0
  %678 = vmatpush1.bf16.msra.mxu0 0
  %679 = vmatprep.subr.bf16.mxu0 0
  %680 = vmatpush1.bf16.msra.mxu0 0
  %681 = vmatprep.subr.bf16.mxu0 0
  %682 = vmatpush1.bf16.msra.mxu0 0
  %683 = vmatprep.mubr.bf16.mxu0 0
  %684 = vmatmul.mubr.bf16.gmra.mrb[0].mxu0 %v649
  %v685 = vpop.f32.mrb[0].mxu0
  %v686 = vadd.f32 0.0, %v685
  %v687 = vpop.f32.mrb[0].mxu0
  %v688 = vpop.f32.mrb[0].mxu0
  %v689 = vpop.f32.mrb[0].mxu0
  %690 = vdwg.mxu0
  %v691 = vadd.f32 %v643, %v686
  %v692 = vxor.u32 %v691, 2147483648
  %v693 = vmul.f32 %v692, 1.442695
  %v694 = vpow.pop %v693
  %v695 = vadd.f32 %v694, 1.0
  %v696 = vrcp.pop %v695
  %v697 = vmul.f32 1.0, %v696
  %v698 = vtanh.pop %v691
  %v699 = vmul.f32 %v697, %v630
  %701 = vrot.lane.b32.xlu0 %v698, 64
  %v702 = vpop.permute.xlu0 %701
  %v704 = vmul.f32 %v697, %v702
  %706 = vrot.lane.b32.xlu0 %v704, 32
  %v707 = vpop.permute.xlu0 %706
  %v709 = vadd.f32 %v699, %v707
  %v710 = vtanh.pop %v709
  %712 = vrot.lane.b32.xlu0 %v710, 64
  %v713 = vpop.permute.xlu0 %712
  %v715 = vmul.f32 %v697, %v713
  %v716 = vmax.f32 %v715, 0.0
  %718 = vrot.lane.b32.xlu0 %v716, 32
  %v719 = vpop.permute.xlu0 %718
  %721 = vst.msk [vmem:[#allocation3 + $0x20] sm:$0xff] %vm331, %v719
  %v722 = vld [vmem:[#allocation2 + $0x28] sm:$0xff]
  %v723 = vpack.c.bf16 %v715, %v715
  %725 = vrot.lane.b32.xlu0 %v723, 32
  %v726 = vpop.permute.xlu0 %725
  %v728 = vsel %vm331, %v726, 0
  %730 = vmatprep.subr.bf16.mxu0 0
  %731 = vmatpush1.bf16.msra.mxu0 %v327
  %732 = vmatprep.subr.bf16.mxu0 0
  %733 = vmatpush1.bf16.msra.mxu0 %v328
  %734 = vmatprep.subr.bf16.mxu0 0
  %735 = vmatpush1.bf16.msra.mxu0 0
  %736 = vmatprep.subr.bf16.mxu0 0
  %737 = vmatpush1.bf16.msra.mxu0 0
  %738 = vmatprep.subr.bf16.mxu0 0
  %739 = vmatpush1.bf16.msra.mxu0 0
  %740 = vmatprep.subr.bf16.mxu0 0
  %741 = vmatpush1.bf16.msra.mxu0 0
  %742 = vmatprep.subr.bf16.mxu0 0
  %743 = vmatpush1.bf16.msra.mxu0 0
  %744 = vmatprep.subr.bf16.mxu0 0
  %745 = vmatpush1.bf16.msra.mxu0 0
  %746 = vmatprep.subr.bf16.mxu0 0
  %747 = vmatpush1.bf16.msra.mxu0 0
  %748 = vmatprep.subr.bf16.mxu0 0
  %749 = vmatpush1.bf16.msra.mxu0 0
  %750 = vmatprep.subr.bf16.mxu0 0
  %751 = vmatpush1.bf16.msra.mxu0 0
  %752 = vmatprep.subr.bf16.mxu0 0
  %753 = vmatpush1.bf16.msra.mxu0 0
  %754 = vmatprep.subr.bf16.mxu0 0
  %755 = vmatpush1.bf16.msra.mxu0 0
  %756 = vmatprep.subr.bf16.mxu0 0
  %757 = vmatpush1.bf16.msra.mxu0 0
  %758 = vmatprep.subr.bf16.mxu0 0
  %759 = vmatpush1.bf16.msra.mxu0 0
  %760 = vmatprep.subr.bf16.mxu0 0
  %761 = vmatpush1.bf16.msra.mxu0 0
  %762 = vmatprep.mubr.bf16.mxu0 0
  %763 = vmatmul.mubr.bf16.gmra.mrb[0].mxu0 %v728
  %v764 = vpop.f32.mrb[0].mxu0
  %v765 = vadd.f32 0.0, %v764
  %v766 = vpop.f32.mrb[0].mxu0
  %v767 = vpop.f32.mrb[0].mxu0
  %v768 = vpop.f32.mrb[0].mxu0
  %769 = vdwg.mxu0
  %v770 = vadd.f32 %v722, %v765
  %v771 = vxor.u32 %v770, 2147483648
  %v772 = vmul.f32 %v771, 1.442695
  %v773 = vpow.pop %v772
  %v774 = vadd.f32 %v773, 1.0
  %v775 = vrcp.pop %v774
  %v776 = vmul.f32 1.0, %v775
  %v777 = vtanh.pop %v770
  %v778 = vmul.f32 %v776, %v709
  %780 = vrot.lane.b32.xlu0 %v777, 64
  %v781 = vpop.permute.xlu0 %780
  %v783 = vmul.f32 %v776, %v781
  %785 = vrot.lane.b32.xlu0 %v783, 32
  %v786 = vpop.permute.xlu0 %785
  %v788 = vadd.f32 %v778, %v786
  %v789 = vtanh.pop %v788
  %791 = vrot.lane.b32.xlu0 %v789, 64
  %v792 = vpop.permute.xlu0 %791
  %v794 = vmul.f32 %v776, %v792
  %v795 = vmax.f32 %v794, 0.0
  %797 = vrot.lane.b32.xlu0 %v795, 32
  %v798 = vpop.permute.xlu0 %797
  %800 = vst.msk [vmem:[#allocation3 + $0x28] sm:$0xff] %vm331, %v798
  %v801 = vld [vmem:[#allocation2 + $0x30] sm:$0xff]
  %v802 = vpack.c.bf16 %v794, %v794
  %804 = vrot.lane.b32.xlu0 %v802, 32
  %v805 = vpop.permute.xlu0 %804
  %v807 = vsel %vm331, %v805, 0
  %809 = vmatprep.subr.bf16.mxu0 0
  %810 = vmatpush1.bf16.msra.mxu0 %v327
  %811 = vmatprep.subr.bf16.mxu0 0
  %812 = vmatpush1.bf16.msra.mxu0 %v328
  %813 = vmatprep.subr.bf16.mxu0 0
  %814 = vmatpush1.bf16.msra.mxu0 0
  %815 = vmatprep.subr.bf16.mxu0 0
  %816 = vmatpush1.bf16.msra.mxu0 0
  %817 = vmatprep.subr.bf16.mxu0 0
  %818 = vmatpush1.bf16.msra.mxu0 0
  %819 = vmatprep.subr.bf16.mxu0 0
  %820 = vmatpush1.bf16.msra.mxu0 0
  %821 = vmatprep.subr.bf16.mxu0 0
  %822 = vmatpush1.bf16.msra.mxu0 0
  %823 = vmatprep.subr.bf16.mxu0 0
  %824 = vmatpush1.bf16.msra.mxu0 0
  %825 = vmatprep.subr.bf16.mxu0 0
  %826 = vmatpush1.bf16.msra.mxu0 0
  %827 = vmatprep.subr.bf16.mxu0 0
  %828 = vmatpush1.bf16.msra.mxu0 0
  %829 = vmatprep.subr.bf16.mxu0 0
  %830 = vmatpush1.bf16.msra.mxu0 0
  %831 = vmatprep.subr.bf16.mxu0 0
  %832 = vmatpush1.bf16.msra.mxu0 0
  %833 = vmatprep.subr.bf16.mxu0 0
  %834 = vmatpush1.bf16.msra.mxu0 0
  %835 = vmatprep.subr.bf16.mxu0 0
  %836 = vmatpush1.bf16.msra.mxu0 0
  %837 = vmatprep.subr.bf16.mxu0 0
  %838 = vmatpush1.bf16.msra.mxu0 0
  %839 = vmatprep.subr.bf16.mxu0 0
  %840 = vmatpush1.bf16.msra.mxu0 0
  %841 = vmatprep.mubr.bf16.mxu0 0
  %842 = vmatmul.mubr.bf16.gmra.mrb[0].mxu0 %v807
  %v843 = vpop.f32.mrb[0].mxu0
  %v844 = vadd.f32 0.0, %v843
  %v845 = vpop.f32.mrb[0].mxu0
  %v846 = vpop.f32.mrb[0].mxu0
  %v847 = vpop.f32.mrb[0].mxu0
  %848 = vdwg.mxu0
  %v849 = vadd.f32 %v801, %v844
  %v850 = vxor.u32 %v849, 2147483648
  %v851 = vmul.f32 %v850, 1.442695
  %v852 = vpow.pop %v851
  %v853 = vadd.f32 %v852, 1.0
  %v854 = vrcp.pop %v853
  %v855 = vmul.f32 1.0, %v854
  %v856 = vtanh.pop %v849
  %v857 = vmul.f32 %v855, %v788
  %859 = vrot.lane.b32.xlu0 %v856, 64
  %v860 = vpop.permute.xlu0 %859
  %v862 = vmul.f32 %v855, %v860
  %864 = vrot.lane.b32.xlu0 %v862, 32
  %v865 = vpop.permute.xlu0 %864
  %v867 = vadd.f32 %v857, %v865
  %v868 = vtanh.pop %v867
  %870 = vrot.lane.b32.xlu0 %v868, 64
  %v871 = vpop.permute.xlu0 %870
  %v873 = vmul.f32 %v855, %v871
  %v874 = vmax.f32 %v873, 0.0
  %876 = vrot.lane.b32.xlu0 %v874, 32
  %v877 = vpop.permute.xlu0 %876
  %879 = vst.msk [vmem:[#allocation3 + $0x30] sm:$0xff] %vm331, %v877
  %v880 = vld [vmem:[#allocation2 + $0x38] sm:$0xff]
  %v881 = vpack.c.bf16 %v873, %v873
  %883 = vrot.lane.b32.xlu0 %v881, 32
  %v884 = vpop.permute.xlu0 %883
  %v886 = vsel %vm331, %v884, 0
  %888 = vmatprep.subr.bf16.mxu0 0
  %889 = vmatpush1.bf16.msra.mxu0 %v327
  %890 = vmatprep.subr.bf16.mxu0 0
  %891 = vmatpush1.bf16.msra.mxu0 %v328
  %892 = vmatprep.subr.bf16.mxu0 0
  %893 = vmatpush1.bf16.msra.mxu0 0
  %894 = vmatprep.subr.bf16.mxu0 0
  %895 = vmatpush1.bf16.msra.mxu0 0
  %896 = vmatprep.subr.bf16.mxu0 0
  %897 = vmatpush1.bf16.msra.mxu0 0
  %898 = vmatprep.subr.bf16.mxu0 0
  %899 = vmatpush1.bf16.msra.mxu0 0
  %900 = vmatprep.subr.bf16.mxu0 0
  %901 = vmatpush1.bf16.msra.mxu0 0
  %902 = vmatprep.subr.bf16.mxu0 0
  %903 = vmatpush1.bf16.msra.mxu0 0
  %904 = vmatprep.subr.bf16.mxu0 0
  %905 = vmatpush1.bf16.msra.mxu0 0
  %906 = vmatprep.subr.bf16.mxu0 0
  %907 = vmatpush1.bf16.msra.mxu0 0
  %908 = vmatprep.subr.bf16.mxu0 0
  %909 = vmatpush1.bf16.msra.mxu0 0
  %910 = vmatprep.subr.bf16.mxu0 0
  %911 = vmatpush1.bf16.msra.mxu0 0
  %912 = vmatprep.subr.bf16.mxu0 0
  %913 = vmatpush1.bf16.msra.mxu0 0
  %914 = vmatprep.subr.bf16.mxu0 0
  %915 = vmatpush1.bf16.msra.mxu0 0
  %916 = vmatprep.subr.bf16.mxu0 0
  %917 = vmatpush1.bf16.msra.mxu0 0
  %918 = vmatprep.subr.bf16.mxu0 0
  %919 = vmatpush1.bf16.msra.mxu0 0
  %920 = vmatprep.mubr.bf16.mxu0 0
  %921 = vmatmul.mubr.bf16.gmra.mrb[0].mxu0 %v886
  %v922 = vpop.f32.mrb[0].mxu0
  %v923 = vadd.f32 0.0, %v922
  %v924 = vpop.f32.mrb[0].mxu0
  %v925 = vpop.f32.mrb[0].mxu0
  %v926 = vpop.f32.mrb[0].mxu0
  %927 = vdwg.mxu0
  %v928 = vadd.f32 %v880, %v923
  %v929 = vxor.u32 %v928, 2147483648
  %v930 = vmul.f32 %v929, 1.442695
  %v931 = vpow.pop %v930
  %v932 = vadd.f32 %v931, 1.0
  %v933 = vrcp.pop %v932
  %v934 = vmul.f32 1.0, %v933
  %v935 = vtanh.pop %v928
  %v936 = vmul.f32 %v934, %v867
  %938 = vrot.lane.b32.xlu0 %v935, 64
  %v939 = vpop.permute.xlu0 %938
  %v941 = vmul.f32 %v934, %v939
  %943 = vrot.lane.b32.xlu0 %v941, 32
  %v944 = vpop.permute.xlu0 %943
  %v946 = vadd.f32 %v936, %v944
  %v947 = vtanh.pop %v946
  %949 = vrot.lane.b32.xlu0 %v947, 64
  %v950 = vpop.permute.xlu0 %949
  %v952 = vmul.f32 %v934, %v950
  %v953 = vmax.f32 %v952, 0.0
  %955 = vrot.lane.b32.xlu0 %v953, 32
  %v956 = vpop.permute.xlu0 %955
  %958 = vst.msk [vmem:[#allocation3 + $0x38] sm:$0xff] %vm331, %v956
  %v959 = vld [vmem:[#allocation2 + $0x40] sm:$0xff]
  %v960 = vpack.c.bf16 %v952, %v952
  %962 = vrot.lane.b32.xlu0 %v960, 32
  %v963 = vpop.permute.xlu0 %962
  %v965 = vsel %vm331, %v963, 0
  %967 = vmatprep.subr.bf16.mxu0 0
  %968 = vmatpush1.bf16.msra.mxu0 %v327
  %969 = vmatprep.subr.bf16.mxu0 0
  %970 = vmatpush1.bf16.msra.mxu0 %v328
  %971 = vmatprep.subr.bf16.mxu0 0
  %972 = vmatpush1.bf16.msra.mxu0 0
  %973 = vmatprep.subr.bf16.mxu0 0
  %974 = vmatpush1.bf16.msra.mxu0 0
  %975 = vmatprep.subr.bf16.mxu0 0
  %976 = vmatpush1.bf16.msra.mxu0 0
  %977 = vmatprep.subr.bf16.mxu0 0
  %978 = vmatpush1.bf16.msra.mxu0 0
  %979 = vmatprep.subr.bf16.mxu0 0
  %980 = vmatpush1.bf16.msra.mxu0 0
  %981 = vmatprep.subr.bf16.mxu0 0
  %982 = vmatpush1.bf16.msra.mxu0 0
  %983 = vmatprep.subr.bf16.mxu0 0
  %984 = vmatpush1.bf16.msra.mxu0 0
  %985 = vmatprep.subr.bf16.mxu0 0
  %986 = vmatpush1.bf16.msra.mxu0 0
  %987 = vmatprep.subr.bf16.mxu0 0
  %988 = vmatpush1.bf16.msra.mxu0 0
  %989 = vmatprep.subr.bf16.mxu0 0
  %990 = vmatpush1.bf16.msra.mxu0 0
  %991 = vmatprep.subr.bf16.mxu0 0
  %992 = vmatpush1.bf16.msra.mxu0 0
  %993 = vmatprep.subr.bf16.mxu0 0
  %994 = vmatpush1.bf16.msra.mxu0 0
  %995 = vmatprep.subr.bf16.mxu0 0
  %996 = vmatpush1.bf16.msra.mxu0 0
  %997 = vmatprep.subr.bf16.mxu0 0
  %998 = vmatpush1.bf16.msra.mxu0 0
  %999 = vmatprep.mubr.bf16.mxu0 0
  %1000 = vmatmul.mubr.bf16.gmra.mrb[0].mxu0 %v965
  %v1001 = vpop.f32.mrb[0].mxu0
  %v1002 = vadd.f32 0.0, %v1001
  %v1003 = vpop.f32.mrb[0].mxu0
  %v1004 = vpop.f32.mrb[0].mxu0
  %v1005 = vpop.f32.mrb[0].mxu0
  %1006 = vdwg.mxu0
  %v1007 = vadd.f32 %v959, %v1002
  %v1008 = vxor.u32 %v1007, 2147483648
  %v1009 = vmul.f32 %v1008, 1.442695
  %v1010 = vpow.pop %v1009
  %v1011 = vadd.f32 %v1010, 1.0
  %v1012 = vrcp.pop %v1011
  %v1013 = vmul.f32 1.0, %v1012
  %v1014 = vtanh.pop %v1007
  %v1015 = vmul.f32 %v1013, %v946
  %1017 = vrot.lane.b32.xlu0 %v1014, 64
  %v1018 = vpop.permute.xlu0 %1017
  %v1020 = vmul.f32 %v1013, %v1018
  %1022 = vrot.lane.b32.xlu0 %v1020, 32
  %v1023 = vpop.permute.xlu0 %1022
  %v1025 = vadd.f32 %v1015, %v1023
  %v1026 = vtanh.pop %v1025
  %1028 = vrot.lane.b32.xlu0 %v1026, 64
  %v1029 = vpop.permute.xlu0 %1028
  %v1031 = vmul.f32 %v1013, %v1029
  %v1032 = vmax.f32 %v1031, 0.0
  %1034 = vrot.lane.b32.xlu0 %v1032, 32
  %v1035 = vpop.permute.xlu0 %1034
  %1037 = vst.msk [vmem:[#allocation3 + $0x40] sm:$0xff] %vm331, %v1035
  %v1038 = vld [vmem:[#allocation2 + $0x48] sm:$0xff]
  %v1039 = vpack.c.bf16 %v1031, %v1031
  %1041 = vrot.lane.b32.xlu0 %v1039, 32
  %v1042 = vpop.permute.xlu0 %1041
  %v1044 = vsel %vm331, %v1042, 0
  %1046 = vmatprep.subr.bf16.mxu0 0
  %1047 = vmatpush1.bf16.msra.mxu0 %v327
  %1048 = vmatprep.subr.bf16.mxu0 0
  %1049 = vmatpush1.bf16.msra.mxu0 %v328
  %1050 = vmatprep.subr.bf16.mxu0 0
  %1051 = vmatpush1.bf16.msra.mxu0 0
  %1052 = vmatprep.subr.bf16.mxu0 0
  %1053 = vmatpush1.bf16.msra.mxu0 0
  %1054 = vmatprep.subr.bf16.mxu0 0
  %1055 = vmatpush1.bf16.msra.mxu0 0
  %1056 = vmatprep.subr.bf16.mxu0 0
  %1057 = vmatpush1.bf16.msra.mxu0 0
  %1058 = vmatprep.subr.bf16.mxu0 0
  %1059 = vmatpush1.bf16.msra.mxu0 0
  %1060 = vmatprep.subr.bf16.mxu0 0
  %1061 = vmatpush1.bf16.msra.mxu0 0
  %1062 = vmatprep.subr.bf16.mxu0 0
  %1063 = vmatpush1.bf16.msra.mxu0 0
  %1064 = vmatprep.subr.bf16.mxu0 0
  %1065 = vmatpush1.bf16.msra.mxu0 0
  %1066 = vmatprep.subr.bf16.mxu0 0
  %1067 = vmatpush1.bf16.msra.mxu0 0
  %1068 = vmatprep.subr.bf16.mxu0 0
  %1069 = vmatpush1.bf16.msra.mxu0 0
  %1070 = vmatprep.subr.bf16.mxu0 0
  %1071 = vmatpush1.bf16.msra.mxu0 0
  %1072 = vmatprep.subr.bf16.mxu0 0
  %1073 = vmatpush1.bf16.msra.mxu0 0
  %1074 = vmatprep.subr.bf16.mxu0 0
  %1075 = vmatpush1.bf16.msra.mxu0 0
  %1076 = vmatprep.subr.bf16.mxu0 0
  %1077 = vmatpush1.bf16.msra.mxu0 0
  %1078 = vmatprep.mubr.bf16.mxu0 0
  %1079 = vmatmul.mubr.bf16.gmra.mrb[0].mxu0 %v1044
  %v1080 = vpop.f32.mrb[0].mxu0
  %v1081 = vadd.f32 0.0, %v1080
  %v1082 = vpop.f32.mrb[0].mxu0
  %v1083 = vpop.f32.mrb[0].mxu0
  %v1084 = vpop.f32.mrb[0].mxu0
  %1085 = vdwg.mxu0
  %v1086 = vadd.f32 %v1038, %v1081
  %v1087 = vxor.u32 %v1086, 2147483648
  %v1088 = vmul.f32 %v1087, 1.442695
  %v1089 = vpow.pop %v1088
  %v1090 = vadd.f32 %v1089, 1.0
  %v1091 = vrcp.pop %v1090
  %v1092 = vmul.f32 1.0, %v1091
  %v1093 = vtanh.pop %v1086
  %v1094 = vmul.f32 %v1092, %v1025
  %1096 = vrot.lane.b32.xlu0 %v1093, 64
  %v1097 = vpop.permute.xlu0 %1096
  %v1099 = vmul.f32 %v1092, %v1097
  %1101 = vrot.lane.b32.xlu0 %v1099, 32
  %v1102 = vpop.permute.xlu0 %1101
  %v1104 = vadd.f32 %v1094, %v1102
  %v1105 = vtanh.pop %v1104
  %1107 = vrot.lane.b32.xlu0 %v1105, 64
  %v1108 = vpop.permute.xlu0 %1107
  %v1110 = vmul.f32 %v1092, %v1108
  %v1111 = vmax.f32 %v1110, 0.0
  %1113 = vrot.lane.b32.xlu0 %v1111, 32
  %v1114 = vpop.permute.xlu0 %1113
  %1116 = vst.msk [vmem:[#allocation3 + $0x48] sm:$0xff] %vm331, %v1114
  %v1117 = vld [vmem:[#allocation2 + $0x50] sm:$0xff]
  %v1118 = vpack.c.bf16 %v1110, %v1110
  %1120 = vrot.lane.b32.xlu0 %v1118, 32
  %v1121 = vpop.permute.xlu0 %1120
  %v1123 = vsel %vm331, %v1121, 0
  %1125 = vmatprep.subr.bf16.mxu0 0
  %1126 = vmatpush1.bf16.msra.mxu0 %v327
  %1127 = vmatprep.subr.bf16.mxu0 0
  %1128 = vmatpush1.bf16.msra.mxu0 %v328
  %1129 = vmatprep.subr.bf16.mxu0 0
  %1130 = vmatpush1.bf16.msra.mxu0 0
  %1131 = vmatprep.subr.bf16.mxu0 0
  %1132 = vmatpush1.bf16.msra.mxu0 0
  %1133 = vmatprep.subr.bf16.mxu0 0
  %1134 = vmatpush1.bf16.msra.mxu0 0
  %1135 = vmatprep.subr.bf16.mxu0 0
  %1136 = vmatpush1.bf16.msra.mxu0 0
  %1137 = vmatprep.subr.bf16.mxu0 0
  %1138 = vmatpush1.bf16.msra.mxu0 0
  %1139 = vmatprep.subr.bf16.mxu0 0
  %1140 = vmatpush1.bf16.msra.mxu0 0
  %1141 = vmatprep.subr.bf16.mxu0 0
  %1142 = vmatpush1.bf16.msra.mxu0 0
  %1143 = vmatprep.subr.bf16.mxu0 0
  %1144 = vmatpush1.bf16.msra.mxu0 0
  %1145 = vmatprep.subr.bf16.mxu0 0
  %1146 = vmatpush1.bf16.msra.mxu0 0
  %1147 = vmatprep.subr.bf16.mxu0 0
  %1148 = vmatpush1.bf16.msra.mxu0 0
  %1149 = vmatprep.subr.bf16.mxu0 0
  %1150 = vmatpush1.bf16.msra.mxu0 0
  %1151 = vmatprep.subr.bf16.mxu0 0
  %1152 = vmatpush1.bf16.msra.mxu0 0
  %1153 = vmatprep.subr.bf16.mxu0 0
  %1154 = vmatpush1.bf16.msra.mxu0 0
  %1155 = vmatprep.subr.bf16.mxu0 0
  %1156 = vmatpush1.bf16.msra.mxu0 0
  %1157 = vmatprep.mubr.bf16.mxu0 0
  %1158 = vmatmul.mubr.bf16.gmra.mrb[0].mxu0 %v1123
  %v1159 = vpop.f32.mrb[0].mxu0
  %v1160 = vadd.f32 0.0, %v1159
  %v1161 = vpop.f32.mrb[0].mxu0
  %v1162 = vpop.f32.mrb[0].mxu0
  %v1163 = vpop.f32.mrb[0].mxu0
  %1164 = vdwg.mxu0
  %v1165 = vadd.f32 %v1117, %v1160
  %v1166 = vxor.u32 %v1165, 2147483648
  %v1167 = vmul.f32 %v1166, 1.442695
  %v1168 = vpow.pop %v1167
  %v1169 = vadd.f32 %v1168, 1.0
  %v1170 = vrcp.pop %v1169
  %v1171 = vmul.f32 1.0, %v1170
  %v1172 = vtanh.pop %v1165
  %v1173 = vmul.f32 %v1171, %v1104
  %1175 = vrot.lane.b32.xlu0 %v1172, 64
  %v1176 = vpop.permute.xlu0 %1175
  %v1178 = vmul.f32 %v1171, %v1176
  %1180 = vrot.lane.b32.xlu0 %v1178, 32
  %v1181 = vpop.permute.xlu0 %1180
  %v1183 = vadd.f32 %v1173, %v1181
  %v1184 = vtanh.pop %v1183
  %1186 = vrot.lane.b32.xlu0 %v1184, 64
  %v1187 = vpop.permute.xlu0 %1186
  %v1189 = vmul.f32 %v1171, %v1187
  %v1190 = vmax.f32 %v1189, 0.0
  %1192 = vrot.lane.b32.xlu0 %v1190, 32
  %v1193 = vpop.permute.xlu0 %1192
  %1195 = vst.msk [vmem:[#allocation3 + $0x50] sm:$0xff] %vm331, %v1193
  %v1196 = vld [vmem:[#allocation2 + $0x58] sm:$0xff]
  %v1197 = vpack.c.bf16 %v1189, %v1189
  %1199 = vrot.lane.b32.xlu0 %v1197, 32
  %v1200 = vpop.permute.xlu0 %1199
  %v1202 = vsel %vm331, %v1200, 0
  %1204 = vmatprep.subr.bf16.mxu0 0
  %1205 = vmatpush1.bf16.msra.mxu0 %v327
  %1206 = vmatprep.subr.bf16.mxu0 0
  %1207 = vmatpush1.bf16.msra.mxu0 %v328
  %1208 = vmatprep.subr.bf16.mxu0 0
  %1209 = vmatpush1.bf16.msra.mxu0 0
  %1210 = vmatprep.subr.bf16.mxu0 0
  %1211 = vmatpush1.bf16.msra.mxu0 0
  %1212 = vmatprep.subr.bf16.mxu0 0
  %1213 = vmatpush1.bf16.msra.mxu0 0
  %1214 = vmatprep.subr.bf16.mxu0 0
  %1215 = vmatpush1.bf16.msra.mxu0 0
  %1216 = vmatprep.subr.bf16.mxu0 0
  %1217 = vmatpush1.bf16.msra.mxu0 0
  %1218 = vmatprep.subr.bf16.mxu0 0
  %1219 = vmatpush1.bf16.msra.mxu0 0
  %1220 = vmatprep.subr.bf16.mxu0 0
  %1221 = vmatpush1.bf16.msra.mxu0 0
  %1222 = vmatprep.subr.bf16.mxu0 0
  %1223 = vmatpush1.bf16.msra.mxu0 0
  %1224 = vmatprep.subr.bf16.mxu0 0
  %1225 = vmatpush1.bf16.msra.mxu0 0
  %1226 = vmatprep.subr.bf16.mxu0 0
  %1227 = vmatpush1.bf16.msra.mxu0 0
  %1228 = vmatprep.subr.bf16.mxu0 0
  %1229 = vmatpush1.bf16.msra.mxu0 0
  %1230 = vmatprep.subr.bf16.mxu0 0
  %1231 = vmatpush1.bf16.msra.mxu0 0
  %1232 = vmatprep.subr.bf16.mxu0 0
  %1233 = vmatpush1.bf16.msra.mxu0 0
  %1234 = vmatprep.subr.bf16.mxu0 0
  %1235 = vmatpush1.bf16.msra.mxu0 0
  %1236 = vmatprep.mubr.bf16.mxu0 0
  %1237 = vmatmul.mubr.bf16.gmra.mrb[0].mxu0 %v1202
  %v1238 = vpop.f32.mrb[0].mxu0
  %v1239 = vadd.f32 0.0, %v1238
  %v1240 = vpop.f32.mrb[0].mxu0
  %v1241 = vpop.f32.mrb[0].mxu0
  %v1242 = vpop.f32.mrb[0].mxu0
  %1243 = vdwg.mxu0
  %v1244 = vadd.f32 %v1196, %v1239
  %v1245 = vxor.u32 %v1244, 2147483648
  %v1246 = vmul.f32 %v1245, 1.442695
  %v1247 = vpow.pop %v1246
  %v1248 = vadd.f32 %v1247, 1.0
  %v1249 = vrcp.pop %v1248
  %v1250 = vmul.f32 1.0, %v1249
  %v1251 = vtanh.pop %v1244
  %v1252 = vmul.f32 %v1250, %v1183
  %1254 = vrot.lane.b32.xlu0 %v1251, 64
  %v1255 = vpop.permute.xlu0 %1254
  %v1257 = vmul.f32 %v1250, %v1255
  %1259 = vrot.lane.b32.xlu0 %v1257, 32
  %v1260 = vpop.permute.xlu0 %1259
  %v1262 = vadd.f32 %v1252, %v1260
  %v1263 = vtanh.pop %v1262
  %1265 = vrot.lane.b32.xlu0 %v1263, 64
  %v1266 = vpop.permute.xlu0 %1265
  %v1268 = vmul.f32 %v1250, %v1266
  %v1269 = vmax.f32 %v1268, 0.0
  %1271 = vrot.lane.b32.xlu0 %v1269, 32
  %v1272 = vpop.permute.xlu0 %1271
  %1274 = vst.msk [vmem:[#allocation3 + $0x58] sm:$0xff] %vm331, %v1272
  %v1275 = vld [vmem:[#allocation2 + $0x60] sm:$0xff]
  %v1276 = vpack.c.bf16 %v1268, %v1268
  %1278 = vrot.lane.b32.xlu0 %v1276, 32
  %v1279 = vpop.permute.xlu0 %1278
  %v1281 = vsel %vm331, %v1279, 0
  %1283 = vmatprep.subr.bf16.mxu0 0
  %1284 = vmatpush1.bf16.msra.mxu0 %v327
  %1285 = vmatprep.subr.bf16.mxu0 0
  %1286 = vmatpush1.bf16.msra.mxu0 %v328
  %1287 = vmatprep.subr.bf16.mxu0 0
  %1288 = vmatpush1.bf16.msra.mxu0 0
  %1289 = vmatprep.subr.bf16.mxu0 0
  %1290 = vmatpush1.bf16.msra.mxu0 0
  %1291 = vmatprep.subr.bf16.mxu0 0
  %1292 = vmatpush1.bf16.msra.mxu0 0
  %1293 = vmatprep.subr.bf16.mxu0 0
  %1294 = vmatpush1.bf16.msra.mxu0 0
  %1295 = vmatprep.subr.bf16.mxu0 0
  %1296 = vmatpush1.bf16.msra.mxu0 0
  %1297 = vmatprep.subr.bf16.mxu0 0
  %1298 = vmatpush1.bf16.msra.mxu0 0
  %1299 = vmatprep.subr.bf16.mxu0 0
  %1300 = vmatpush1.bf16.msra.mxu0 0
  %1301 = vmatprep.subr.bf16.mxu0 0
  %1302 = vmatpush1.bf16.msra.mxu0 0
  %1303 = vmatprep.subr.bf16.mxu0 0
  %1304 = vmatpush1.bf16.msra.mxu0 0
  %1305 = vmatprep.subr.bf16.mxu0 0
  %1306 = vmatpush1.bf16.msra.mxu0 0
  %1307 = vmatprep.subr.bf16.mxu0 0
  %1308 = vmatpush1.bf16.msra.mxu0 0
  %1309 = vmatprep.subr.bf16.mxu0 0
  %1310 = vmatpush1.bf16.msra.mxu0 0
  %1311 = vmatprep.subr.bf16.mxu0 0
  %1312 = vmatpush1.bf16.msra.mxu0 0
  %1313 = vmatprep.subr.bf16.mxu0 0
  %1314 = vmatpush1.bf16.msra.mxu0 0
  %1315 = vmatprep.mubr.bf16.mxu0 0
  %1316 = vmatmul.mubr.bf16.gmra.mrb[0].mxu0 %v1281
  %v1317 = vpop.f32.mrb[0].mxu0
  %v1318 = vadd.f32 0.0, %v1317
  %v1319 = vpop.f32.mrb[0].mxu0
  %v1320 = vpop.f32.mrb[0].mxu0
  %v1321 = vpop.f32.mrb[0].mxu0
  %1322 = vdwg.mxu0
  %v1323 = vadd.f32 %v1275, %v1318
  %v1324 = vxor.u32 %v1323, 2147483648
  %v1325 = vmul.f32 %v1324, 1.442695
  %v1326 = vpow.pop %v1325
  %v1327 = vadd.f32 %v1326, 1.0
  %v1328 = vrcp.pop %v1327
  %v1329 = vmul.f32 1.0, %v1328
  %v1330 = vtanh.pop %v1323
  %v1331 = vmul.f32 %v1329, %v1262
  %1333 = vrot.lane.b32.xlu0 %v1330, 64
  %v1334 = vpop.permute.xlu0 %1333
  %v1336 = vmul.f32 %v1329, %v1334
  %1338 = vrot.lane.b32.xlu0 %v1336, 32
  %v1339 = vpop.permute.xlu0 %1338
  %v1341 = vadd.f32 %v1331, %v1339
  %v1342 = vtanh.pop %v1341
  %1344 = vrot.lane.b32.xlu0 %v1342, 64
  %v1345 = vpop.permute.xlu0 %1344
  %v1347 = vmul.f32 %v1329, %v1345
  %v1348 = vmax.f32 %v1347, 0.0
  %1350 = vrot.lane.b32.xlu0 %v1348, 32
  %v1351 = vpop.permute.xlu0 %1350
  %1353 = vst.msk [vmem:[#allocation3 + $0x60] sm:$0xff] %vm331, %v1351
  %v1354 = vld [vmem:[#allocation2 + $0x68] sm:$0xff]
  %v1355 = vpack.c.bf16 %v1347, %v1347
  %1357 = vrot.lane.b32.xlu0 %v1355, 32
  %v1358 = vpop.permute.xlu0 %1357
  %v1360 = vsel %vm331, %v1358, 0
  %1362 = vmatprep.subr.bf16.mxu0 0
  %1363 = vmatpush1.bf16.msra.mxu0 %v327
  %1364 = vmatprep.subr.bf16.mxu0 0
  %1365 = vmatpush1.bf16.msra.mxu0 %v328
  %1366 = vmatprep.subr.bf16.mxu0 0
  %1367 = vmatpush1.bf16.msra.mxu0 0
  %1368 = vmatprep.subr.bf16.mxu0 0
  %1369 = vmatpush1.bf16.msra.mxu0 0
  %1370 = vmatprep.subr.bf16.mxu0 0
  %1371 = vmatpush1.bf16.msra.mxu0 0
  %1372 = vmatprep.subr.bf16.mxu0 0
  %1373 = vmatpush1.bf16.msra.mxu0 0
  %1374 = vmatprep.subr.bf16.mxu0 0
  %1375 = vmatpush1.bf16.msra.mxu0 0
  %1376 = vmatprep.subr.bf16.mxu0 0
  %1377 = vmatpush1.bf16.msra.mxu0 0
  %1378 = vmatprep.subr.bf16.mxu0 0
  %1379 = vmatpush1.bf16.msra.mxu0 0
  %1380 = vmatprep.subr.bf16.mxu0 0
  %1381 = vmatpush1.bf16.msra.mxu0 0
  %1382 = vmatprep.subr.bf16.mxu0 0
  %1383 = vmatpush1.bf16.msra.mxu0 0
  %1384 = vmatprep.subr.bf16.mxu0 0
  %1385 = vmatpush1.bf16.msra.mxu0 0
  %1386 = vmatprep.subr.bf16.mxu0 0
  %1387 = vmatpush1.bf16.msra.mxu0 0
  %1388 = vmatprep.subr.bf16.mxu0 0
  %1389 = vmatpush1.bf16.msra.mxu0 0
  %1390 = vmatprep.subr.bf16.mxu0 0
  %1391 = vmatpush1.bf16.msra.mxu0 0
  %1392 = vmatprep.subr.bf16.mxu0 0
  %1393 = vmatpush1.bf16.msra.mxu0 0
  %1394 = vmatprep.mubr.bf16.mxu0 0
  %1395 = vmatmul.mubr.bf16.gmra.mrb[0].mxu0 %v1360
  %v1396 = vpop.f32.mrb[0].mxu0
  %v1397 = vadd.f32 0.0, %v1396
  %v1398 = vpop.f32.mrb[0].mxu0
  %v1399 = vpop.f32.mrb[0].mxu0
  %v1400 = vpop.f32.mrb[0].mxu0
  %1401 = vdwg.mxu0
  %v1402 = vadd.f32 %v1354, %v1397
  %v1403 = vxor.u32 %v1402, 2147483648
  %v1404 = vmul.f32 %v1403, 1.442695
  %v1405 = vpow.pop %v1404
  %v1406 = vadd.f32 %v1405, 1.0
  %v1407 = vrcp.pop %v1406
  %v1408 = vmul.f32 1.0, %v1407
  %v1409 = vtanh.pop %v1402
  %v1410 = vmul.f32 %v1408, %v1341
  %1412 = vrot.lane.b32.xlu0 %v1409, 64
  %v1413 = vpop.permute.xlu0 %1412
  %v1415 = vmul.f32 %v1408, %v1413
  %1417 = vrot.lane.b32.xlu0 %v1415, 32
  %v1418 = vpop.permute.xlu0 %1417
  %v1420 = vadd.f32 %v1410, %v1418
  %v1421 = vtanh.pop %v1420
  %1423 = vrot.lane.b32.xlu0 %v1421, 64
  %v1424 = vpop.permute.xlu0 %1423
  %v1426 = vmul.f32 %v1408, %v1424
  %v1427 = vmax.f32 %v1426, 0.0
  %1429 = vrot.lane.b32.xlu0 %v1427, 32
  %v1430 = vpop.permute.xlu0 %1429
  %1432 = vst.msk [vmem:[#allocation3 + $0x68] sm:$0xff] %vm331, %v1430
  %v1433 = vld [vmem:[#allocation2 + $0x70] sm:$0xff]
  %v1434 = vpack.c.bf16 %v1426, %v1426
  %1436 = vrot.lane.b32.xlu0 %v1434, 32
  %v1437 = vpop.permute.xlu0 %1436
  %v1439 = vsel %vm331, %v1437, 0
  %1441 = vmatprep.subr.bf16.mxu0 0
  %1442 = vmatpush1.bf16.msra.mxu0 %v327
  %1443 = vmatprep.subr.bf16.mxu0 0
  %1444 = vmatpush1.bf16.msra.mxu0 %v328
  %1445 = vmatprep.subr.bf16.mxu0 0
  %1446 = vmatpush1.bf16.msra.mxu0 0
  %1447 = vmatprep.subr.bf16.mxu0 0
  %1448 = vmatpush1.bf16.msra.mxu0 0
  %1449 = vmatprep.subr.bf16.mxu0 0
  %1450 = vmatpush1.bf16.msra.mxu0 0
  %1451 = vmatprep.subr.bf16.mxu0 0
  %1452 = vmatpush1.bf16.msra.mxu0 0
  %1453 = vmatprep.subr.bf16.mxu0 0
  %1454 = vmatpush1.bf16.msra.mxu0 0
  %1455 = vmatprep.subr.bf16.mxu0 0
  %1456 = vmatpush1.bf16.msra.mxu0 0
  %1457 = vmatprep.subr.bf16.mxu0 0
  %1458 = vmatpush1.bf16.msra.mxu0 0
  %1459 = vmatprep.subr.bf16.mxu0 0
  %1460 = vmatpush1.bf16.msra.mxu0 0
  %1461 = vmatprep.subr.bf16.mxu0 0
  %1462 = vmatpush1.bf16.msra.mxu0 0
  %1463 = vmatprep.subr.bf16.mxu0 0
  %1464 = vmatpush1.bf16.msra.mxu0 0
  %1465 = vmatprep.subr.bf16.mxu0 0
  %1466 = vmatpush1.bf16.msra.mxu0 0
  %1467 = vmatprep.subr.bf16.mxu0 0
  %1468 = vmatpush1.bf16.msra.mxu0 0
  %1469 = vmatprep.subr.bf16.mxu0 0
  %1470 = vmatpush1.bf16.msra.mxu0 0
  %1471 = vmatprep.subr.bf16.mxu0 0
  %1472 = vmatpush1.bf16.msra.mxu0 0
  %1473 = vmatprep.mubr.bf16.mxu0 0
  %1474 = vmatmul.mubr.bf16.gmra.mrb[0].mxu0 %v1439
  %v1475 = vpop.f32.mrb[0].mxu0
  %v1476 = vadd.f32 0.0, %v1475
  %v1477 = vpop.f32.mrb[0].mxu0
  %v1478 = vpop.f32.mrb[0].mxu0
  %v1479 = vpop.f32.mrb[0].mxu0
  %1480 = vdwg.mxu0
  %v1481 = vadd.f32 %v1433, %v1476
  %v1482 = vxor.u32 %v1481, 2147483648
  %v1483 = vmul.f32 %v1482, 1.442695
  %v1484 = vpow.pop %v1483
  %v1485 = vadd.f32 %v1484, 1.0
  %v1486 = vrcp.pop %v1485
  %v1487 = vmul.f32 1.0, %v1486
  %v1488 = vtanh.pop %v1481
  %v1489 = vmul.f32 %v1487, %v1420
  %1491 = vrot.lane.b32.xlu0 %v1488, 64
  %v1492 = vpop.permute.xlu0 %1491
  %v1494 = vmul.f32 %v1487, %v1492
  %1496 = vrot.lane.b32.xlu0 %v1494, 32
  %v1497 = vpop.permute.xlu0 %1496
  %v1499 = vadd.f32 %v1489, %v1497
  %v1500 = vtanh.pop %v1499
  %1502 = vrot.lane.b32.xlu0 %v1500, 64
  %v1503 = vpop.permute.xlu0 %1502
  %v1505 = vmul.f32 %v1487, %v1503
  %v1506 = vmax.f32 %v1505, 0.0
  %1508 = vrot.lane.b32.xlu0 %v1506, 32
  %v1509 = vpop.permute.xlu0 %1508
  %1511 = vst.msk [vmem:[#allocation3 + $0x70] sm:$0xff] %vm331, %v1509
  %v1512 = vld [vmem:[#allocation2 + $0x78] sm:$0xff]
  %v1513 = vpack.c.bf16 %v1505, %v1505
  %1515 = vrot.lane.b32.xlu0 %v1513, 32
  %v1516 = vpop.permute.xlu0 %1515
  %v1518 = vsel %vm331, %v1516, 0
  %1520 = vmatprep.subr.bf16.mxu0 0
  %1521 = vmatpush1.bf16.msra.mxu0 %v327
  %1522 = vmatprep.subr.bf16.mxu0 0
  %1523 = vmatpush1.bf16.msra.mxu0 %v328
  %1524 = vmatprep.subr.bf16.mxu0 0
  %1525 = vmatpush1.bf16.msra.mxu0 0
  %1526 = vmatprep.subr.bf16.mxu0 0
  %1527 = vmatpush1.bf16.msra.mxu0 0
  %1528 = vmatprep.subr.bf16.mxu0 0
  %1529 = vmatpush1.bf16.msra.mxu0 0
  %1530 = vmatprep.subr.bf16.mxu0 0
  %1531 = vmatpush1.bf16.msra.mxu0 0
  %1532 = vmatprep.subr.bf16.mxu0 0
  %1533 = vmatpush1.bf16.msra.mxu0 0
  %1534 = vmatprep.subr.bf16.mxu0 0
  %1535 = vmatpush1.bf16.msra.mxu0 0
  %1536 = vmatprep.subr.bf16.mxu0 0
  %1537 = vmatpush1.bf16.msra.mxu0 0
  %1538 = vmatprep.subr.bf16.mxu0 0
  %1539 = vmatpush1.bf16.msra.mxu0 0
  %1540 = vmatprep.subr.bf16.mxu0 0
  %1541 = vmatpush1.bf16.msra.mxu0 0
  %1542 = vmatprep.subr.bf16.mxu0 0
  %1543 = vmatpush1.bf16.msra.mxu0 0
  %1544 = vmatprep.subr.bf16.mxu0 0
  %1545 = vmatpush1.bf16.msra.mxu0 0
  %1546 = vmatprep.subr.bf16.mxu0 0
  %1547 = vmatpush1.bf16.msra.mxu0 0
  %1548 = vmatprep.subr.bf16.mxu0 0
  %1549 = vmatpush1.bf16.msra.mxu0 0
  %1550 = vmatprep.subr.bf16.mxu0 0
  %1551 = vmatpush1.bf16.msra.mxu0 0
  %1552 = vmatprep.mubr.bf16.mxu0 0
  %1553 = vmatmul.mubr.bf16.gmra.mrb[0].mxu0 %v1518
  %v1554 = vpop.f32.mrb[0].mxu0
  %v1555 = vadd.f32 0.0, %v1554
  %v1556 = vpop.f32.mrb[0].mxu0
  %v1557 = vpop.f32.mrb[0].mxu0
  %v1558 = vpop.f32.mrb[0].mxu0
  %1559 = vdwg.mxu0
  %v1560 = vadd.f32 %v1512, %v1555
  %v1561 = vxor.u32 %v1560, 2147483648
  %v1562 = vmul.f32 %v1561, 1.442695
  %v1563 = vpow.pop %v1562
  %v1564 = vadd.f32 %v1563, 1.0
  %v1565 = vrcp.pop %v1564
  %v1566 = vmul.f32 1.0, %v1565
  %v1567 = vtanh.pop %v1560
  %v1568 = vmul.f32 %v1566, %v1499
  %1570 = vrot.lane.b32.xlu0 %v1567, 64
  %v1571 = vpop.permute.xlu0 %1570
  %v1573 = vmul.f32 %v1566, %v1571
  %1575 = vrot.lane.b32.xlu0 %v1573, 32
  %v1576 = vpop.permute.xlu0 %1575
  %v1578 = vadd.f32 %v1568, %v1576
  %v1579 = vtanh.pop %v1578
  %1581 = vrot.lane.b32.xlu0 %v1579, 64
  %v1582 = vpop.permute.xlu0 %1581
  %v1584 = vmul.f32 %v1566, %v1582
  %v1585 = vmax.f32 %v1584, 0.0
  %1587 = vrot.lane.b32.xlu0 %v1585, 32
  %v1588 = vpop.permute.xlu0 %1587
  %1590 = vst.msk [vmem:[#allocation3 + $0x78] sm:$0xff] %vm331, %v1588
  %v1591 = vld [vmem:[#allocation2 + $0x80] sm:$0xff]
  %v1592 = vpack.c.bf16 %v1584, %v1584
  %1594 = vrot.lane.b32.xlu0 %v1592, 32
  %v1595 = vpop.permute.xlu0 %1594
  %v1597 = vsel %vm331, %v1595, 0
  %1599 = vmatprep.subr.bf16.mxu0 0
  %1600 = vmatpush1.bf16.msra.mxu0 %v327
  %1601 = vmatprep.subr.bf16.mxu0 0
  %1602 = vmatpush1.bf16.msra.mxu0 %v328
  %1603 = vmatprep.subr.bf16.mxu0 0
  %1604 = vmatpush1.bf16.msra.mxu0 0
  %1605 = vmatprep.subr.bf16.mxu0 0
  %1606 = vmatpush1.bf16.msra.mxu0 0
  %1607 = vmatprep.subr.bf16.mxu0 0
  %1608 = vmatpush1.bf16.msra.mxu0 0
  %1609 = vmatprep.subr.bf16.mxu0 0
  %1610 = vmatpush1.bf16.msra.mxu0 0
  %1611 = vmatprep.subr.bf16.mxu0 0
  %1612 = vmatpush1.bf16.msra.mxu0 0
  %1613 = vmatprep.subr.bf16.mxu0 0
  %1614 = vmatpush1.bf16.msra.mxu0 0
  %1615 = vmatprep.subr.bf16.mxu0 0
  %1616 = vmatpush1.bf16.msra.mxu0 0
  %1617 = vmatprep.subr.bf16.mxu0 0
  %1618 = vmatpush1.bf16.msra.mxu0 0
  %1619 = vmatprep.subr.bf16.mxu0 0
  %1620 = vmatpush1.bf16.msra.mxu0 0
  %1621 = vmatprep.subr.bf16.mxu0 0
  %1622 = vmatpush1.bf16.msra.mxu0 0
  %1623 = vmatprep.subr.bf16.mxu0 0
  %1624 = vmatpush1.bf16.msra.mxu0 0
  %1625 = vmatprep.subr.bf16.mxu0 0
  %1626 = vmatpush1.bf16.msra.mxu0 0
  %1627 = vmatprep.subr.bf16.mxu0 0
  %1628 = vmatpush1.bf16.msra.mxu0 0
  %1629 = vmatprep.subr.bf16.mxu0 0
  %1630 = vmatpush1.bf16.msra.mxu0 0
  %1631 = vmatprep.mubr.bf16.mxu0 0
  %1632 = vmatmul.mubr.bf16.gmra.mrb[0].mxu0 %v1597
  %v1633 = vpop.f32.mrb[0].mxu0
  %v1634 = vadd.f32 0.0, %v1633
  %v1635 = vpop.f32.mrb[0].mxu0
  %v1636 = vpop.f32.mrb[0].mxu0
  %v1637 = vpop.f32.mrb[0].mxu0
  %1638 = vdwg.mxu0
  %v1639 = vadd.f32 %v1591, %v1634
  %v1640 = vxor.u32 %v1639, 2147483648
  %v1641 = vmul.f32 %v1640, 1.442695
  %v1642 = vpow.pop %v1641
  %v1643 = vadd.f32 %v1642, 1.0
  %v1644 = vrcp.pop %v1643
  %v1645 = vmul.f32 1.0, %v1644
  %v1646 = vtanh.pop %v1639
  %v1647 = vmul.f32 %v1645, %v1578
  %1649 = vrot.lane.b32.xlu0 %v1646, 64
  %v1650 = vpop.permute.xlu0 %1649
  %v1652 = vmul.f32 %v1645, %v1650
  %1654 = vrot.lane.b32.xlu0 %v1652, 32
  %v1655 = vpop.permute.xlu0 %1654
  %v1657 = vadd.f32 %v1647, %v1655
  %v1658 = vtanh.pop %v1657
  %1660 = vrot.lane.b32.xlu0 %v1658, 64
  %v1661 = vpop.permute.xlu0 %1660
  %v1663 = vmul.f32 %v1645, %v1661
  %v1664 = vmax.f32 %v1663, 0.0
  %1666 = vrot.lane.b32.xlu0 %v1664, 32
  %v1667 = vpop.permute.xlu0 %1666
  %1669 = vst.msk [vmem:[#allocation3 + $0x80] sm:$0xff] %vm331, %v1667
  %v1670 = vld [vmem:[#allocation2 + $0x88] sm:$0xff]
  %v1671 = vpack.c.bf16 %v1663, %v1663
  %1673 = vrot.lane.b32.xlu0 %v1671, 32
  %v1674 = vpop.permute.xlu0 %1673
  %v1676 = vsel %vm331, %v1674, 0
  %1678 = vmatprep.subr.bf16.mxu0 0
  %1679 = vmatpush1.bf16.msra.mxu0 %v327
  %1680 = vmatprep.subr.bf16.mxu0 0
  %1681 = vmatpush1.bf16.msra.mxu0 %v328
  %1682 = vmatprep.subr.bf16.mxu0 0
  %1683 = vmatpush1.bf16.msra.mxu0 0
  %1684 = vmatprep.subr.bf16.mxu0 0
  %1685 = vmatpush1.bf16.msra.mxu0 0
  %1686 = vmatprep.subr.bf16.mxu0 0
  %1687 = vmatpush1.bf16.msra.mxu0 0
  %1688 = vmatprep.subr.bf16.mxu0 0
  %1689 = vmatpush1.bf16.msra.mxu0 0
  %1690 = vmatprep.subr.bf16.mxu0 0
  %1691 = vmatpush1.bf16.msra.mxu0 0
  %1692 = vmatprep.subr.bf16.mxu0 0
  %1693 = vmatpush1.bf16.msra.mxu0 0
  %1694 = vmatprep.subr.bf16.mxu0 0
  %1695 = vmatpush1.bf16.msra.mxu0 0
  %1696 = vmatprep.subr.bf16.mxu0 0
  %1697 = vmatpush1.bf16.msra.mxu0 0
  %1698 = vmatprep.subr.bf16.mxu0 0
  %1699 = vmatpush1.bf16.msra.mxu0 0
  %1700 = vmatprep.subr.bf16.mxu0 0
  %1701 = vmatpush1.bf16.msra.mxu0 0
  %1702 = vmatprep.subr.bf16.mxu0 0
  %1703 = vmatpush1.bf16.msra.mxu0 0
  %1704 = vmatprep.subr.bf16.mxu0 0
  %1705 = vmatpush1.bf16.msra.mxu0 0
  %1706 = vmatprep.subr.bf16.mxu0 0
  %1707 = vmatpush1.bf16.msra.mxu0 0
  %1708 = vmatprep.subr.bf16.mxu0 0
  %1709 = vmatpush1.bf16.msra.mxu0 0
  %1710 = vmatprep.mubr.bf16.mxu0 0
  %1711 = vmatmul.mubr.bf16.gmra.mrb[0].mxu0 %v1676
  %v1712 = vpop.f32.mrb[0].mxu0
  %v1713 = vadd.f32 0.0, %v1712
  %v1714 = vpop.f32.mrb[0].mxu0
  %v1715 = vpop.f32.mrb[0].mxu0
  %v1716 = vpop.f32.mrb[0].mxu0
  %1717 = vdwg.mxu0
  %v1718 = vadd.f32 %v1670, %v1713
  %v1719 = vxor.u32 %v1718, 2147483648
  %v1720 = vmul.f32 %v1719, 1.442695
  %v1721 = vpow.pop %v1720
  %v1722 = vadd.f32 %v1721, 1.0
  %v1723 = vrcp.pop %v1722
  %v1724 = vmul.f32 1.0, %v1723
  %v1725 = vtanh.pop %v1718
  %v1726 = vmul.f32 %v1724, %v1657
  %1728 = vrot.lane.b32.xlu0 %v1725, 64
  %v1729 = vpop.permute.xlu0 %1728
  %v1731 = vmul.f32 %v1724, %v1729
  %1733 = vrot.lane.b32.xlu0 %v1731, 32
  %v1734 = vpop.permute.xlu0 %1733
  %v1736 = vadd.f32 %v1726, %v1734
  %v1737 = vtanh.pop %v1736
  %1739 = vrot.lane.b32.xlu0 %v1737, 64
  %v1740 = vpop.permute.xlu0 %1739
  %v1742 = vmul.f32 %v1724, %v1740
  %v1743 = vmax.f32 %v1742, 0.0
  %1745 = vrot.lane.b32.xlu0 %v1743, 32
  %v1746 = vpop.permute.xlu0 %1745
  %1748 = vst.msk [vmem:[#allocation3 + $0x88] sm:$0xff] %vm331, %v1746
  %v1749 = vld [vmem:[#allocation2 + $0x90] sm:$0xff]
  %v1750 = vpack.c.bf16 %v1742, %v1742
  %1752 = vrot.lane.b32.xlu0 %v1750, 32
  %v1753 = vpop.permute.xlu0 %1752
  %v1755 = vsel %vm331, %v1753, 0
  %1757 = vmatprep.subr.bf16.mxu0 0
  %1758 = vmatpush1.bf16.msra.mxu0 %v327
  %1759 = vmatprep.subr.bf16.mxu0 0
  %1760 = vmatpush1.bf16.msra.mxu0 %v328
  %1761 = vmatprep.subr.bf16.mxu0 0
  %1762 = vmatpush1.bf16.msra.mxu0 0
  %1763 = vmatprep.subr.bf16.mxu0 0
  %1764 = vmatpush1.bf16.msra.mxu0 0
  %1765 = vmatprep.subr.bf16.mxu0 0
  %1766 = vmatpush1.bf16.msra.mxu0 0
  %1767 = vmatprep.subr.bf16.mxu0 0
  %1768 = vmatpush1.bf16.msra.mxu0 0
  %1769 = vmatprep.subr.bf16.mxu0 0
  %1770 = vmatpush1.bf16.msra.mxu0 0
  %1771 = vmatprep.subr.bf16.mxu0 0
  %1772 = vmatpush1.bf16.msra.mxu0 0
  %1773 = vmatprep.subr.bf16.mxu0 0
  %1774 = vmatpush1.bf16.msra.mxu0 0
  %1775 = vmatprep.subr.bf16.mxu0 0
  %1776 = vmatpush1.bf16.msra.mxu0 0
  %1777 = vmatprep.subr.bf16.mxu0 0
  %1778 = vmatpush1.bf16.msra.mxu0 0
  %1779 = vmatprep.subr.bf16.mxu0 0
  %1780 = vmatpush1.bf16.msra.mxu0 0
  %1781 = vmatprep.subr.bf16.mxu0 0
  %1782 = vmatpush1.bf16.msra.mxu0 0
  %1783 = vmatprep.subr.bf16.mxu0 0
  %1784 = vmatpush1.bf16.msra.mxu0 0
  %1785 = vmatprep.subr.bf16.mxu0 0
  %1786 = vmatpush1.bf16.msra.mxu0 0
  %1787 = vmatprep.subr.bf16.mxu0 0
  %1788 = vmatpush1.bf16.msra.mxu0 0
  %1789 = vmatprep.mubr.bf16.mxu0 0
  %1790 = vmatmul.mubr.bf16.gmra.mrb[0].mxu0 %v1755
  %v1791 = vpop.f32.mrb[0].mxu0
  %v1792 = vadd.f32 0.0, %v1791
  %v1793 = vpop.f32.mrb[0].mxu0
  %v1794 = vpop.f32.mrb[0].mxu0
  %v1795 = vpop.f32.mrb[0].mxu0
  %1796 = vdwg.mxu0
  %v1797 = vadd.f32 %v1749, %v1792
  %v1798 = vxor.u32 %v1797, 2147483648
  %v1799 = vmul.f32 %v1798, 1.442695
  %v1800 = vpow.pop %v1799
  %v1801 = vadd.f32 %v1800, 1.0
  %v1802 = vrcp.pop %v1801
  %v1803 = vmul.f32 1.0, %v1802
  %v1804 = vtanh.pop %v1797
  %v1805 = vmul.f32 %v1803, %v1736
  %1807 = vrot.lane.b32.xlu0 %v1804, 64
  %v1808 = vpop.permute.xlu0 %1807
  %v1810 = vmul.f32 %v1803, %v1808
  %1812 = vrot.lane.b32.xlu0 %v1810, 32
  %v1813 = vpop.permute.xlu0 %1812
  %v1815 = vadd.f32 %v1805, %v1813
  %v1816 = vtanh.pop %v1815
  %1818 = vrot.lane.b32.xlu0 %v1816, 64
  %v1819 = vpop.permute.xlu0 %1818
  %v1821 = vmul.f32 %v1803, %v1819
  %v1822 = vmax.f32 %v1821, 0.0
  %1824 = vrot.lane.b32.xlu0 %v1822, 32
  %v1825 = vpop.permute.xlu0 %1824
  %1827 = vst.msk [vmem:[#allocation3 + $0x90] sm:$0xff] %vm331, %v1825
  %v1828 = vld [vmem:[#allocation2 + $0x98] sm:$0xff]
  %v1829 = vpack.c.bf16 %v1821, %v1821
  %1831 = vrot.lane.b32.xlu0 %v1829, 32
  %v1832 = vpop.permute.xlu0 %1831
  %v1834 = vsel %vm331, %v1832, 0
  %1836 = vmatprep.subr.bf16.mxu0 0
  %1837 = vmatpush1.bf16.msra.mxu0 %v327
  %1838 = vmatprep.subr.bf16.mxu0 0
  %1839 = vmatpush1.bf16.msra.mxu0 %v328
  %1840 = vmatprep.subr.bf16.mxu0 0
  %1841 = vmatpush1.bf16.msra.mxu0 0
  %1842 = vmatprep.subr.bf16.mxu0 0
  %1843 = vmatpush1.bf16.msra.mxu0 0
  %1844 = vmatprep.subr.bf16.mxu0 0
  %1845 = vmatpush1.bf16.msra.mxu0 0
  %1846 = vmatprep.subr.bf16.mxu0 0
  %1847 = vmatpush1.bf16.msra.mxu0 0
  %1848 = vmatprep.subr.bf16.mxu0 0
  %1849 = vmatpush1.bf16.msra.mxu0 0
  %1850 = vmatprep.subr.bf16.mxu0 0
  %1851 = vmatpush1.bf16.msra.mxu0 0
  %1852 = vmatprep.subr.bf16.mxu0 0
  %1853 = vmatpush1.bf16.msra.mxu0 0
  %1854 = vmatprep.subr.bf16.mxu0 0
  %1855 = vmatpush1.bf16.msra.mxu0 0
  %1856 = vmatprep.subr.bf16.mxu0 0
  %1857 = vmatpush1.bf16.msra.mxu0 0
  %1858 = vmatprep.subr.bf16.mxu0 0
  %1859 = vmatpush1.bf16.msra.mxu0 0
  %1860 = vmatprep.subr.bf16.mxu0 0
  %1861 = vmatpush1.bf16.msra.mxu0 0
  %1862 = vmatprep.subr.bf16.mxu0 0
  %1863 = vmatpush1.bf16.msra.mxu0 0
  %1864 = vmatprep.subr.bf16.mxu0 0
  %1865 = vmatpush1.bf16.msra.mxu0 0
  %1866 = vmatprep.subr.bf16.mxu0 0
  %1867 = vmatpush1.bf16.msra.mxu0 0
  %1868 = vmatprep.mubr.bf16.mxu0 0
  %1869 = vmatmul.mubr.bf16.gmra.mrb[0].mxu0 %v1834
  %v1870 = vpop.f32.mrb[0].mxu0
  %v1871 = vadd.f32 0.0, %v1870
  %v1872 = vpop.f32.mrb[0].mxu0
  %v1873 = vpop.f32.mrb[0].mxu0
  %v1874 = vpop.f32.mrb[0].mxu0
  %1875 = vdwg.mxu0
  %v1876 = vadd.f32 %v1828, %v1871
  %v1877 = vxor.u32 %v1876, 2147483648
  %v1878 = vmul.f32 %v1877, 1.442695
  %v1879 = vpow.pop %v1878
  %v1880 = vadd.f32 %v1879, 1.0
  %v1881 = vrcp.pop %v1880
  %v1882 = vmul.f32 1.0, %v1881
  %v1883 = vtanh.pop %v1876
  %v1884 = vmul.f32 %v1882, %v1815
  %1886 = vrot.lane.b32.xlu0 %v1883, 64
  %v1887 = vpop.permute.xlu0 %1886
  %v1889 = vmul.f32 %v1882, %v1887
  %1891 = vrot.lane.b32.xlu0 %v1889, 32
  %v1892 = vpop.permute.xlu0 %1891
  %v1894 = vadd.f32 %v1884, %v1892
  %v1895 = vtanh.pop %v1894
  %1897 = vrot.lane.b32.xlu0 %v1895, 64
  %v1898 = vpop.permute.xlu0 %1897
  %v1900 = vmul.f32 %v1882, %v1898
  %v1901 = vmax.f32 %v1900, 0.0
  %1903 = vrot.lane.b32.xlu0 %v1901, 32
  %v1904 = vpop.permute.xlu0 %1903
  %1906 = vst.msk [vmem:[#allocation3 + $0x98] sm:$0xff] %vm331, %v1904
  %v1907 = vld [vmem:[#allocation2 + $0xa0] sm:$0xff]
  %v1908 = vpack.c.bf16 %v1900, %v1900
  %1910 = vrot.lane.b32.xlu0 %v1908, 32
  %v1911 = vpop.permute.xlu0 %1910
  %v1913 = vsel %vm331, %v1911, 0
  %1915 = vmatprep.subr.bf16.mxu0 0
  %1916 = vmatpush1.bf16.msra.mxu0 %v327
  %1917 = vmatprep.subr.bf16.mxu0 0
  %1918 = vmatpush1.bf16.msra.mxu0 %v328
  %1919 = vmatprep.subr.bf16.mxu0 0
  %1920 = vmatpush1.bf16.msra.mxu0 0
  %1921 = vmatprep.subr.bf16.mxu0 0
  %1922 = vmatpush1.bf16.msra.mxu0 0
  %1923 = vmatprep.subr.bf16.mxu0 0
  %1924 = vmatpush1.bf16.msra.mxu0 0
  %1925 = vmatprep.subr.bf16.mxu0 0
  %1926 = vmatpush1.bf16.msra.mxu0 0
  %1927 = vmatprep.subr.bf16.mxu0 0
  %1928 = vmatpush1.bf16.msra.mxu0 0
  %1929 = vmatprep.subr.bf16.mxu0 0
  %1930 = vmatpush1.bf16.msra.mxu0 0
  %1931 = vmatprep.subr.bf16.mxu0 0
  %1932 = vmatpush1.bf16.msra.mxu0 0
  %1933 = vmatprep.subr.bf16.mxu0 0
  %1934 = vmatpush1.bf16.msra.mxu0 0
  %1935 = vmatprep.subr.bf16.mxu0 0
  %1936 = vmatpush1.bf16.msra.mxu0 0
  %1937 = vmatprep.subr.bf16.mxu0 0
  %1938 = vmatpush1.bf16.msra.mxu0 0
  %1939 = vmatprep.subr.bf16.mxu0 0
  %1940 = vmatpush1.bf16.msra.mxu0 0
  %1941 = vmatprep.subr.bf16.mxu0 0
  %1942 = vmatpush1.bf16.msra.mxu0 0
  %1943 = vmatprep.subr.bf16.mxu0 0
  %1944 = vmatpush1.bf16.msra.mxu0 0
  %1945 = vmatprep.subr.bf16.mxu0 0
  %1946 = vmatpush1.bf16.msra.mxu0 0
  %1947 = vmatprep.mubr.bf16.mxu0 0
  %1948 = vmatmul.mubr.bf16.gmra.mrb[0].mxu0 %v1913
  %v1949 = vpop.f32.mrb[0].mxu0
  %v1950 = vadd.f32 0.0, %v1949
  %v1951 = vpop.f32.mrb[0].mxu0
  %v1952 = vpop.f32.mrb[0].mxu0
  %v1953 = vpop.f32.mrb[0].mxu0
  %1954 = vdwg.mxu0
  %v1955 = vadd.f32 %v1907, %v1950
  %v1956 = vxor.u32 %v1955, 2147483648
  %v1957 = vmul.f32 %v1956, 1.442695
  %v1958 = vpow.pop %v1957
  %v1959 = vadd.f32 %v1958, 1.0
  %v1960 = vrcp.pop %v1959
  %v1961 = vmul.f32 1.0, %v1960
  %v1962 = vtanh.pop %v1955
  %v1963 = vmul.f32 %v1961, %v1894
  %1965 = vrot.lane.b32.xlu0 %v1962, 64
  %v1966 = vpop.permute.xlu0 %1965
  %v1968 = vmul.f32 %v1961, %v1966
  %1970 = vrot.lane.b32.xlu0 %v1968, 32
  %v1971 = vpop.permute.xlu0 %1970
  %v1973 = vadd.f32 %v1963, %v1971
  %v1974 = vtanh.pop %v1973
  %1976 = vrot.lane.b32.xlu0 %v1974, 64
  %v1977 = vpop.permute.xlu0 %1976
  %v1979 = vmul.f32 %v1961, %v1977
  %v1980 = vmax.f32 %v1979, 0.0
  %1982 = vrot.lane.b32.xlu0 %v1980, 32
  %v1983 = vpop.permute.xlu0 %1982
  %1985 = vst.msk [vmem:[#allocation3 + $0xa0] sm:$0xff] %vm331, %v1983
  %v1986 = vld [vmem:[#allocation2 + $0xa8] sm:$0xff]
  %v1987 = vpack.c.bf16 %v1979, %v1979
  %1989 = vrot.lane.b32.xlu0 %v1987, 32
  %v1990 = vpop.permute.xlu0 %1989
  %v1992 = vsel %vm331, %v1990, 0
  %1994 = vmatprep.subr.bf16.mxu0 0
  %1995 = vmatpush1.bf16.msra.mxu0 %v327
  %1996 = vmatprep.subr.bf16.mxu0 0
  %1997 = vmatpush1.bf16.msra.mxu0 %v328
  %1998 = vmatprep.subr.bf16.mxu0 0
  %1999 = vmatpush1.bf16.msra.mxu0 0
  %2000 = vmatprep.subr.bf16.mxu0 0
  %2001 = vmatpush1.bf16.msra.mxu0 0
  %2002 = vmatprep.subr.bf16.mxu0 0
  %2003 = vmatpush1.bf16.msra.mxu0 0
  %2004 = vmatprep.subr.bf16.mxu0 0
  %2005 = vmatpush1.bf16.msra.mxu0 0
  %2006 = vmatprep.subr.bf16.mxu0 0
  %2007 = vmatpush1.bf16.msra.mxu0 0
  %2008 = vmatprep.subr.bf16.mxu0 0
  %2009 = vmatpush1.bf16.msra.mxu0 0
  %2010 = vmatprep.subr.bf16.mxu0 0
  %2011 = vmatpush1.bf16.msra.mxu0 0
  %2012 = vmatprep.subr.bf16.mxu0 0
  %2013 = vmatpush1.bf16.msra.mxu0 0
  %2014 = vmatprep.subr.bf16.mxu0 0
  %2015 = vmatpush1.bf16.msra.mxu0 0
  %2016 = vmatprep.subr.bf16.mxu0 0
  %2017 = vmatpush1.bf16.msra.mxu0 0
  %2018 = vmatprep.subr.bf16.mxu0 0
  %2019 = vmatpush1.bf16.msra.mxu0 0
  %2020 = vmatprep.subr.bf16.mxu0 0
  %2021 = vmatpush1.bf16.msra.mxu0 0
  %2022 = vmatprep.subr.bf16.mxu0 0
  %2023 = vmatpush1.bf16.msra.mxu0 0
  %2024 = vmatprep.subr.bf16.mxu0 0
  %2025 = vmatpush1.bf16.msra.mxu0 0
  %2026 = vmatprep.mubr.bf16.mxu0 0
  %2027 = vmatmul.mubr.bf16.gmra.mrb[0].mxu0 %v1992
  %v2028 = vpop.f32.mrb[0].mxu0
  %v2029 = vadd.f32 0.0, %v2028
  %v2030 = vpop.f32.mrb[0].mxu0
  %v2031 = vpop.f32.mrb[0].mxu0
  %v2032 = vpop.f32.mrb[0].mxu0
  %2033 = vdwg.mxu0
  %v2034 = vadd.f32 %v1986, %v2029
  %v2035 = vxor.u32 %v2034, 2147483648
  %v2036 = vmul.f32 %v2035, 1.442695
  %v2037 = vpow.pop %v2036
  %v2038 = vadd.f32 %v2037, 1.0
  %v2039 = vrcp.pop %v2038
  %v2040 = vmul.f32 1.0, %v2039
  %v2041 = vtanh.pop %v2034
  %v2042 = vmul.f32 %v2040, %v1973
  %2044 = vrot.lane.b32.xlu0 %v2041, 64
  %v2045 = vpop.permute.xlu0 %2044
  %v2047 = vmul.f32 %v2040, %v2045
  %2049 = vrot.lane.b32.xlu0 %v2047, 32
  %v2050 = vpop.permute.xlu0 %2049
  %v2052 = vadd.f32 %v2042, %v2050
  %v2053 = vtanh.pop %v2052
  %2055 = vrot.lane.b32.xlu0 %v2053, 64
  %v2056 = vpop.permute.xlu0 %2055
  %v2058 = vmul.f32 %v2040, %v2056
  %v2059 = vmax.f32 %v2058, 0.0
  %2061 = vrot.lane.b32.xlu0 %v2059, 32
  %v2062 = vpop.permute.xlu0 %2061
  %2064 = vst.msk [vmem:[#allocation3 + $0xa8] sm:$0xff] %vm331, %v2062
  %v2065 = vld [vmem:[#allocation2 + $0xb0] sm:$0xff]
  %v2066 = vpack.c.bf16 %v2058, %v2058
  %2068 = vrot.lane.b32.xlu0 %v2066, 32
  %v2069 = vpop.permute.xlu0 %2068
  %v2071 = vsel %vm331, %v2069, 0
  %2073 = vmatprep.subr.bf16.mxu0 0
  %2074 = vmatpush1.bf16.msra.mxu0 %v327
  %2075 = vmatprep.subr.bf16.mxu0 0
  %2076 = vmatpush1.bf16.msra.mxu0 %v328
  %2077 = vmatprep.subr.bf16.mxu0 0
  %2078 = vmatpush1.bf16.msra.mxu0 0
  %2079 = vmatprep.subr.bf16.mxu0 0
  %2080 = vmatpush1.bf16.msra.mxu0 0
  %2081 = vmatprep.subr.bf16.mxu0 0
  %2082 = vmatpush1.bf16.msra.mxu0 0
  %2083 = vmatprep.subr.bf16.mxu0 0
  %2084 = vmatpush1.bf16.msra.mxu0 0
  %2085 = vmatprep.subr.bf16.mxu0 0
  %2086 = vmatpush1.bf16.msra.mxu0 0
  %2087 = vmatprep.subr.bf16.mxu0 0
  %2088 = vmatpush1.bf16.msra.mxu0 0
  %2089 = vmatprep.subr.bf16.mxu0 0
  %2090 = vmatpush1.bf16.msra.mxu0 0
  %2091 = vmatprep.subr.bf16.mxu0 0
  %2092 = vmatpush1.bf16.msra.mxu0 0
  %2093 = vmatprep.subr.bf16.mxu0 0
  %2094 = vmatpush1.bf16.msra.mxu0 0
  %2095 = vmatprep.subr.bf16.mxu0 0
  %2096 = vmatpush1.bf16.msra.mxu0 0
  %2097 = vmatprep.subr.bf16.mxu0 0
  %2098 = vmatpush1.bf16.msra.mxu0 0
  %2099 = vmatprep.subr.bf16.mxu0 0
  %2100 = vmatpush1.bf16.msra.mxu0 0
  %2101 = vmatprep.subr.bf16.mxu0 0
  %2102 = vmatpush1.bf16.msra.mxu0 0
  %2103 = vmatprep.subr.bf16.mxu0 0
  %2104 = vmatpush1.bf16.msra.mxu0 0
  %2105 = vmatprep.mubr.bf16.mxu0 0
  %2106 = vmatmul.mubr.bf16.gmra.mrb[0].mxu0 %v2071
  %v2107 = vpop.f32.mrb[0].mxu0
  %v2108 = vadd.f32 0.0, %v2107
  %v2109 = vpop.f32.mrb[0].mxu0
  %v2110 = vpop.f32.mrb[0].mxu0
  %v2111 = vpop.f32.mrb[0].mxu0
  %2112 = vdwg.mxu0
  %v2113 = vadd.f32 %v2065, %v2108
  %v2114 = vxor.u32 %v2113, 2147483648
  %v2115 = vmul.f32 %v2114, 1.442695
  %v2116 = vpow.pop %v2115
  %v2117 = vadd.f32 %v2116, 1.0
  %v2118 = vrcp.pop %v2117
  %v2119 = vmul.f32 1.0, %v2118
  %v2120 = vtanh.pop %v2113
  %v2121 = vmul.f32 %v2119, %v2052
  %2123 = vrot.lane.b32.xlu0 %v2120, 64
  %v2124 = vpop.permute.xlu0 %2123
  %v2126 = vmul.f32 %v2119, %v2124
  %2128 = vrot.lane.b32.xlu0 %v2126, 32
  %v2129 = vpop.permute.xlu0 %2128
  %v2131 = vadd.f32 %v2121, %v2129
  %v2132 = vtanh.pop %v2131
  %2134 = vrot.lane.b32.xlu0 %v2132, 64
  %v2135 = vpop.permute.xlu0 %2134
  %v2137 = vmul.f32 %v2119, %v2135
  %v2138 = vmax.f32 %v2137, 0.0
  %2140 = vrot.lane.b32.xlu0 %v2138, 32
  %v2141 = vpop.permute.xlu0 %2140
  %2143 = vst.msk [vmem:[#allocation3 + $0xb0] sm:$0xff] %vm331, %v2141
  %v2144 = vld [vmem:[#allocation3] sm:$0xff]
  %v2145 = vld [vmem:[#allocation3 + $0x8] sm:$0xff]
  %v2146 = vld [vmem:[#allocation3 + $0x10] sm:$0xff]
  %v2147 = vld [vmem:[#allocation3 + $0x18] sm:$0xff]
  %v2148 = vld [vmem:[#allocation3 + $0x20] sm:$0xff]
  %v2149 = vld [vmem:[#allocation3 + $0x28] sm:$0xff]
  %v2150 = vld [vmem:[#allocation3 + $0x30] sm:$0xff]
  %v2151 = vld [vmem:[#allocation3 + $0x38] sm:$0xff]
  %v2152 = vld [vmem:[#allocation3 + $0x40] sm:$0xff]
  %v2153 = vld [vmem:[#allocation3 + $0x48] sm:$0xff]
  %v2154 = vld [vmem:[#allocation3 + $0x50] sm:$0xff]
  %v2155 = vld [vmem:[#allocation3 + $0x58] sm:$0xff]
  %v2156 = vld [vmem:[#allocation3 + $0x60] sm:$0xff]
  %v2157 = vld [vmem:[#allocation3 + $0x68] sm:$0xff]
  %v2158 = vld [vmem:[#allocation3 + $0x70] sm:$0xff]
  %v2159 = vld [vmem:[#allocation3 + $0x78] sm:$0xff]
  %v2160 = vld [vmem:[#allocation3 + $0x80] sm:$0xff]
  %v2161 = vld [vmem:[#allocation3 + $0x88] sm:$0xff]
  %v2162 = vld [vmem:[#allocation3 + $0x90] sm:$0xff]
  %v2163 = vld [vmem:[#allocation3 + $0x98] sm:$0xff]
  %v2164 = vld [vmem:[#allocation3 + $0xa0] sm:$0xff]
  %v2165 = vld [vmem:[#allocation3 + $0xa8] sm:$0xff]
  %v2166 = vld [vmem:[#allocation3 + $0xb0] sm:$0xff]
  %v2167 = vld [vmem:[%s4] sm:$0xff]
  %v2168 = vld [vmem:[%s4 + $0x8] sm:$0xff]
  %v2169 = vld [vmem:[%s4 + $0x10] sm:$0xff]
  %v2170 = vld [vmem:[%s4 + $0x18] sm:$0xff]
  %v2171 = vld [vmem:[%s5] sm:$0x1]
  %v2173 = vlaneseq
  %v2174 = vshrl.u32 %v2173, 7
  %v2175 = vsub.s32 0, %v2174
  %v2176 = vrot.slane %v2171, %v2175
  %v2179 = vsel %vm331, %v2144, 0
  %v2182 = vsel %vm331, %v2145, 0
  %v2185 = vsel %vm331, %v2146, 0
  %v2188 = vsel %vm331, %v2147, 0
  %v2191 = vsel %vm331, %v2148, 0
  %v2194 = vsel %vm331, %v2149, 0
  %v2197 = vsel %vm331, %v2150, 0
  %v2200 = vsel %vm331, %v2151, 0
  %v2203 = vsel %vm331, %v2152, 0
  %v2206 = vsel %vm331, %v2153, 0
  %v2209 = vsel %vm331, %v2154, 0
  %v2212 = vsel %vm331, %v2155, 0
  %v2215 = vsel %vm331, %v2156, 0
  %v2218 = vsel %vm331, %v2157, 0
  %v2221 = vsel %vm331, %v2158, 0
  %v2224 = vsel %vm331, %v2159, 0
  %v2227 = vsel %vm331, %v2160, 0
  %v2230 = vsel %vm331, %v2161, 0
  %v2233 = vsel %vm331, %v2162, 0
  %v2236 = vsel %vm331, %v2163, 0
  %v2239 = vsel %vm331, %v2164, 0
  %v2242 = vsel %vm331, %v2165, 0
  %v2245 = vsel %vm331, %v2166, 0
  %2247 = vmatprep.subr.mxu0 0.0
  %2248 = vmatpush1.msra.mxu0 %v2167
  %2249 = vmatprep.subr.mxu0 0.0
  %2250 = vmatpush1.msra.mxu0 %v2168
  %2251 = vmatprep.subr.mxu0 0.0
  %2252 = vmatpush1.msra.mxu0 %v2169
  %2253 = vmatprep.subr.mxu0 0.0
  %2254 = vmatpush1.msra.mxu0 %v2170
  %2255 = vmatprep.subr.mxu0 0.0
  %2256 = vmatpush1.msra.mxu0 0.0
  %2257 = vmatprep.subr.mxu0 0.0
  %2258 = vmatpush1.msra.mxu0 0.0
  %2259 = vmatprep.subr.mxu0 0.0
  %2260 = vmatpush1.msra.mxu0 0.0
  %2261 = vmatprep.subr.mxu0 0.0
  %2262 = vmatpush1.msra.mxu0 0.0
  %2263 = vmatprep.subr.mxu0 0.0
  %2264 = vmatpush1.msra.mxu0 0.0
  %2265 = vmatprep.subr.mxu0 0.0
  %2266 = vmatpush1.msra.mxu0 0.0
  %2267 = vmatprep.subr.mxu0 0.0
  %2268 = vmatpush1.msra.mxu0 0.0
  %2269 = vmatprep.subr.mxu0 0.0
  %2270 = vmatpush1.msra.mxu0 0.0
  %2271 = vmatprep.subr.mxu0 0.0
  %2272 = vmatpush1.msra.mxu0 0.0
  %2273 = vmatprep.subr.mxu0 0.0
  %2274 = vmatpush1.msra.mxu0 0.0
  %2275 = vmatprep.subr.mxu0 0.0
  %2276 = vmatpush1.msra.mxu0 0.0
  %2277 = vmatprep.subr.mxu0 0.0
  %2278 = vmatpush1.msra.mxu0 0.0
  %2279 = vmatprep.subr.mxu0 0.0
  %2280 = vmatpush1.msra.mxu0 0.0
  %2281 = vmatprep.subr.mxu0 0.0
  %2282 = vmatpush1.msra.mxu0 0.0
  %2283 = vmatprep.subr.mxu0 0.0
  %2284 = vmatpush1.msra.mxu0 0.0
  %2285 = vmatprep.subr.mxu0 0.0
  %2286 = vmatpush1.msra.mxu0 0.0
  %2287 = vmatprep.subr.mxu0 0.0
  %2288 = vmatpush1.msra.mxu0 0.0
  %2289 = vmatprep.subr.mxu0 0.0
  %2290 = vmatpush1.msra.mxu0 0.0
  %2291 = vmatprep.subr.mxu0 0.0
  %2292 = vmatpush1.msra.mxu0 0.0
  %2293 = vmatprep.subr.mxu0 0.0
  %2294 = vmatpush1.msra.mxu0 0.0
  %2295 = vmatprep.subr.mxu0 0.0
  %2296 = vmatpush1.msra.mxu0 0.0
  %2297 = vmatprep.subr.mxu0 0.0
  %2298 = vmatpush1.msra.mxu0 0.0
  %2299 = vmatprep.subr.mxu0 0.0
  %2300 = vmatpush1.msra.mxu0 0.0
  %2301 = vmatprep.subr.mxu0 0.0
  %2302 = vmatpush1.msra.mxu0 0.0
  %2303 = vmatprep.subr.mxu0 0.0
  %2304 = vmatpush1.msra.mxu0 0.0
  %2305 = vmatprep.subr.mxu0 0.0
  %2306 = vmatpush1.msra.mxu0 0.0
  %2307 = vmatprep.subr.mxu0 0.0
  %2308 = vmatpush1.msra.mxu0 0.0
  %2309 = vmatprep.subr.mxu0 0.0
  %2310 = vmatpush1.msra.mxu0 0.0
  %2311 = vmatprep.mubr.f32.mxu0 0.0
  %2312 = vmatmul.mubr.f32.gmra.mrb[0].mxu0 %v2179
  %v2313 = vpop.f32.mrb[0].mxu0
  %v2314 = vadd.f32 %v2176, %v2313
  %v2315 = vpop.f32.mrb[0].mxu0
  %2316 = vmatprep.mubr.f32.mxu0 0.0
  %2317 = vmatmul.mubr.f32.gmra.mrb[0].mxu0 %v2182
  %v2318 = vpop.f32.mrb[0].mxu0
  %v2319 = vadd.f32 %v2176, %v2318
  %v2320 = vpop.f32.mrb[0].mxu0
  %2321 = vmatprep.mubr.f32.mxu0 0.0
  %2322 = vmatmul.mubr.f32.gmra.mrb[0].mxu0 %v2185
  %v2323 = vpop.f32.mrb[0].mxu0
  %v2324 = vadd.f32 %v2176, %v2323
  %v2325 = vpop.f32.mrb[0].mxu0
  %2326 = vmatprep.mubr.f32.mxu0 0.0
  %2327 = vmatmul.mubr.f32.gmra.mrb[0].mxu0 %v2188
  %v2328 = vpop.f32.mrb[0].mxu0
  %v2329 = vadd.f32 %v2176, %v2328
  %v2330 = vpop.f32.mrb[0].mxu0
  %2331 = vmatprep.mubr.f32.mxu0 0.0
  %2332 = vmatmul.mubr.f32.gmra.mrb[0].mxu0 %v2191
  %v2333 = vpop.f32.mrb[0].mxu0
  %v2334 = vadd.f32 %v2176, %v2333
  %v2335 = vpop.f32.mrb[0].mxu0
  %2336 = vmatprep.mubr.f32.mxu0 0.0
  %2337 = vmatmul.mubr.f32.gmra.mrb[0].mxu0 %v2194
  %v2338 = vpop.f32.mrb[0].mxu0
  %v2339 = vadd.f32 %v2176, %v2338
  %v2340 = vpop.f32.mrb[0].mxu0
  %2341 = vmatprep.mubr.f32.mxu0 0.0
  %2342 = vmatmul.mubr.f32.gmra.mrb[0].mxu0 %v2197
  %v2343 = vpop.f32.mrb[0].mxu0
  %v2344 = vadd.f32 %v2176, %v2343
  %v2345 = vpop.f32.mrb[0].mxu0
  %2346 = vmatprep.mubr.f32.mxu0 0.0
  %2347 = vmatmul.mubr.f32.gmra.mrb[0].mxu0 %v2200
  %v2348 = vpop.f32.mrb[0].mxu0
  %v2349 = vadd.f32 %v2176, %v2348
  %v2350 = vpop.f32.mrb[0].mxu0
  %2351 = vmatprep.mubr.f32.mxu0 0.0
  %2352 = vmatmul.mubr.f32.gmra.mrb[0].mxu0 %v2203
  %v2353 = vpop.f32.mrb[0].mxu0
  %v2354 = vadd.f32 %v2176, %v2353
  %v2355 = vpop.f32.mrb[0].mxu0
  %2356 = vmatprep.mubr.f32.mxu0 0.0
  %2357 = vmatmul.mubr.f32.gmra.mrb[0].mxu0 %v2206
  %v2358 = vpop.f32.mrb[0].mxu0
  %v2359 = vadd.f32 %v2176, %v2358
  %v2360 = vpop.f32.mrb[0].mxu0
  %2361 = vmatprep.mubr.f32.mxu0 0.0
  %2362 = vmatmul.mubr.f32.gmra.mrb[0].mxu0 %v2209
  %v2363 = vpop.f32.mrb[0].mxu0
  %v2364 = vadd.f32 %v2176, %v2363
  %v2365 = vpop.f32.mrb[0].mxu0
  %2366 = vmatprep.mubr.f32.mxu0 0.0
  %2367 = vmatmul.mubr.f32.gmra.mrb[0].mxu0 %v2212
  %v2368 = vpop.f32.mrb[0].mxu0
  %v2369 = vadd.f32 %v2176, %v2368
  %v2370 = vpop.f32.mrb[0].mxu0
  %2371 = vmatprep.mubr.f32.mxu0 0.0
  %2372 = vmatmul.mubr.f32.gmra.mrb[0].mxu0 %v2215
  %v2373 = vpop.f32.mrb[0].mxu0
  %v2374 = vadd.f32 %v2176, %v2373
  %v2375 = vpop.f32.mrb[0].mxu0
  %2376 = vmatprep.mubr.f32.mxu0 0.0
  %2377 = vmatmul.mubr.f32.gmra.mrb[0].mxu0 %v2218
  %v2378 = vpop.f32.mrb[0].mxu0
  %v2379 = vadd.f32 %v2176, %v2378
  %v2380 = vpop.f32.mrb[0].mxu0
  %2381 = vmatprep.mubr.f32.mxu0 0.0
  %2382 = vmatmul.mubr.f32.gmra.mrb[0].mxu0 %v2221
  %v2383 = vpop.f32.mrb[0].mxu0
  %v2384 = vadd.f32 %v2176, %v2383
  %v2385 = vpop.f32.mrb[0].mxu0
  %2386 = vmatprep.mubr.f32.mxu0 0.0
  %2387 = vmatmul.mubr.f32.gmra.mrb[0].mxu0 %v2224
  %v2388 = vpop.f32.mrb[0].mxu0
  %v2389 = vadd.f32 %v2176, %v2388
  %v2390 = vpop.f32.mrb[0].mxu0
  %2391 = vmatprep.mubr.f32.mxu0 0.0
  %2392 = vmatmul.mubr.f32.gmra.mrb[0].mxu0 %v2227
  %v2393 = vpop.f32.mrb[0].mxu0
  %v2394 = vadd.f32 %v2176, %v2393
  %v2395 = vpop.f32.mrb[0].mxu0
  %2396 = vmatprep.mubr.f32.mxu0 0.0
  %2397 = vmatmul.mubr.f32.gmra.mrb[0].mxu0 %v2230
  %v2398 = vpop.f32.mrb[0].mxu0
  %v2399 = vadd.f32 %v2176, %v2398
  %v2400 = vpop.f32.mrb[0].mxu0
  %2401 = vmatprep.mubr.f32.mxu0 0.0
  %2402 = vmatmul.mubr.f32.gmra.mrb[0].mxu0 %v2233
  %v2403 = vpop.f32.mrb[0].mxu0
  %v2404 = vadd.f32 %v2176, %v2403
  %v2405 = vpop.f32.mrb[0].mxu0
  %2406 = vmatprep.mubr.f32.mxu0 0.0
  %2407 = vmatmul.mubr.f32.gmra.mrb[0].mxu0 %v2236
  %v2408 = vpop.f32.mrb[0].mxu0
  %v2409 = vadd.f32 %v2176, %v2408
  %v2410 = vpop.f32.mrb[0].mxu0
  %2411 = vmatprep.mubr.f32.mxu0 0.0
  %2412 = vmatmul.mubr.f32.gmra.mrb[0].mxu0 %v2239
  %v2413 = vpop.f32.mrb[0].mxu0
  %v2414 = vadd.f32 %v2176, %v2413
  %v2415 = vpop.f32.mrb[0].mxu0
  %2416 = vmatprep.mubr.f32.mxu0 0.0
  %2417 = vmatmul.mubr.f32.gmra.mrb[0].mxu0 %v2242
  %v2418 = vpop.f32.mrb[0].mxu0
  %v2419 = vadd.f32 %v2176, %v2418
  %v2420 = vpop.f32.mrb[0].mxu0
  %2421 = vmatprep.mubr.f32.mxu0 0.0
  %2422 = vmatmul.mubr.f32.gmra.mrb[0].mxu0 %v2245
  %v2423 = vpop.f32.mrb[0].mxu0
  %v2424 = vadd.f32 %v2176, %v2423
  %v2425 = vpop.f32.mrb[0].mxu0
  %2426 = vdwg.mxu0
  %v2427 = vmax.f32 %v2314, 0.0
  %v2428 = vmax.f32 %v2319, 0.0
  %v2429 = vmax.f32 %v2324, 0.0
  %v2430 = vmax.f32 %v2329, 0.0
  %v2431 = vmax.f32 %v2334, 0.0
  %v2432 = vmax.f32 %v2339, 0.0
  %v2433 = vmax.f32 %v2344, 0.0
  %v2434 = vmax.f32 %v2349, 0.0
  %v2435 = vmax.f32 %v2354, 0.0
  %v2436 = vmax.f32 %v2359, 0.0
  %v2437 = vmax.f32 %v2364, 0.0
  %v2438 = vmax.f32 %v2369, 0.0
  %v2439 = vmax.f32 %v2374, 0.0
  %v2440 = vmax.f32 %v2379, 0.0
  %v2441 = vmax.f32 %v2384, 0.0
  %v2442 = vmax.f32 %v2389, 0.0
  %v2443 = vmax.f32 %v2394, 0.0
  %v2444 = vmax.f32 %v2399, 0.0
  %v2445 = vmax.f32 %v2404, 0.0
  %v2446 = vmax.f32 %v2409, 0.0
  %v2447 = vmax.f32 %v2414, 0.0
  %v2448 = vmax.f32 %v2419, 0.0
  %v2449 = vmax.f32 %v2424, 0.0
  %vm2450 = vcmask 64512
  %2451 = vst.msk [vmem:[#allocation4] sm:$0xff] %vm2450, %v2427
  %2453 = vrot.lane.b32.xlu0 %v2428, 8
  %v2454 = vpop.permute.xlu0 %2453
  %vm2456 = vcmask 130112
  %2457 = vst.msk [vmem:[#allocation4] sm:$0xff] %vm2456, %v2454
  %2459 = vrot.lane.b32.xlu0 %v2429, 16
  %v2460 = vpop.permute.xlu0 %2459
  %vm2462 = vcmask 195712
  %2463 = vst.msk [vmem:[#allocation4] sm:$0xff] %vm2462, %v2460
  %2465 = vrot.lane.b32.xlu0 %v2430, 24
  %v2466 = vpop.permute.xlu0 %2465
  %vm2468 = vcmask 261312
  %2469 = vst.msk [vmem:[#allocation4] sm:$0xff] %vm2468, %v2466
  %2471 = vrot.lane.b32.xlu0 %v2431, 32
  %v2472 = vpop.permute.xlu0 %2471
  %vm2474 = vcmask 326912
  %2475 = vst.msk [vmem:[#allocation4] sm:$0xff] %vm2474, %v2472
  %2477 = vrot.lane.b32.xlu0 %v2432, 40
  %v2478 = vpop.permute.xlu0 %2477
  %vm2480 = vcmask 392512
  %2481 = vst.msk [vmem:[#allocation4] sm:$0xff] %vm2480, %v2478
  %2483 = vrot.lane.b32.xlu0 %v2433, 48
  %v2484 = vpop.permute.xlu0 %2483
  %vm2486 = vcmask 458112
  %2487 = vst.msk [vmem:[#allocation4] sm:$0xff] %vm2486, %v2484
  %2489 = vrot.lane.b32.xlu0 %v2434, 56
  %v2490 = vpop.permute.xlu0 %2489
  %vm2492 = vcmask 523712
  %2493 = vst.msk [vmem:[#allocation4] sm:$0xff] %vm2492, %v2490
  %2495 = vrot.lane.b32.xlu0 %v2435, 64
  %v2496 = vpop.permute.xlu0 %2495
  %vm2498 = vcmask 589312
  %2499 = vst.msk [vmem:[#allocation4] sm:$0xff] %vm2498, %v2496
  %2501 = vrot.lane.b32.xlu0 %v2436, 72
  %v2502 = vpop.permute.xlu0 %2501
  %vm2504 = vcmask 654912
  %2505 = vst.msk [vmem:[#allocation4] sm:$0xff] %vm2504, %v2502
  %2507 = vrot.lane.b32.xlu0 %v2437, 80
  %v2508 = vpop.permute.xlu0 %2507
  %vm2510 = vcmask 720512
  %2511 = vst.msk [vmem:[#allocation4] sm:$0xff] %vm2510, %v2508
  %2513 = vrot.lane.b32.xlu0 %v2438, 88
  %v2514 = vpop.permute.xlu0 %2513
  %vm2516 = vcmask 786112
  %2517 = vst.msk [vmem:[#allocation4] sm:$0xff] %vm2516, %v2514
  %2519 = vrot.lane.b32.xlu0 %v2439, 96
  %v2520 = vpop.permute.xlu0 %2519
  %vm2522 = vcmask 851712
  %2523 = vst.msk [vmem:[#allocation4] sm:$0xff] %vm2522, %v2520
  %2525 = vrot.lane.b32.xlu0 %v2440, 104
  %v2526 = vpop.permute.xlu0 %2525
  %vm2528 = vcmask 917312
  %2529 = vst.msk [vmem:[#allocation4] sm:$0xff] %vm2528, %v2526
  %2531 = vrot.lane.b32.xlu0 %v2441, 112
  %v2532 = vpop.permute.xlu0 %2531
  %vm2534 = vcmask 982912
  %2535 = vst.msk [vmem:[#allocation4] sm:$0xff] %vm2534, %v2532
  %2537 = vrot.lane.b32.xlu0 %v2442, 120
  %v2538 = vpop.permute.xlu0 %2537
  %vm2540 = vcmask 1048512
  %2541 = vst.msk [vmem:[#allocation4] sm:$0xff] %vm2540, %v2538
  %2542 = vst.msk [vmem:[#allocation4 + $0x8] sm:$0xff] %vm2450, %v2443
  %2544 = vrot.lane.b32.xlu0 %v2444, 8
  %v2545 = vpop.permute.xlu0 %2544
  %2547 = vst.msk [vmem:[#allocation4 + $0x8] sm:$0xff] %vm2456, %v2545
  %2549 = vrot.lane.b32.xlu0 %v2445, 16
  %v2550 = vpop.permute.xlu0 %2549
  %2552 = vst.msk [vmem:[#allocation4 + $0x8] sm:$0xff] %vm2462, %v2550
  %2554 = vrot.lane.b32.xlu0 %v2446, 24
  %v2555 = vpop.permute.xlu0 %2554
  %2557 = vst.msk [vmem:[#allocation4 + $0x8] sm:$0xff] %vm2468, %v2555
  %2559 = vrot.lane.b32.xlu0 %v2447, 32
  %v2560 = vpop.permute.xlu0 %2559
  %2562 = vst.msk [vmem:[#allocation4 + $0x8] sm:$0xff] %vm2474, %v2560
  %2564 = vrot.lane.b32.xlu0 %v2448, 40
  %v2565 = vpop.permute.xlu0 %2564
  %2567 = vst.msk [vmem:[#allocation4 + $0x8] sm:$0xff] %vm2480, %v2565
  %2569 = vrot.lane.b32.xlu0 %v2449, 48
  %v2570 = vpop.permute.xlu0 %2569
  %2572 = vst.msk [vmem:[#allocation4 + $0x8] sm:$0xff] %vm2486, %v2570
  %v2573 = vld [vmem:[#allocation4] sm:$0xff]
  %v2574 = vld [vmem:[#allocation4 + $0x8] sm:$0xff]
  %v2575 = vld [vmem:[%s6] sm:$0xff]
  %v2576 = vld [vmem:[%s6 + $0x8] sm:$0xff]
  %v2577 = vld [vmem:[%s6 + $0x10] sm:$0xff]
  %v2578 = vld [vmem:[%s6 + $0x18] sm:$0xff]
  %v2579 = vld [vmem:[%s6 + $0x20] sm:$0xff]
  %v2580 = vld [vmem:[%s6 + $0x28] sm:$0xff]
  %v2581 = vld [vmem:[%s6 + $0x30] sm:$0xff]
  %v2582 = vld [vmem:[%s6 + $0x38] sm:$0xff]
  %v2583 = vld [vmem:[%s6 + $0x40] sm:$0xff]
  %v2584 = vld [vmem:[%s6 + $0x48] sm:$0xff]
  %v2585 = vld [vmem:[%s6 + $0x50] sm:$0xff]
  %v2586 = vld [vmem:[%s6 + $0x58] sm:$0xff]
  %v2587 = vld [vmem:[%s6 + $0x60] sm:$0xff]
  %v2588 = vld [vmem:[%s6 + $0x68] sm:$0xff]
  %v2589 = vld [vmem:[%s6 + $0x70] sm:$0xff]
  %v2590 = vld [vmem:[%s6 + $0x78] sm:$0xff]
  %v2591 = vld [vmem:[%s6 + $0x80] sm:$0xff]
  %v2592 = vld [vmem:[%s6 + $0x88] sm:$0xff]
  %v2593 = vld [vmem:[%s6 + $0x90] sm:$0xff]
  %v2594 = vld [vmem:[%s6 + $0x98] sm:$0xff]
  %v2595 = vld [vmem:[%s6 + $0xa0] sm:$0xff]
  %v2596 = vld [vmem:[%s6 + $0xa8] sm:$0xff]
  %v2597 = vld [vmem:[%s6 + $0xb0] sm:$0xff]
  %v2598 = vld [vmem:[%s7] sm:$0x1]
  %v2600 = vlaneseq
  %v2601 = vshrl.u32 %v2600, 7
  %v2602 = vsub.s32 0, %v2601
  %v2603 = vrot.slane %v2598, %v2602
  %vm2605 = vcmask 457728
  %v2607 = vsel %vm2605, %v2574, 0
  %2609 = vmatprep.subr.mxu0 0.0
  %2610 = vmatpush1.msra.mxu0 %v2575
  %2611 = vmatprep.subr.mxu0 0.0
  %2612 = vmatpush1.msra.mxu0 %v2576
  %2613 = vmatprep.subr.mxu0 0.0
  %2614 = vmatpush1.msra.mxu0 %v2577
  %2615 = vmatprep.subr.mxu0 0.0
  %2616 = vmatpush1.msra.mxu0 %v2578
  %2617 = vmatprep.subr.mxu0 0.0
  %2618 = vmatpush1.msra.mxu0 %v2579
  %2619 = vmatprep.subr.mxu0 0.0
  %2620 = vmatpush1.msra.mxu0 %v2580
  %2621 = vmatprep.subr.mxu0 0.0
  %2622 = vmatpush1.msra.mxu0 %v2581
  %2623 = vmatprep.subr.mxu0 0.0
  %2624 = vmatpush1.msra.mxu0 %v2582
  %2625 = vmatprep.subr.mxu0 0.0
  %2626 = vmatpush1.msra.mxu0 %v2583
  %2627 = vmatprep.subr.mxu0 0.0
  %2628 = vmatpush1.msra.mxu0 %v2584
  %2629 = vmatprep.subr.mxu0 0.0
  %2630 = vmatpush1.msra.mxu0 %v2585
  %2631 = vmatprep.subr.mxu0 0.0
  %2632 = vmatpush1.msra.mxu0 %v2586
  %2633 = vmatprep.subr.mxu0 0.0
  %2634 = vmatpush1.msra.mxu0 %v2587
  %2635 = vmatprep.subr.mxu0 0.0
  %2636 = vmatpush1.msra.mxu0 %v2588
  %2637 = vmatprep.subr.mxu0 0.0
  %2638 = vmatpush1.msra.mxu0 %v2589
  %2639 = vmatprep.subr.mxu0 0.0
  %2640 = vmatpush1.msra.mxu0 %v2590
  %2641 = vmatprep.subr.mxu0 0.0
  %2642 = vmatpush1.msra.mxu0 %v2591
  %2643 = vmatprep.subr.mxu0 0.0
  %2644 = vmatpush1.msra.mxu0 %v2592
  %2645 = vmatprep.subr.mxu0 0.0
  %2646 = vmatpush1.msra.mxu0 %v2593
  %2647 = vmatprep.subr.mxu0 0.0
  %2648 = vmatpush1.msra.mxu0 %v2594
  %2649 = vmatprep.subr.mxu0 0.0
  %2650 = vmatpush1.msra.mxu0 %v2595
  %2651 = vmatprep.subr.mxu0 0.0
  %2652 = vmatpush1.msra.mxu0 %v2596
  %2653 = vmatprep.subr.mxu0 0.0
  %2654 = vmatpush1.msra.mxu0 %v2597
  %2655 = vmatprep.subr.mxu0 0.0
  %2656 = vmatpush1.msra.mxu0 0.0
  %2657 = vmatprep.subr.mxu0 0.0
  %2658 = vmatpush1.msra.mxu0 0.0
  %2659 = vmatprep.subr.mxu0 0.0
  %2660 = vmatpush1.msra.mxu0 0.0
  %2661 = vmatprep.subr.mxu0 0.0
  %2662 = vmatpush1.msra.mxu0 0.0
  %2663 = vmatprep.subr.mxu0 0.0
  %2664 = vmatpush1.msra.mxu0 0.0
  %2665 = vmatprep.subr.mxu0 0.0
  %2666 = vmatpush1.msra.mxu0 0.0
  %2667 = vmatprep.subr.mxu0 0.0
  %2668 = vmatpush1.msra.mxu0 0.0
  %2669 = vmatprep.subr.mxu0 0.0
  %2670 = vmatpush1.msra.mxu0 0.0
  %2671 = vmatprep.subr.mxu0 0.0
  %2672 = vmatpush1.msra.mxu0 0.0
  %2673 = vmatprep.mubr.f32.mxu0 %v2607
  %2674 = vmatmul.mubr.f32.gmra.mrb[0].mxu0 %v2573
  %v2675 = vpop.f32.mrb[0].mxu0
  %v2676 = vadd.f32 %v2603, %v2675
  %v2677 = vpop.f32.mrb[0].mxu0
  %2678 = vdwg.mxu0
  %vm2679 = vcmask 31744
  %v2680 = vsel %vm2679, %v2676, -inf
  %2681 = vmax.xlane.f32.xlu0 %v2680
  %v2682 = vpop.xlane.xlu0 %2681
  %v2683 = vsub.f32 %v2676, %v2682
  %v2684 = vmul.f32 %v2683, 1.442695
  %v2685 = vpow.pop %v2684
  %v2686 = vsel %vm2679, %v2685, 0.0
  %2687 = vadd.xlane.f32.xlu0 %v2686
  %v2688 = vpop.xlane.xlu0 %2687
  %v2689 = vrcp.pop %v2688
  %v2690 = vmul.f32 %v2685, %v2689
  %2691 = vst.msk [vmem:[%s8] sm:$0xff] %vm2679, %v2690
  // Predicated region
  $region34: #{lstm_forward.1} parent=0 // pred_check
    _
  $region35: #{lstm_forward.1} parent=0 // pred_check_branch
    %2693 = sbr.rel (0) target = $region37
  $region36: #{lstm_forward.1} parent=0 // pred_region
    _
  $region37: #{lstm_forward.1} parent=0 // pred_fallthru
    _
  // Predicated region
  $region38: #{lstm_forward.1} parent=0 // pred_check
    _
  $region39: #{lstm_forward.1} parent=0 // pred_check_branch
    %2695 = sbr.rel (0) target = $region41
  $region40: #{lstm_forward.1} parent=0 // pred_region
    _
  $region41: #{lstm_forward.1} parent=0 // pred_fallthru
    _

</llo_original>
